<compile_context>
chip_gen: v6e
topology: v6e:2x2x1
jax: 0.10.0
libtpu: 0.0.40
codegen_flags: <defaults>
</compile_context>

<pallas_src>
import functools

import jax
import jax.numpy as jnp
from jax.experimental import pallas as pl
from jax.experimental.pallas import tpu as pltpu


# -----------------------------------------------------------------------------
# Fused kernel: 2-layer GRU recurrence. One grid step per (batch-shard, time
# block); hidden states persist in VMEM scratch across the time axis.
# -----------------------------------------------------------------------------
def fused_gru2_kernel(gi1_ref, whh1_ref, bhh1n_ref,
                      wih2_ref, bih2_ref, whh2_ref, bhh2n_ref,
                      h2seq_ref,
                      h1_ref, h2_ref, *, t_block, hidden_dim):
    H = hidden_dim

    @pl.when(pl.program_id(1) == 0)   # first time block of this batch shard
    def _init():
        h1_ref[...] = jnp.zeros_like(h1_ref)
        h2_ref[...] = jnp.zeros_like(h2_ref)

    mm_dtype = whh1_ref.dtype  # matmul operand dtype (f32 or bf16)

    # Hoist grid-invariant weight/bias loads out of the (partially unrolled)
    # time loop instead of relying on compiler CSE.
    w_hh1 = whh1_ref[...]        # (H, 3H)  gates packed [r | z | n] along cols
    b_hh1_n = bhh1n_ref[...]     # (1, H)
    w_ih2 = wih2_ref[...]        # (H, 3H)
    b_ih2 = bih2_ref[...]        # (1, 3H)  (r/z hidden biases already folded in)
    w_hh2 = whh2_ref[...]        # (H, 3H)
    b_hh2_n = bhh2n_ref[...]     # (1, H)

    def matmul(a, w):
        # Single MXU dot; operands may be bf16 (v6e/v7x rate), accumulate f32.
        return jnp.dot(a.astype(mm_dtype), w, preferred_element_type=jnp.float32)

    def gru_cell(gi, h_prev, w_hh, b_hh_n):
        # gi: (B, 3H) input-path gates with b_ih and b_hh[r,z] pre-folded.
        # One fused (B,H)@(H,3H) hidden matmul; slice gates out afterwards.
        gh = matmul(h_prev, w_hh)                                   # (B, 3H)
        r = jax.nn.sigmoid(gi[:, :H] + gh[:, :H])
        z = jax.nn.sigmoid(gi[:, H:2 * H] + gh[:, H:2 * H])
        # PyTorch GRU: n = tanh(W_in x + b_in + r * (W_hn h + b_hn)).
        n = jnp.tanh(gi[:, 2 * H:] + r * (gh[:, 2 * H:] + b_hh_n))
        return n + z * (h_prev - n)       # == (1 - z) * n + z * h_prev

    def step(t, carry):
        h1, h2 = carry
        # Layer 1: input projection was hoisted out of the kernel entirely.
        h1_new = gru_cell(gi1_ref[t], h1, w_hh1, b_hh1_n)
        # Layer 2: input projection depends on h1_t, so it stays in the loop
        # (but is one fused (B,H)@(H,3H) matmul, not three).
        gi2 = matmul(h1_new, w_ih2) + b_ih2
        h2_new = gru_cell(gi2, h2, w_hh2, b_hh2_n)
        # Lane-dense (B, H) store; Linear+Sigmoid head runs outside the kernel.
        h2seq_ref[t] = h2_new.astype(h2seq_ref.dtype)
        return h1_new, h2_new

    h1_fin, h2_fin = jax.lax.fori_loop(
        0, t_block, step, (h1_ref[...], h2_ref[...]),
        unroll=min(8, t_block))   # partial unroll: LLO visibility w/o vreg blowup
    h1_ref[...] = h1_fin
    h2_ref[...] = h2_fin


def gru2_pallas(packed, gi1, B, H, t_block, b_block):
    """gi1: (T_pad, B, 3H) f32. Returns layer-2 hidden sequence (T_pad, B, H) f32."""
    T_pad = gi1.shape[0]
    n_blk = T_pad // t_block
    n_bsh = B // b_block
    kernel = functools.partial(fused_gru2_kernel, t_block=t_block, hidden_dim=H)
    return pl.pallas_call(
        kernel,
        out_shape=jax.ShapeDtypeStruct((T_pad, B, H), jnp.float32),
        grid_spec=pltpu.PrefetchScalarGridSpec(
            num_scalar_prefetch=0,
            # Leading batch-shard axis is "parallel" (v7x second TC for large B);
            # time axis is "arbitrary" (sequential recurrence, VMEM state carry).
            grid=(n_bsh, n_blk),
            in_specs=[
                pl.BlockSpec((t_block, b_block, 3 * H), lambda b, i: (i, b, 0)),  # gi1
                pl.BlockSpec((H, 3 * H), lambda b, i: (0, 0)),                    # W_hh1
                pl.BlockSpec((1, H), lambda b, i: (0, 0)),                        # b_hh1_n
                pl.BlockSpec((H, 3 * H), lambda b, i: (0, 0)),                    # W_ih2
                pl.BlockSpec((1, 3 * H), lambda b, i: (0, 0)),                    # b_ih2 (+folded)
                pl.BlockSpec((H, 3 * H), lambda b, i: (0, 0)),                    # W_hh2
                pl.BlockSpec((1, H), lambda b, i: (0, 0)),                        # b_hh2_n
            ],
            out_specs=pl.BlockSpec((t_block, b_block, H), lambda b, i: (i, b, 0)),
            scratch_shapes=[pltpu.VMEM((b_block, H), jnp.float32),   # h1 (recurrent)
                            pltpu.VMEM((b_block, H), jnp.float32)],  # h2 (recurrent)
        ),
        compiler_params=pltpu.CompilerParams(
            dimension_semantics=("parallel", "arbitrary")),
    )(gi1, packed["w_hh1"], packed["b_hh1_n"],
      packed["w_ih2"], packed["b_ih2"],
      packed["w_hh2"], packed["b_hh2_n"])


# -----------------------------------------------------------------------------
# One-time parameter packing (all transposes / bias folds happen here, never
# per forward).  PyTorch gate order (r, z, n) is preserved along the 3H axis.
# -----------------------------------------------------------------------------
def prepare_params(params, matmul_dtype=jnp.float32):
    (w_ih1, w_hh1, b_ih1, b_hh1), (w_ih2, w_hh2, b_ih2, b_hh2) = params["gru"]
    w_lin, b_lin = params["linear"]
    H = w_hh1.shape[1]

    def fold_rz(b_ih, b_hh):
        # Fold the hidden-path r/z biases into the input-path bias.  The n-gate
        # hidden bias must stay separate: n = tanh(gi_n + r * (gh_n + b_hn)).
        folded = jnp.concatenate([b_ih[:2 * H] + b_hh[:2 * H], b_ih[2 * H:]])
        return folded.reshape(1, 3 * H).astype(jnp.float32)

    return {
        # Layer-1 input weights: only used in the hoisted whole-sequence matmul.
        "w_ih1_t": jnp.transpose(w_ih1).astype(matmul_dtype),          # (D, 3H)
        "b_gi1": fold_rz(b_ih1, b_hh1),                                # (1, 3H)
        "w_hh1": jnp.transpose(w_hh1).astype(matmul_dtype),            # (H, 3H)
        "b_hh1_n": b_hh1[2 * H:].reshape(1, H).astype(jnp.float32),    # (1, H)
        "w_ih2": jnp.transpose(w_ih2).astype(matmul_dtype),            # (H, 3H)
        "b_ih2": fold_rz(b_ih2, b_hh2),                                # (1, 3H)
        "w_hh2": jnp.transpose(w_hh2).astype(matmul_dtype),            # (H, 3H)
        "b_hh2_n": b_hh2[2 * H:].reshape(1, H).astype(jnp.float32),    # (1, H)
        "w_lin_t": jnp.transpose(w_lin).astype(matmul_dtype),          # (H, O)
        "b_lin": b_lin.reshape(1, -1).astype(jnp.float32),             # (1, O)
    }


# -----------------------------------------------------------------------------
# Forward pass: hoisted input projection + fused Pallas recurrence + batched head.
# -----------------------------------------------------------------------------
def rnn_reg_forward(packed, x_btd, hidden_dim, t_block=32, b_block=None):
    """x_btd: (B, T, input_dim) batch_first f32. Returns (B, T, output_dim)."""
    B, T, D = x_btd.shape
    H = hidden_dim
    mm_dtype = packed["w_ih1_t"].dtype

    # --- Hoisted layer-1 input projection: one well-shaped (T*B, D) @ (D, 3H)
    # matmul for the whole sequence; r/z hidden biases already folded in. ---
    x_tbd = jnp.transpose(x_btd, (1, 0, 2))                            # (T, B, D)
    gi1 = jnp.dot(x_tbd.reshape(T * B, D).astype(mm_dtype),
                  packed["w_ih1_t"],
                  preferred_element_type=jnp.float32) + packed["b_gi1"]
    gi1 = gi1.reshape(T, B, 3 * H)        # keep fused layout; no gate transpose

    t_block = max(1, min(t_block, T))
    n_blk = pl.cdiv(T, t_block)
    T_pad = n_blk * t_block
    if T_pad != T:
        # Trailing padded steps compute throw-away state; outputs sliced below.
        gi1 = jnp.pad(gi1, ((0, T_pad - T), (0, 0), (0, 0)))

    if b_block is None or b_block <= 0 or B % b_block != 0:
        b_block = B   # single batch shard (v5e/v6e or small batches)

    h2_seq = gru2_pallas(packed, gi1, B, H, t_block, b_block)[:T]      # (T, B, H)

    # --- Regression head off the recurrent critical path: one big matmul. ---
    out = jax.nn.sigmoid(
        jnp.dot(h2_seq.reshape(T * B, H).astype(mm_dtype), packed["w_lin_t"],
                preferred_element_type=jnp.float32) + packed["b_lin"])
    out = out.reshape(T, B, -1)
    return jnp.transpose(out, (1, 0, 2))                               # (B, T, O)


# -----------------------------------------------------------------------------
# Parameter init (deterministic, PyTorch-style uniform(-1/sqrt(H), 1/sqrt(H)))
# -----------------------------------------------------------------------------
def init_params(key, input_dim, hidden_dim, output_dim, num_layers):
    params = {"gru": [], "linear": None}
    k_gru = 1.0 / jnp.sqrt(hidden_dim)
    for layer in range(num_layers):
        d_in = input_dim if layer == 0 else hidden_dim
        key, k1, k2, k3, k4 = jax.random.split(key, 5)
        w_ih = jax.random.uniform(k1, (3 * hidden_dim, d_in),
                                  minval=-k_gru, maxval=k_gru, dtype=jnp.float32)
        w_hh = jax.random.uniform(k2, (3 * hidden_dim, hidden_dim),
                                  minval=-k_gru, maxval=k_gru, dtype=jnp.float32)
        b_ih = jax.random.uniform(k3, (3 * hidden_dim,),
                                  minval=-k_gru, maxval=k_gru, dtype=jnp.float32)
        b_hh = jax.random.uniform(k4, (3 * hidden_dim,),
                                  minval=-k_gru, maxval=k_gru, dtype=jnp.float32)
        params["gru"].append((w_ih, w_hh, b_ih, b_hh))
    k_lin = 1.0 / jnp.sqrt(hidden_dim)
    key, k1, k2 = jax.random.split(key, 3)
    w_lin = jax.random.uniform(k1, (output_dim, hidden_dim),
                               minval=-k_lin, maxval=k_lin, dtype=jnp.float32)
    b_lin = jax.random.uniform(k2, (output_dim,),
                               minval=-k_lin, maxval=k_lin, dtype=jnp.float32)
    params["linear"] = (w_lin, b_lin)
    return params


# -----------------------------------------------------------------------------
# Pure-JAX reference (mirrors the PyTorch module) for validation.
# -----------------------------------------------------------------------------
def rnn_reg_reference(params, x_btd, hidden_dim, num_layers):
    H = hidden_dim
    B = x_btd.shape[0]
    h_seq = jnp.transpose(x_btd, (1, 0, 2))
    for layer in range(num_layers):
        w_ih, w_hh, b_ih, b_hh = params["gru"][layer]

        def step(h, x_t, w_ih=w_ih, w_hh=w_hh, b_ih=b_ih, b_hh=b_hh):
            gi = x_t @ w_ih.T + b_ih
            gh = h @ w_hh.T + b_hh
            r = jax.nn.sigmoid(gi[:, :H] + gh[:, :H])
            z = jax.nn.sigmoid(gi[:, H:2 * H] + gh[:, H:2 * H])
            n = jnp.tanh(gi[:, 2 * H:] + r * gh[:, 2 * H:])
            h_new = (1.0 - z) * n + z * h
            return h_new, h_new

        _, h_seq = jax.lax.scan(step, jnp.zeros((B, H), jnp.float32), h_seq)
    w_lin, b_lin = params["linear"]
    out = jax.nn.sigmoid(h_seq @ w_lin.T + b_lin)
    return jnp.transpose(out, (1, 0, 2))


if __name__ == "__main__":
    # Small shapes consistent with the module's forward.
    batch, seq, input_dim, hidden_dim, output_dim, num_layers = 2, 8, 6, 32, 4, 2

    key = jax.random.PRNGKey(0)
    key, pkey, xkey = jax.random.split(key, 3)
    params = init_params(pkey, input_dim, hidden_dim, output_dim, num_layers)
    x = jax.random.normal(xkey, (batch, seq, input_dim), dtype=jnp.float32)

    ref = jax.block_until_ready(rnn_reg_reference(params, x, hidden_dim, num_layers))

    fwd = jax.jit(functools.partial(rnn_reg_forward, hidden_dim=hidden_dim))

    # f32 matmul-operand path (tight check against the pure-JAX reference).
    packed_f32 = prepare_params(params, matmul_dtype=jnp.float32)
    out = jax.block_until_ready(fwd(packed_f32, x))
    assert out.shape == (batch, seq, output_dim)
    assert jnp.allclose(out, ref, atol=2e-5, rtol=2e-5), \
        "Pallas (f32) output mismatch vs JAX reference"

    # bf16 matmul-operand path (MXU rate on v6e/v7x; elementwise math stays f32).
    packed_bf16 = prepare_params(params, matmul_dtype=jnp.bfloat16)
    out_bf16 = jax.block_until_ready(fwd(packed_bf16, x))
    assert jnp.allclose(out_bf16, ref, atol=3e-2), \
        "Pallas (bf16 matmul) output mismatch vs JAX reference"

    print("KERNEL_OK")
</pallas_src>

<mosaic_0001>
module attributes {stable_mosaic.version = 11 : i64} {
  func.func @fused_gru2_kernel(%arg0: i32, %arg1: i32, %arg2: memref<8x2x96xf32, #tpu.memory_space<vmem>>, %arg3: memref<32x96xf32, #tpu.memory_space<vmem>>, %arg4: memref<1x32xf32, #tpu.memory_space<vmem>>, %arg5: memref<32x96xf32, #tpu.memory_space<vmem>>, %arg6: memref<1x96xf32, #tpu.memory_space<vmem>>, %arg7: memref<32x96xf32, #tpu.memory_space<vmem>>, %arg8: memref<1x32xf32, #tpu.memory_space<vmem>>, %arg9: memref<8x2x32xf32, #tpu.memory_space<vmem>>, %arg10: memref<2x32xf32, #tpu.memory_space<vmem>>, %arg11: memref<2x32xf32, #tpu.memory_space<vmem>>) attributes {dimension_semantics = [#tpu.dimension_semantics<parallel>, #tpu.dimension_semantics<arbitrary>], iteration_bounds = array<i64: 1, 1>, scalar_prefetch = 0 : i64, scratch_operands = 2 : i64, tpu.core_type = #tpu.core_type<tc>, window_params = [{transform_indices = @transform_0, window_bounds = array<i64: 8, 2, 96>}, {pipeline_mode = #tpu.pipeline_mode<synchronous>, transform_indices = @transform_1, window_bounds = array<i64: 32, 96>}, {pipeline_mode = #tpu.pipeline_mode<synchronous>, transform_indices = @transform_2, window_bounds = array<i64: 1, 32>}, {pipeline_mode = #tpu.pipeline_mode<synchronous>, transform_indices = @transform_3, window_bounds = array<i64: 32, 96>}, {pipeline_mode = #tpu.pipeline_mode<synchronous>, transform_indices = @transform_4, window_bounds = array<i64: 1, 96>}, {pipeline_mode = #tpu.pipeline_mode<synchronous>, transform_indices = @transform_5, window_bounds = array<i64: 32, 96>}, {pipeline_mode = #tpu.pipeline_mode<synchronous>, transform_indices = @transform_6, window_bounds = array<i64: 1, 32>}, {transform_indices = @transform_7, window_bounds = array<i64: 8, 2, 32>}]} {
    %c0_i32 = arith.constant 0 : i32
    %0 = arith.cmpi eq, %arg1, %c0_i32 : i32
    %1 = arith.extui %0 : i1 to i32
    %c0_i32_0 = arith.constant 0 : i32
    %2 = arith.cmpi ne, %1, %c0_i32_0 : i32
    scf.if %2 {
      %cst_108 = arith.constant 0.000000e+00 : f32
      %525 = vector.broadcast %cst_108 : f32 to vector<2x32xf32>
      %c0_109 = arith.constant 0 : index
      %c0_110 = arith.constant 0 : index
      %526 = vector.load %arg10[%c0_109, %c0_110] : memref<2x32xf32, #tpu.memory_space<vmem>>, vector<2x32xf32>
      tpu.vector_store %arg10[%c0_109, %c0_110], %525 {strides = array<i32>} : memref<2x32xf32, #tpu.memory_space<vmem>>, vector<2x32xf32>,
      %cst_111 = arith.constant 0.000000e+00 : f32
      %527 = vector.broadcast %cst_111 : f32 to vector<2x32xf32>
      %c0_112 = arith.constant 0 : index
      %c0_113 = arith.constant 0 : index
      %528 = vector.load %arg11[%c0_112, %c0_113] : memref<2x32xf32, #tpu.memory_space<vmem>>, vector<2x32xf32>
      tpu.vector_store %arg11[%c0_112, %c0_113], %527 {strides = array<i32>} : memref<2x32xf32, #tpu.memory_space<vmem>>, vector<2x32xf32>,
    } else {
    }
    %c0 = arith.constant 0 : index
    %c0_1 = arith.constant 0 : index
    %3 = vector.load %arg3[%c0, %c0_1] : memref<32x96xf32, #tpu.memory_space<vmem>>, vector<32x96xf32>
    %c0_2 = arith.constant 0 : index
    %c0_3 = arith.constant 0 : index
    %4 = vector.load %arg4[%c0_2, %c0_3] : memref<1x32xf32, #tpu.memory_space<vmem>>, vector<1x32xf32>
    %c0_4 = arith.constant 0 : index
    %c0_5 = arith.constant 0 : index
    %5 = vector.load %arg5[%c0_4, %c0_5] : memref<32x96xf32, #tpu.memory_space<vmem>>, vector<32x96xf32>
    %c0_6 = arith.constant 0 : index
    %c0_7 = arith.constant 0 : index
    %6 = vector.load %arg6[%c0_6, %c0_7] : memref<1x96xf32, #tpu.memory_space<vmem>>, vector<1x96xf32>
    %c0_8 = arith.constant 0 : index
    %c0_9 = arith.constant 0 : index
    %7 = vector.load %arg7[%c0_8, %c0_9] : memref<32x96xf32, #tpu.memory_space<vmem>>, vector<32x96xf32>
    %c0_10 = arith.constant 0 : index
    %c0_11 = arith.constant 0 : index
    %8 = vector.load %arg8[%c0_10, %c0_11] : memref<1x32xf32, #tpu.memory_space<vmem>>, vector<1x32xf32>
    %c0_12 = arith.constant 0 : index
    %c0_13 = arith.constant 0 : index
    %9 = vector.load %arg10[%c0_12, %c0_13] : memref<2x32xf32, #tpu.memory_space<vmem>>, vector<2x32xf32>
    %c0_14 = arith.constant 0 : index
    %c0_15 = arith.constant 0 : index
    %10 = vector.load %arg11[%c0_14, %c0_15] : memref<2x32xf32, #tpu.memory_space<vmem>>, vector<2x32xf32>
    %c0_i32_16 = arith.constant 0 : i32
    %11 = arith.index_cast %c0_i32_16 : i32 to index
    %c0_17 = arith.constant 0 : index
    %c0_18 = arith.constant 0 : index
    %12 = vector.load %arg2[%11, %c0_17, %c0_18] : memref<8x2x96xf32, #tpu.memory_space<vmem>>, vector<1x2x96xf32>
    %13 = vector.shape_cast %12 : vector<1x2x96xf32> to vector<2x96xf32>
    %cst = arith.constant dense<0.000000e+00> : vector<2x96xf32>
    %14 = tpu.matmul %9, %3, %cst {dimension_numbers = #tpu.dot_dimension_numbers<[1], [0], [0], [1], [0, 0, 1, 1], [], []>} : vector<2x32xf32>, vector<32x96xf32>, vector<2x96xf32> -> vector<2x96xf32>
    %15 = vector.extract_strided_slice %13 {offsets = [0, 0], sizes = [2, 32], strides = [1, 1]} : vector<2x96xf32> to vector<2x32xf32>
    %16 = vector.extract_strided_slice %14 {offsets = [0, 0], sizes = [2, 32], strides = [1, 1]} : vector<2x96xf32> to vector<2x32xf32>
    %17 = arith.addf %15, %16 : vector<2x32xf32>
    %18 = arith.negf %17 : vector<2x32xf32>
    %19 = math.exp %18 : vector<2x32xf32>
    %cst_19 = arith.constant 1.000000e+00 : f32
    %20 = vector.broadcast %cst_19 : f32 to vector<2x32xf32>
    %21 = arith.addf %20, %19 : vector<2x32xf32>
    %22 = arith.divf %20, %21 : vector<2x32xf32>
    %23 = vector.extract_strided_slice %13 {offsets = [0, 32], sizes = [2, 32], strides = [1, 1]} : vector<2x96xf32> to vector<2x32xf32>
    %24 = vector.extract_strided_slice %14 {offsets = [0, 32], sizes = [2, 32], strides = [1, 1]} : vector<2x96xf32> to vector<2x32xf32>
    %25 = arith.addf %23, %24 : vector<2x32xf32>
    %26 = arith.negf %25 : vector<2x32xf32>
    %27 = math.exp %26 : vector<2x32xf32>
    %cst_20 = arith.constant 1.000000e+00 : f32
    %28 = vector.broadcast %cst_20 : f32 to vector<2x32xf32>
    %29 = arith.addf %28, %27 : vector<2x32xf32>
    %30 = arith.divf %28, %29 : vector<2x32xf32>
    %31 = vector.extract_strided_slice %13 {offsets = [0, 64], sizes = [2, 32], strides = [1, 1]} : vector<2x96xf32> to vector<2x32xf32>
    %32 = vector.extract_strided_slice %14 {offsets = [0, 64], sizes = [2, 32], strides = [1, 1]} : vector<2x96xf32> to vector<2x32xf32>
    %33 = vector.broadcast %4 : vector<1x32xf32> to vector<2x32xf32>
    %34 = arith.addf %32, %33 : vector<2x32xf32>
    %35 = arith.mulf %22, %34 : vector<2x32xf32>
    %36 = arith.addf %31, %35 : vector<2x32xf32>
    %37 = math.tanh %36 : vector<2x32xf32>
    %38 = arith.subf %9, %37 : vector<2x32xf32>
    %39 = arith.mulf %30, %38 : vector<2x32xf32>
    %40 = arith.addf %37, %39 : vector<2x32xf32>
    %cst_21 = arith.constant dense<0.000000e+00> : vector<2x96xf32>
    %41 = tpu.matmul %40, %5, %cst_21 {dimension_numbers = #tpu.dot_dimension_numbers<[1], [0], [0], [1], [0, 0, 1, 1], [], []>} : vector<2x32xf32>, vector<32x96xf32>, vector<2x96xf32> -> vector<2x96xf32>
    %42 = vector.broadcast %6 : vector<1x96xf32> to vector<2x96xf32>
    %43 = arith.addf %41, %42 : vector<2x96xf32>
    %cst_22 = arith.constant dense<0.000000e+00> : vector<2x96xf32>
    %44 = tpu.matmul %10, %7, %cst_22 {dimension_numbers = #tpu.dot_dimension_numbers<[1], [0], [0], [1], [0, 0, 1, 1], [], []>} : vector<2x32xf32>, vector<32x96xf32>, vector<2x96xf32> -> vector<2x96xf32>
    %45 = vector.extract_strided_slice %43 {offsets = [0, 0], sizes = [2, 32], strides = [1, 1]} : vector<2x96xf32> to vector<2x32xf32>
    %46 = vector.extract_strided_slice %44 {offsets = [0, 0], sizes = [2, 32], strides = [1, 1]} : vector<2x96xf32> to vector<2x32xf32>
    %47 = arith.addf %45, %46 : vector<2x32xf32>
    %48 = arith.negf %47 : vector<2x32xf32>
    %49 = math.exp %48 : vector<2x32xf32>
    %cst_23 = arith.constant 1.000000e+00 : f32
    %50 = vector.broadcast %cst_23 : f32 to vector<2x32xf32>
    %51 = arith.addf %50, %49 : vector<2x32xf32>
    %52 = arith.divf %50, %51 : vector<2x32xf32>
    %53 = vector.extract_strided_slice %43 {offsets = [0, 32], sizes = [2, 32], strides = [1, 1]} : vector<2x96xf32> to vector<2x32xf32>
    %54 = vector.extract_strided_slice %44 {offsets = [0, 32], sizes = [2, 32], strides = [1, 1]} : vector<2x96xf32> to vector<2x32xf32>
    %55 = arith.addf %53, %54 : vector<2x32xf32>
    %56 = arith.negf %55 : vector<2x32xf32>
    %57 = math.exp %56 : vector<2x32xf32>
    %cst_24 = arith.constant 1.000000e+00 : f32
    %58 = vector.broadcast %cst_24 : f32 to vector<2x32xf32>
    %59 = arith.addf %58, %57 : vector<2x32xf32>
    %60 = arith.divf %58, %59 : vector<2x32xf32>
    %61 = vector.extract_strided_slice %43 {offsets = [0, 64], sizes = [2, 32], strides = [1, 1]} : vector<2x96xf32> to vector<2x32xf32>
    %62 = vector.extract_strided_slice %44 {offsets = [0, 64], sizes = [2, 32], strides = [1, 1]} : vector<2x96xf32> to vector<2x32xf32>
    %63 = vector.broadcast %8 : vector<1x32xf32> to vector<2x32xf32>
    %64 = arith.addf %62, %63 : vector<2x32xf32>
    %65 = arith.mulf %52, %64 : vector<2x32xf32>
    %66 = arith.addf %61, %65 : vector<2x32xf32>
    %67 = math.tanh %66 : vector<2x32xf32>
    %68 = arith.subf %10, %67 : vector<2x32xf32>
    %69 = arith.mulf %60, %68 : vector<2x32xf32>
    %70 = arith.addf %67, %69 : vector<2x32xf32>
    %71 = arith.index_cast %c0_i32_16 : i32 to index
    %c0_25 = arith.constant 0 : index
    %c0_26 = arith.constant 0 : index
    %72 = vector.load %arg9[%71, %c0_25, %c0_26] : memref<8x2x32xf32, #tpu.memory_space<vmem>>, vector<1x2x32xf32>
    %73 = vector.shape_cast %72 : vector<1x2x32xf32> to vector<2x32xf32>
    %74 = vector.shape_cast %70 : vector<2x32xf32> to vector<1x2x32xf32>
    tpu.vector_store %arg9[%71, %c0_25, %c0_26], %74 {strides = array<i32>} : memref<8x2x32xf32, #tpu.memory_space<vmem>>, vector<1x2x32xf32>,
    %c1_i32 = arith.constant 1 : i32
    %75 = arith.index_cast %c1_i32 : i32 to index
    %c0_27 = arith.constant 0 : index
    %c0_28 = arith.constant 0 : index
    %76 = vector.load %arg2[%75, %c0_27, %c0_28] : memref<8x2x96xf32, #tpu.memory_space<vmem>>, vector<1x2x96xf32>
    %77 = vector.shape_cast %76 : vector<1x2x96xf32> to vector<2x96xf32>
    %cst_29 = arith.constant dense<0.000000e+00> : vector<2x96xf32>
    %78 = tpu.matmul %40, %3, %cst_29 {dimension_numbers = #tpu.dot_dimension_numbers<[1], [0], [0], [1], [0, 0, 1, 1], [], []>} : vector<2x32xf32>, vector<32x96xf32>, vector<2x96xf32> -> vector<2x96xf32>
    %79 = vector.extract_strided_slice %77 {offsets = [0, 0], sizes = [2, 32], strides = [1, 1]} : vector<2x96xf32> to vector<2x32xf32>
    %80 = vector.extract_strided_slice %78 {offsets = [0, 0], sizes = [2, 32], strides = [1, 1]} : vector<2x96xf32> to vector<2x32xf32>
    %81 = arith.addf %79, %80 : vector<2x32xf32>
    %82 = arith.negf %81 : vector<2x32xf32>
    %83 = math.exp %82 : vector<2x32xf32>
    %cst_30 = arith.constant 1.000000e+00 : f32
    %84 = vector.broadcast %cst_30 : f32 to vector<2x32xf32>
    %85 = arith.addf %84, %83 : vector<2x32xf32>
    %86 = arith.divf %84, %85 : vector<2x32xf32>
    %87 = vector.extract_strided_slice %77 {offsets = [0, 32], sizes = [2, 32], strides = [1, 1]} : vector<2x96xf32> to vector<2x32xf32>
    %88 = vector.extract_strided_slice %78 {offsets = [0, 32], sizes = [2, 32], strides = [1, 1]} : vector<2x96xf32> to vector<2x32xf32>
    %89 = arith.addf %87, %88 : vector<2x32xf32>
    %90 = arith.negf %89 : vector<2x32xf32>
    %91 = math.exp %90 : vector<2x32xf32>
    %cst_31 = arith.constant 1.000000e+00 : f32
    %92 = vector.broadcast %cst_31 : f32 to vector<2x32xf32>
    %93 = arith.addf %92, %91 : vector<2x32xf32>
    %94 = arith.divf %92, %93 : vector<2x32xf32>
    %95 = vector.extract_strided_slice %77 {offsets = [0, 64], sizes = [2, 32], strides = [1, 1]} : vector<2x96xf32> to vector<2x32xf32>
    %96 = vector.extract_strided_slice %78 {offsets = [0, 64], sizes = [2, 32], strides = [1, 1]} : vector<2x96xf32> to vector<2x32xf32>
    %97 = vector.broadcast %4 : vector<1x32xf32> to vector<2x32xf32>
    %98 = arith.addf %96, %97 : vector<2x32xf32>
    %99 = arith.mulf %86, %98 : vector<2x32xf32>
    %100 = arith.addf %95, %99 : vector<2x32xf32>
    %101 = math.tanh %100 : vector<2x32xf32>
    %102 = arith.subf %40, %101 : vector<2x32xf32>
    %103 = arith.mulf %94, %102 : vector<2x32xf32>
    %104 = arith.addf %101, %103 : vector<2x32xf32>
    %cst_32 = arith.constant dense<0.000000e+00> : vector<2x96xf32>
    %105 = tpu.matmul %104, %5, %cst_32 {dimension_numbers = #tpu.dot_dimension_numbers<[1], [0], [0], [1], [0, 0, 1, 1], [], []>} : vector<2x32xf32>, vector<32x96xf32>, vector<2x96xf32> -> vector<2x96xf32>
    %106 = vector.broadcast %6 : vector<1x96xf32> to vector<2x96xf32>
    %107 = arith.addf %105, %106 : vector<2x96xf32>
    %cst_33 = arith.constant dense<0.000000e+00> : vector<2x96xf32>
    %108 = tpu.matmul %70, %7, %cst_33 {dimension_numbers = #tpu.dot_dimension_numbers<[1], [0], [0], [1], [0, 0, 1, 1], [], []>} : vector<2x32xf32>, vector<32x96xf32>, vector<2x96xf32> -> vector<2x96xf32>
    %109 = vector.extract_strided_slice %107 {offsets = [0, 0], sizes = [2, 32], strides = [1, 1]} : vector<2x96xf32> to vector<2x32xf32>
    %110 = vector.extract_strided_slice %108 {offsets = [0, 0], sizes = [2, 32], strides = [1, 1]} : vector<2x96xf32> to vector<2x32xf32>
    %111 = arith.addf %109, %110 : vector<2x32xf32>
    %112 = arith.negf %111 : vector<2x32xf32>
    %113 = math.exp %112 : vector<2x32xf32>
    %cst_34 = arith.constant 1.000000e+00 : f32
    %114 = vector.broadcast %cst_34 : f32 to vector<2x32xf32>
    %115 = arith.addf %114, %113 : vector<2x32xf32>
    %116 = arith.divf %114, %115 : vector<2x32xf32>
    %117 = vector.extract_strided_slice %107 {offsets = [0, 32], sizes = [2, 32], strides = [1, 1]} : vector<2x96xf32> to vector<2x32xf32>
    %118 = vector.extract_strided_slice %108 {offsets = [0, 32], sizes = [2, 32], strides = [1, 1]} : vector<2x96xf32> to vector<2x32xf32>
    %119 = arith.addf %117, %118 : vector<2x32xf32>
    %120 = arith.negf %119 : vector<2x32xf32>
    %121 = math.exp %120 : vector<2x32xf32>
    %cst_35 = arith.constant 1.000000e+00 : f32
    %122 = vector.broadcast %cst_35 : f32 to vector<2x32xf32>
    %123 = arith.addf %122, %121 : vector<2x32xf32>
    %124 = arith.divf %122, %123 : vector<2x32xf32>
    %125 = vector.extract_strided_slice %107 {offsets = [0, 64], sizes = [2, 32], strides = [1, 1]} : vector<2x96xf32> to vector<2x32xf32>
    %126 = vector.extract_strided_slice %108 {offsets = [0, 64], sizes = [2, 32], strides = [1, 1]} : vector<2x96xf32> to vector<2x32xf32>
    %127 = vector.broadcast %8 : vector<1x32xf32> to vector<2x32xf32>
    %128 = arith.addf %126, %127 : vector<2x32xf32>
    %129 = arith.mulf %116, %128 : vector<2x32xf32>
    %130 = arith.addf %125, %129 : vector<2x32xf32>
    %131 = math.tanh %130 : vector<2x32xf32>
    %132 = arith.subf %70, %131 : vector<2x32xf32>
    %133 = arith.mulf %124, %132 : vector<2x32xf32>
    %134 = arith.addf %131, %133 : vector<2x32xf32>
    %135 = arith.index_cast %c1_i32 : i32 to index
    %c0_36 = arith.constant 0 : index
    %c0_37 = arith.constant 0 : index
    %136 = vector.load %arg9[%135, %c0_36, %c0_37] : memref<8x2x32xf32, #tpu.memory_space<vmem>>, vector<1x2x32xf32>
    %137 = vector.shape_cast %136 : vector<1x2x32xf32> to vector<2x32xf32>
    %138 = vector.shape_cast %134 : vector<2x32xf32> to vector<1x2x32xf32>
    tpu.vector_store %arg9[%135, %c0_36, %c0_37], %138 {strides = array<i32>} : memref<8x2x32xf32, #tpu.memory_space<vmem>>, vector<1x2x32xf32>,
    %c2_i32 = arith.constant 2 : i32
    %139 = arith.index_cast %c2_i32 : i32 to index
    %c0_38 = arith.constant 0 : index
    %c0_39 = arith.constant 0 : index
    %140 = vector.load %arg2[%139, %c0_38, %c0_39] : memref<8x2x96xf32, #tpu.memory_space<vmem>>, vector<1x2x96xf32>
    %141 = vector.shape_cast %140 : vector<1x2x96xf32> to vector<2x96xf32>
    %cst_40 = arith.constant dense<0.000000e+00> : vector<2x96xf32>
    %142 = tpu.matmul %104, %3, %cst_40 {dimension_numbers = #tpu.dot_dimension_numbers<[1], [0], [0], [1], [0, 0, 1, 1], [], []>} : vector<2x32xf32>, vector<32x96xf32>, vector<2x96xf32> -> vector<2x96xf32>
    %143 = vector.extract_strided_slice %141 {offsets = [0, 0], sizes = [2, 32], strides = [1, 1]} : vector<2x96xf32> to vector<2x32xf32>
    %144 = vector.extract_strided_slice %142 {offsets = [0, 0], sizes = [2, 32], strides = [1, 1]} : vector<2x96xf32> to vector<2x32xf32>
    %145 = arith.addf %143, %144 : vector<2x32xf32>
    %146 = arith.negf %145 : vector<2x32xf32>
    %147 = math.exp %146 : vector<2x32xf32>
    %cst_41 = arith.constant 1.000000e+00 : f32
    %148 = vector.broadcast %cst_41 : f32 to vector<2x32xf32>
    %149 = arith.addf %148, %147 : vector<2x32xf32>
    %150 = arith.divf %148, %149 : vector<2x32xf32>
    %151 = vector.extract_strided_slice %141 {offsets = [0, 32], sizes = [2, 32], strides = [1, 1]} : vector<2x96xf32> to vector<2x32xf32>
    %152 = vector.extract_strided_slice %142 {offsets = [0, 32], sizes = [2, 32], strides = [1, 1]} : vector<2x96xf32> to vector<2x32xf32>
    %153 = arith.addf %151, %152 : vector<2x32xf32>
    %154 = arith.negf %153 : vector<2x32xf32>
    %155 = math.exp %154 : vector<2x32xf32>
    %cst_42 = arith.constant 1.000000e+00 : f32
    %156 = vector.broadcast %cst_42 : f32 to vector<2x32xf32>
    %157 = arith.addf %156, %155 : vector<2x32xf32>
    %158 = arith.divf %156, %157 : vector<2x32xf32>
    %159 = vector.extract_strided_slice %141 {offsets = [0, 64], sizes = [2, 32], strides = [1, 1]} : vector<2x96xf32> to vector<2x32xf32>
    %160 = vector.extract_strided_slice %142 {offsets = [0, 64], sizes = [2, 32], strides = [1, 1]} : vector<2x96xf32> to vector<2x32xf32>
    %161 = vector.broadcast %4 : vector<1x32xf32> to vector<2x32xf32>
    %162 = arith.addf %160, %161 : vector<2x32xf32>
    %163 = arith.mulf %150, %162 : vector<2x32xf32>
    %164 = arith.addf %159, %163 : vector<2x32xf32>
    %165 = math.tanh %164 : vector<2x32xf32>
    %166 = arith.subf %104, %165 : vector<2x32xf32>
    %167 = arith.mulf %158, %166 : vector<2x32xf32>
    %168 = arith.addf %165, %167 : vector<2x32xf32>
    %cst_43 = arith.constant dense<0.000000e+00> : vector<2x96xf32>
    %169 = tpu.matmul %168, %5, %cst_43 {dimension_numbers = #tpu.dot_dimension_numbers<[1], [0], [0], [1], [0, 0, 1, 1], [], []>} : vector<2x32xf32>, vector<32x96xf32>, vector<2x96xf32> -> vector<2x96xf32>
    %170 = vector.broadcast %6 : vector<1x96xf32> to vector<2x96xf32>
    %171 = arith.addf %169, %170 : vector<2x96xf32>
    %cst_44 = arith.constant dense<0.000000e+00> : vector<2x96xf32>
    %172 = tpu.matmul %134, %7, %cst_44 {dimension_numbers = #tpu.dot_dimension_numbers<[1], [0], [0], [1], [0, 0, 1, 1], [], []>} : vector<2x32xf32>, vector<32x96xf32>, vector<2x96xf32> -> vector<2x96xf32>
    %173 = vector.extract_strided_slice %171 {offsets = [0, 0], sizes = [2, 32], strides = [1, 1]} : vector<2x96xf32> to vector<2x32xf32>
    %174 = vector.extract_strided_slice %172 {offsets = [0, 0], sizes = [2, 32], strides = [1, 1]} : vector<2x96xf32> to vector<2x32xf32>
    %175 = arith.addf %173, %174 : vector<2x32xf32>
    %176 = arith.negf %175 : vector<2x32xf32>
    %177 = math.exp %176 : vector<2x32xf32>
    %cst_45 = arith.constant 1.000000e+00 : f32
    %178 = vector.broadcast %cst_45 : f32 to vector<2x32xf32>
    %179 = arith.addf %178, %177 : vector<2x32xf32>
    %180 = arith.divf %178, %179 : vector<2x32xf32>
    %181 = vector.extract_strided_slice %171 {offsets = [0, 32], sizes = [2, 32], strides = [1, 1]} : vector<2x96xf32> to vector<2x32xf32>
    %182 = vector.extract_strided_slice %172 {offsets = [0, 32], sizes = [2, 32], strides = [1, 1]} : vector<2x96xf32> to vector<2x32xf32>
    %183 = arith.addf %181, %182 : vector<2x32xf32>
    %184 = arith.negf %183 : vector<2x32xf32>
    %185 = math.exp %184 : vector<2x32xf32>
    %cst_46 = arith.constant 1.000000e+00 : f32
    %186 = vector.broadcast %cst_46 : f32 to vector<2x32xf32>
    %187 = arith.addf %186, %185 : vector<2x32xf32>
    %188 = arith.divf %186, %187 : vector<2x32xf32>
    %189 = vector.extract_strided_slice %171 {offsets = [0, 64], sizes = [2, 32], strides = [1, 1]} : vector<2x96xf32> to vector<2x32xf32>
    %190 = vector.extract_strided_slice %172 {offsets = [0, 64], sizes = [2, 32], strides = [1, 1]} : vector<2x96xf32> to vector<2x32xf32>
    %191 = vector.broadcast %8 : vector<1x32xf32> to vector<2x32xf32>
    %192 = arith.addf %190, %191 : vector<2x32xf32>
    %193 = arith.mulf %180, %192 : vector<2x32xf32>
    %194 = arith.addf %189, %193 : vector<2x32xf32>
    %195 = math.tanh %194 : vector<2x32xf32>
    %196 = arith.subf %134, %195 : vector<2x32xf32>
    %197 = arith.mulf %188, %196 : vector<2x32xf32>
    %198 = arith.addf %195, %197 : vector<2x32xf32>
    %199 = arith.index_cast %c2_i32 : i32 to index
    %c0_47 = arith.constant 0 : index
    %c0_48 = arith.constant 0 : index
    %200 = vector.load %arg9[%199, %c0_47, %c0_48] : memref<8x2x32xf32, #tpu.memory_space<vmem>>, vector<1x2x32xf32>
    %201 = vector.shape_cast %200 : vector<1x2x32xf32> to vector<2x32xf32>
    %202 = vector.shape_cast %198 : vector<2x32xf32> to vector<1x2x32xf32>
    tpu.vector_store %arg9[%199, %c0_47, %c0_48], %202 {strides = array<i32>} : memref<8x2x32xf32, #tpu.memory_space<vmem>>, vector<1x2x32xf32>,
    %c3_i32 = arith.constant 3 : i32
    %203 = arith.index_cast %c3_i32 : i32 to index
    %c0_49 = arith.constant 0 : index
    %c0_50 = arith.constant 0 : index
    %204 = vector.load %arg2[%203, %c0_49, %c0_50] : memref<8x2x96xf32, #tpu.memory_space<vmem>>, vector<1x2x96xf32>
    %205 = vector.shape_cast %204 : vector<1x2x96xf32> to vector<2x96xf32>
    %cst_51 = arith.constant dense<0.000000e+00> : vector<2x96xf32>
    %206 = tpu.matmul %168, %3, %cst_51 {dimension_numbers = #tpu.dot_dimension_numbers<[1], [0], [0], [1], [0, 0, 1, 1], [], []>} : vector<2x32xf32>, vector<32x96xf32>, vector<2x96xf32> -> vector<2x96xf32>
    %207 = vector.extract_strided_slice %205 {offsets = [0, 0], sizes = [2, 32], strides = [1, 1]} : vector<2x96xf32> to vector<2x32xf32>
    %208 = vector.extract_strided_slice %206 {offsets = [0, 0], sizes = [2, 32], strides = [1, 1]} : vector<2x96xf32> to vector<2x32xf32>
    %209 = arith.addf %207, %208 : vector<2x32xf32>
    %210 = arith.negf %209 : vector<2x32xf32>
    %211 = math.exp %210 : vector<2x32xf32>
    %cst_52 = arith.constant 1.000000e+00 : f32
    %212 = vector.broadcast %cst_52 : f32 to vector<2x32xf32>
    %213 = arith.addf %212, %211 : vector<2x32xf32>
    %214 = arith.divf %212, %213 : vector<2x32xf32>
    %215 = vector.extract_strided_slice %205 {offsets = [0, 32], sizes = [2, 32], strides = [1, 1]} : vector<2x96xf32> to vector<2x32xf32>
    %216 = vector.extract_strided_slice %206 {offsets = [0, 32], sizes = [2, 32], strides = [1, 1]} : vector<2x96xf32> to vector<2x32xf32>
    %217 = arith.addf %215, %216 : vector<2x32xf32>
    %218 = arith.negf %217 : vector<2x32xf32>
    %219 = math.exp %218 : vector<2x32xf32>
    %cst_53 = arith.constant 1.000000e+00 : f32
    %220 = vector.broadcast %cst_53 : f32 to vector<2x32xf32>
    %221 = arith.addf %220, %219 : vector<2x32xf32>
    %222 = arith.divf %220, %221 : vector<2x32xf32>
    %223 = vector.extract_strided_slice %205 {offsets = [0, 64], sizes = [2, 32], strides = [1, 1]} : vector<2x96xf32> to vector<2x32xf32>
    %224 = vector.extract_strided_slice %206 {offsets = [0, 64], sizes = [2, 32], strides = [1, 1]} : vector<2x96xf32> to vector<2x32xf32>
    %225 = vector.broadcast %4 : vector<1x32xf32> to vector<2x32xf32>
    %226 = arith.addf %224, %225 : vector<2x32xf32>
    %227 = arith.mulf %214, %226 : vector<2x32xf32>
    %228 = arith.addf %223, %227 : vector<2x32xf32>
    %229 = math.tanh %228 : vector<2x32xf32>
    %230 = arith.subf %168, %229 : vector<2x32xf32>
    %231 = arith.mulf %222, %230 : vector<2x32xf32>
    %232 = arith.addf %229, %231 : vector<2x32xf32>
    %cst_54 = arith.constant dense<0.000000e+00> : vector<2x96xf32>
    %233 = tpu.matmul %232, %5, %cst_54 {dimension_numbers = #tpu.dot_dimension_numbers<[1], [0], [0], [1], [0, 0, 1, 1], [], []>} : vector<2x32xf32>, vector<32x96xf32>, vector<2x96xf32> -> vector<2x96xf32>
    %234 = vector.broadcast %6 : vector<1x96xf32> to vector<2x96xf32>
    %235 = arith.addf %233, %234 : vector<2x96xf32>
    %cst_55 = arith.constant dense<0.000000e+00> : vector<2x96xf32>
    %236 = tpu.matmul %198, %7, %cst_55 {dimension_numbers = #tpu.dot_dimension_numbers<[1], [0], [0], [1], [0, 0, 1, 1], [], []>} : vector<2x32xf32>, vector<32x96xf32>, vector<2x96xf32> -> vector<2x96xf32>
    %237 = vector.extract_strided_slice %235 {offsets = [0, 0], sizes = [2, 32], strides = [1, 1]} : vector<2x96xf32> to vector<2x32xf32>
    %238 = vector.extract_strided_slice %236 {offsets = [0, 0], sizes = [2, 32], strides = [1, 1]} : vector<2x96xf32> to vector<2x32xf32>
    %239 = arith.addf %237, %238 : vector<2x32xf32>
    %240 = arith.negf %239 : vector<2x32xf32>
    %241 = math.exp %240 : vector<2x32xf32>
    %cst_56 = arith.constant 1.000000e+00 : f32
    %242 = vector.broadcast %cst_56 : f32 to vector<2x32xf32>
    %243 = arith.addf %242, %241 : vector<2x32xf32>
    %244 = arith.divf %242, %243 : vector<2x32xf32>
    %245 = vector.extract_strided_slice %235 {offsets = [0, 32], sizes = [2, 32], strides = [1, 1]} : vector<2x96xf32> to vector<2x32xf32>
    %246 = vector.extract_strided_slice %236 {offsets = [0, 32], sizes = [2, 32], strides = [1, 1]} : vector<2x96xf32> to vector<2x32xf32>
    %247 = arith.addf %245, %246 : vector<2x32xf32>
    %248 = arith.negf %247 : vector<2x32xf32>
    %249 = math.exp %248 : vector<2x32xf32>
    %cst_57 = arith.constant 1.000000e+00 : f32
    %250 = vector.broadcast %cst_57 : f32 to vector<2x32xf32>
    %251 = arith.addf %250, %249 : vector<2x32xf32>
    %252 = arith.divf %250, %251 : vector<2x32xf32>
    %253 = vector.extract_strided_slice %235 {offsets = [0, 64], sizes = [2, 32], strides = [1, 1]} : vector<2x96xf32> to vector<2x32xf32>
    %254 = vector.extract_strided_slice %236 {offsets = [0, 64], sizes = [2, 32], strides = [1, 1]} : vector<2x96xf32> to vector<2x32xf32>
    %255 = vector.broadcast %8 : vector<1x32xf32> to vector<2x32xf32>
    %256 = arith.addf %254, %255 : vector<2x32xf32>
    %257 = arith.mulf %244, %256 : vector<2x32xf32>
    %258 = arith.addf %253, %257 : vector<2x32xf32>
    %259 = math.tanh %258 : vector<2x32xf32>
    %260 = arith.subf %198, %259 : vector<2x32xf32>
    %261 = arith.mulf %252, %260 : vector<2x32xf32>
    %262 = arith.addf %259, %261 : vector<2x32xf32>
    %263 = arith.index_cast %c3_i32 : i32 to index
    %c0_58 = arith.constant 0 : index
    %c0_59 = arith.constant 0 : index
    %264 = vector.load %arg9[%263, %c0_58, %c0_59] : memref<8x2x32xf32, #tpu.memory_space<vmem>>, vector<1x2x32xf32>
    %265 = vector.shape_cast %264 : vector<1x2x32xf32> to vector<2x32xf32>
    %266 = vector.shape_cast %262 : vector<2x32xf32> to vector<1x2x32xf32>
    tpu.vector_store %arg9[%263, %c0_58, %c0_59], %266 {strides = array<i32>} : memref<8x2x32xf32, #tpu.memory_space<vmem>>, vector<1x2x32xf32>,
    %c4_i32 = arith.constant 4 : i32
    %267 = arith.index_cast %c4_i32 : i32 to index
    %c0_60 = arith.constant 0 : index
    %c0_61 = arith.constant 0 : index
    %268 = vector.load %arg2[%267, %c0_60, %c0_61] : memref<8x2x96xf32, #tpu.memory_space<vmem>>, vector<1x2x96xf32>
    %269 = vector.shape_cast %268 : vector<1x2x96xf32> to vector<2x96xf32>
    %cst_62 = arith.constant dense<0.000000e+00> : vector<2x96xf32>
    %270 = tpu.matmul %232, %3, %cst_62 {dimension_numbers = #tpu.dot_dimension_numbers<[1], [0], [0], [1], [0, 0, 1, 1], [], []>} : vector<2x32xf32>, vector<32x96xf32>, vector<2x96xf32> -> vector<2x96xf32>
    %271 = vector.extract_strided_slice %269 {offsets = [0, 0], sizes = [2, 32], strides = [1, 1]} : vector<2x96xf32> to vector<2x32xf32>
    %272 = vector.extract_strided_slice %270 {offsets = [0, 0], sizes = [2, 32], strides = [1, 1]} : vector<2x96xf32> to vector<2x32xf32>
    %273 = arith.addf %271, %272 : vector<2x32xf32>
    %274 = arith.negf %273 : vector<2x32xf32>
    %275 = math.exp %274 : vector<2x32xf32>
    %cst_63 = arith.constant 1.000000e+00 : f32
    %276 = vector.broadcast %cst_63 : f32 to vector<2x32xf32>
    %277 = arith.addf %276, %275 : vector<2x32xf32>
    %278 = arith.divf %276, %277 : vector<2x32xf32>
    %279 = vector.extract_strided_slice %269 {offsets = [0, 32], sizes = [2, 32], strides = [1, 1]} : vector<2x96xf32> to vector<2x32xf32>
    %280 = vector.extract_strided_slice %270 {offsets = [0, 32], sizes = [2, 32], strides = [1, 1]} : vector<2x96xf32> to vector<2x32xf32>
    %281 = arith.addf %279, %280 : vector<2x32xf32>
    %282 = arith.negf %281 : vector<2x32xf32>
    %283 = math.exp %282 : vector<2x32xf32>
    %cst_64 = arith.constant 1.000000e+00 : f32
    %284 = vector.broadcast %cst_64 : f32 to vector<2x32xf32>
    %285 = arith.addf %284, %283 : vector<2x32xf32>
    %286 = arith.divf %284, %285 : vector<2x32xf32>
    %287 = vector.extract_strided_slice %269 {offsets = [0, 64], sizes = [2, 32], strides = [1, 1]} : vector<2x96xf32> to vector<2x32xf32>
    %288 = vector.extract_strided_slice %270 {offsets = [0, 64], sizes = [2, 32], strides = [1, 1]} : vector<2x96xf32> to vector<2x32xf32>
    %289 = vector.broadcast %4 : vector<1x32xf32> to vector<2x32xf32>
    %290 = arith.addf %288, %289 : vector<2x32xf32>
    %291 = arith.mulf %278, %290 : vector<2x32xf32>
    %292 = arith.addf %287, %291 : vector<2x32xf32>
    %293 = math.tanh %292 : vector<2x32xf32>
    %294 = arith.subf %232, %293 : vector<2x32xf32>
    %295 = arith.mulf %286, %294 : vector<2x32xf32>
    %296 = arith.addf %293, %295 : vector<2x32xf32>
    %cst_65 = arith.constant dense<0.000000e+00> : vector<2x96xf32>
    %297 = tpu.matmul %296, %5, %cst_65 {dimension_numbers = #tpu.dot_dimension_numbers<[1], [0], [0], [1], [0, 0, 1, 1], [], []>} : vector<2x32xf32>, vector<32x96xf32>, vector<2x96xf32> -> vector<2x96xf32>
    %298 = vector.broadcast %6 : vector<1x96xf32> to vector<2x96xf32>
    %299 = arith.addf %297, %298 : vector<2x96xf32>
    %cst_66 = arith.constant dense<0.000000e+00> : vector<2x96xf32>
    %300 = tpu.matmul %262, %7, %cst_66 {dimension_numbers = #tpu.dot_dimension_numbers<[1], [0], [0], [1], [0, 0, 1, 1], [], []>} : vector<2x32xf32>, vector<32x96xf32>, vector<2x96xf32> -> vector<2x96xf32>
    %301 = vector.extract_strided_slice %299 {offsets = [0, 0], sizes = [2, 32], strides = [1, 1]} : vector<2x96xf32> to vector<2x32xf32>
    %302 = vector.extract_strided_slice %300 {offsets = [0, 0], sizes = [2, 32], strides = [1, 1]} : vector<2x96xf32> to vector<2x32xf32>
    %303 = arith.addf %301, %302 : vector<2x32xf32>
    %304 = arith.negf %303 : vector<2x32xf32>
    %305 = math.exp %304 : vector<2x32xf32>
    %cst_67 = arith.constant 1.000000e+00 : f32
    %306 = vector.broadcast %cst_67 : f32 to vector<2x32xf32>
    %307 = arith.addf %306, %305 : vector<2x32xf32>
    %308 = arith.divf %306, %307 : vector<2x32xf32>
    %309 = vector.extract_strided_slice %299 {offsets = [0, 32], sizes = [2, 32], strides = [1, 1]} : vector<2x96xf32> to vector<2x32xf32>
    %310 = vector.extract_strided_slice %300 {offsets = [0, 32], sizes = [2, 32], strides = [1, 1]} : vector<2x96xf32> to vector<2x32xf32>
    %311 = arith.addf %309, %310 : vector<2x32xf32>
    %312 = arith.negf %311 : vector<2x32xf32>
    %313 = math.exp %312 : vector<2x32xf32>
    %cst_68 = arith.constant 1.000000e+00 : f32
    %314 = vector.broadcast %cst_68 : f32 to vector<2x32xf32>
    %315 = arith.addf %314, %313 : vector<2x32xf32>
    %316 = arith.divf %314, %315 : vector<2x32xf32>
    %317 = vector.extract_strided_slice %299 {offsets = [0, 64], sizes = [2, 32], strides = [1, 1]} : vector<2x96xf32> to vector<2x32xf32>
    %318 = vector.extract_strided_slice %300 {offsets = [0, 64], sizes = [2, 32], strides = [1, 1]} : vector<2x96xf32> to vector<2x32xf32>
    %319 = vector.broadcast %8 : vector<1x32xf32> to vector<2x32xf32>
    %320 = arith.addf %318, %319 : vector<2x32xf32>
    %321 = arith.mulf %308, %320 : vector<2x32xf32>
    %322 = arith.addf %317, %321 : vector<2x32xf32>
    %323 = math.tanh %322 : vector<2x32xf32>
    %324 = arith.subf %262, %323 : vector<2x32xf32>
    %325 = arith.mulf %316, %324 : vector<2x32xf32>
    %326 = arith.addf %323, %325 : vector<2x32xf32>
    %327 = arith.index_cast %c4_i32 : i32 to index
    %c0_69 = arith.constant 0 : index
    %c0_70 = arith.constant 0 : index
    %328 = vector.load %arg9[%327, %c0_69, %c0_70] : memref<8x2x32xf32, #tpu.memory_space<vmem>>, vector<1x2x32xf32>
    %329 = vector.shape_cast %328 : vector<1x2x32xf32> to vector<2x32xf32>
    %330 = vector.shape_cast %326 : vector<2x32xf32> to vector<1x2x32xf32>
    tpu.vector_store %arg9[%327, %c0_69, %c0_70], %330 {strides = array<i32>} : memref<8x2x32xf32, #tpu.memory_space<vmem>>, vector<1x2x32xf32>,
    %c5_i32 = arith.constant 5 : i32
    %331 = arith.index_cast %c5_i32 : i32 to index
    %c0_71 = arith.constant 0 : index
    %c0_72 = arith.constant 0 : index
    %332 = vector.load %arg2[%331, %c0_71, %c0_72] : memref<8x2x96xf32, #tpu.memory_space<vmem>>, vector<1x2x96xf32>
    %333 = vector.shape_cast %332 : vector<1x2x96xf32> to vector<2x96xf32>
    %cst_73 = arith.constant dense<0.000000e+00> : vector<2x96xf32>
    %334 = tpu.matmul %296, %3, %cst_73 {dimension_numbers = #tpu.dot_dimension_numbers<[1], [0], [0], [1], [0, 0, 1, 1], [], []>} : vector<2x32xf32>, vector<32x96xf32>, vector<2x96xf32> -> vector<2x96xf32>
    %335 = vector.extract_strided_slice %333 {offsets = [0, 0], sizes = [2, 32], strides = [1, 1]} : vector<2x96xf32> to vector<2x32xf32>
    %336 = vector.extract_strided_slice %334 {offsets = [0, 0], sizes = [2, 32], strides = [1, 1]} : vector<2x96xf32> to vector<2x32xf32>
    %337 = arith.addf %335, %336 : vector<2x32xf32>
    %338 = arith.negf %337 : vector<2x32xf32>
    %339 = math.exp %338 : vector<2x32xf32>
    %cst_74 = arith.constant 1.000000e+00 : f32
    %340 = vector.broadcast %cst_74 : f32 to vector<2x32xf32>
    %341 = arith.addf %340, %339 : vector<2x32xf32>
    %342 = arith.divf %340, %341 : vector<2x32xf32>
    %343 = vector.extract_strided_slice %333 {offsets = [0, 32], sizes = [2, 32], strides = [1, 1]} : vector<2x96xf32> to vector<2x32xf32>
    %344 = vector.extract_strided_slice %334 {offsets = [0, 32], sizes = [2, 32], strides = [1, 1]} : vector<2x96xf32> to vector<2x32xf32>
    %345 = arith.addf %343, %344 : vector<2x32xf32>
    %346 = arith.negf %345 : vector<2x32xf32>
    %347 = math.exp %346 : vector<2x32xf32>
    %cst_75 = arith.constant 1.000000e+00 : f32
    %348 = vector.broadcast %cst_75 : f32 to vector<2x32xf32>
    %349 = arith.addf %348, %347 : vector<2x32xf32>
    %350 = arith.divf %348, %349 : vector<2x32xf32>
    %351 = vector.extract_strided_slice %333 {offsets = [0, 64], sizes = [2, 32], strides = [1, 1]} : vector<2x96xf32> to vector<2x32xf32>
    %352 = vector.extract_strided_slice %334 {offsets = [0, 64], sizes = [2, 32], strides = [1, 1]} : vector<2x96xf32> to vector<2x32xf32>
    %353 = vector.broadcast %4 : vector<1x32xf32> to vector<2x32xf32>
    %354 = arith.addf %352, %353 : vector<2x32xf32>
    %355 = arith.mulf %342, %354 : vector<2x32xf32>
    %356 = arith.addf %351, %355 : vector<2x32xf32>
    %357 = math.tanh %356 : vector<2x32xf32>
    %358 = arith.subf %296, %357 : vector<2x32xf32>
    %359 = arith.mulf %350, %358 : vector<2x32xf32>
    %360 = arith.addf %357, %359 : vector<2x32xf32>
    %cst_76 = arith.constant dense<0.000000e+00> : vector<2x96xf32>
    %361 = tpu.matmul %360, %5, %cst_76 {dimension_numbers = #tpu.dot_dimension_numbers<[1], [0], [0], [1], [0, 0, 1, 1], [], []>} : vector<2x32xf32>, vector<32x96xf32>, vector<2x96xf32> -> vector<2x96xf32>
    %362 = vector.broadcast %6 : vector<1x96xf32> to vector<2x96xf32>
    %363 = arith.addf %361, %362 : vector<2x96xf32>
    %cst_77 = arith.constant dense<0.000000e+00> : vector<2x96xf32>
    %364 = tpu.matmul %326, %7, %cst_77 {dimension_numbers = #tpu.dot_dimension_numbers<[1], [0], [0], [1], [0, 0, 1, 1], [], []>} : vector<2x32xf32>, vector<32x96xf32>, vector<2x96xf32> -> vector<2x96xf32>
    %365 = vector.extract_strided_slice %363 {offsets = [0, 0], sizes = [2, 32], strides = [1, 1]} : vector<2x96xf32> to vector<2x32xf32>
    %366 = vector.extract_strided_slice %364 {offsets = [0, 0], sizes = [2, 32], strides = [1, 1]} : vector<2x96xf32> to vector<2x32xf32>
    %367 = arith.addf %365, %366 : vector<2x32xf32>
    %368 = arith.negf %367 : vector<2x32xf32>
    %369 = math.exp %368 : vector<2x32xf32>
    %cst_78 = arith.constant 1.000000e+00 : f32
    %370 = vector.broadcast %cst_78 : f32 to vector<2x32xf32>
    %371 = arith.addf %370, %369 : vector<2x32xf32>
    %372 = arith.divf %370, %371 : vector<2x32xf32>
    %373 = vector.extract_strided_slice %363 {offsets = [0, 32], sizes = [2, 32], strides = [1, 1]} : vector<2x96xf32> to vector<2x32xf32>
    %374 = vector.extract_strided_slice %364 {offsets = [0, 32], sizes = [2, 32], strides = [1, 1]} : vector<2x96xf32> to vector<2x32xf32>
    %375 = arith.addf %373, %374 : vector<2x32xf32>
    %376 = arith.negf %375 : vector<2x32xf32>
    %377 = math.exp %376 : vector<2x32xf32>
    %cst_79 = arith.constant 1.000000e+00 : f32
    %378 = vector.broadcast %cst_79 : f32 to vector<2x32xf32>
    %379 = arith.addf %378, %377 : vector<2x32xf32>
    %380 = arith.divf %378, %379 : vector<2x32xf32>
    %381 = vector.extract_strided_slice %363 {offsets = [0, 64], sizes = [2, 32], strides = [1, 1]} : vector<2x96xf32> to vector<2x32xf32>
    %382 = vector.extract_strided_slice %364 {offsets = [0, 64], sizes = [2, 32], strides = [1, 1]} : vector<2x96xf32> to vector<2x32xf32>
    %383 = vector.broadcast %8 : vector<1x32xf32> to vector<2x32xf32>
    %384 = arith.addf %382, %383 : vector<2x32xf32>
    %385 = arith.mulf %372, %384 : vector<2x32xf32>
    %386 = arith.addf %381, %385 : vector<2x32xf32>
    %387 = math.tanh %386 : vector<2x32xf32>
    %388 = arith.subf %326, %387 : vector<2x32xf32>
    %389 = arith.mulf %380, %388 : vector<2x32xf32>
    %390 = arith.addf %387, %389 : vector<2x32xf32>
    %391 = arith.index_cast %c5_i32 : i32 to index
    %c0_80 = arith.constant 0 : index
    %c0_81 = arith.constant 0 : index
    %392 = vector.load %arg9[%391, %c0_80, %c0_81] : memref<8x2x32xf32, #tpu.memory_space<vmem>>, vector<1x2x32xf32>
    %393 = vector.shape_cast %392 : vector<1x2x32xf32> to vector<2x32xf32>
    %394 = vector.shape_cast %390 : vector<2x32xf32> to vector<1x2x32xf32>
    tpu.vector_store %arg9[%391, %c0_80, %c0_81], %394 {strides = array<i32>} : memref<8x2x32xf32, #tpu.memory_space<vmem>>, vector<1x2x32xf32>,
    %c6_i32 = arith.constant 6 : i32
    %395 = arith.index_cast %c6_i32 : i32 to index
    %c0_82 = arith.constant 0 : index
    %c0_83 = arith.constant 0 : index
    %396 = vector.load %arg2[%395, %c0_82, %c0_83] : memref<8x2x96xf32, #tpu.memory_space<vmem>>, vector<1x2x96xf32>
    %397 = vector.shape_cast %396 : vector<1x2x96xf32> to vector<2x96xf32>
    %cst_84 = arith.constant dense<0.000000e+00> : vector<2x96xf32>
    %398 = tpu.matmul %360, %3, %cst_84 {dimension_numbers = #tpu.dot_dimension_numbers<[1], [0], [0], [1], [0, 0, 1, 1], [], []>} : vector<2x32xf32>, vector<32x96xf32>, vector<2x96xf32> -> vector<2x96xf32>
    %399 = vector.extract_strided_slice %397 {offsets = [0, 0], sizes = [2, 32], strides = [1, 1]} : vector<2x96xf32> to vector<2x32xf32>
    %400 = vector.extract_strided_slice %398 {offsets = [0, 0], sizes = [2, 32], strides = [1, 1]} : vector<2x96xf32> to vector<2x32xf32>
    %401 = arith.addf %399, %400 : vector<2x32xf32>
    %402 = arith.negf %401 : vector<2x32xf32>
    %403 = math.exp %402 : vector<2x32xf32>
    %cst_85 = arith.constant 1.000000e+00 : f32
    %404 = vector.broadcast %cst_85 : f32 to vector<2x32xf32>
    %405 = arith.addf %404, %403 : vector<2x32xf32>
    %406 = arith.divf %404, %405 : vector<2x32xf32>
    %407 = vector.extract_strided_slice %397 {offsets = [0, 32], sizes = [2, 32], strides = [1, 1]} : vector<2x96xf32> to vector<2x32xf32>
    %408 = vector.extract_strided_slice %398 {offsets = [0, 32], sizes = [2, 32], strides = [1, 1]} : vector<2x96xf32> to vector<2x32xf32>
    %409 = arith.addf %407, %408 : vector<2x32xf32>
    %410 = arith.negf %409 : vector<2x32xf32>
    %411 = math.exp %410 : vector<2x32xf32>
    %cst_86 = arith.constant 1.000000e+00 : f32
    %412 = vector.broadcast %cst_86 : f32 to vector<2x32xf32>
    %413 = arith.addf %412, %411 : vector<2x32xf32>
    %414 = arith.divf %412, %413 : vector<2x32xf32>
    %415 = vector.extract_strided_slice %397 {offsets = [0, 64], sizes = [2, 32], strides = [1, 1]} : vector<2x96xf32> to vector<2x32xf32>
    %416 = vector.extract_strided_slice %398 {offsets = [0, 64], sizes = [2, 32], strides = [1, 1]} : vector<2x96xf32> to vector<2x32xf32>
    %417 = vector.broadcast %4 : vector<1x32xf32> to vector<2x32xf32>
    %418 = arith.addf %416, %417 : vector<2x32xf32>
    %419 = arith.mulf %406, %418 : vector<2x32xf32>
    %420 = arith.addf %415, %419 : vector<2x32xf32>
    %421 = math.tanh %420 : vector<2x32xf32>
    %422 = arith.subf %360, %421 : vector<2x32xf32>
    %423 = arith.mulf %414, %422 : vector<2x32xf32>
    %424 = arith.addf %421, %423 : vector<2x32xf32>
    %cst_87 = arith.constant dense<0.000000e+00> : vector<2x96xf32>
    %425 = tpu.matmul %424, %5, %cst_87 {dimension_numbers = #tpu.dot_dimension_numbers<[1], [0], [0], [1], [0, 0, 1, 1], [], []>} : vector<2x32xf32>, vector<32x96xf32>, vector<2x96xf32> -> vector<2x96xf32>
    %426 = vector.broadcast %6 : vector<1x96xf32> to vector<2x96xf32>
    %427 = arith.addf %425, %426 : vector<2x96xf32>
    %cst_88 = arith.constant dense<0.000000e+00> : vector<2x96xf32>
    %428 = tpu.matmul %390, %7, %cst_88 {dimension_numbers = #tpu.dot_dimension_numbers<[1], [0], [0], [1], [0, 0, 1, 1], [], []>} : vector<2x32xf32>, vector<32x96xf32>, vector<2x96xf32> -> vector<2x96xf32>
    %429 = vector.extract_strided_slice %427 {offsets = [0, 0], sizes = [2, 32], strides = [1, 1]} : vector<2x96xf32> to vector<2x32xf32>
    %430 = vector.extract_strided_slice %428 {offsets = [0, 0], sizes = [2, 32], strides = [1, 1]} : vector<2x96xf32> to vector<2x32xf32>
    %431 = arith.addf %429, %430 : vector<2x32xf32>
    %432 = arith.negf %431 : vector<2x32xf32>
    %433 = math.exp %432 : vector<2x32xf32>
    %cst_89 = arith.constant 1.000000e+00 : f32
    %434 = vector.broadcast %cst_89 : f32 to vector<2x32xf32>
    %435 = arith.addf %434, %433 : vector<2x32xf32>
    %436 = arith.divf %434, %435 : vector<2x32xf32>
    %437 = vector.extract_strided_slice %427 {offsets = [0, 32], sizes = [2, 32], strides = [1, 1]} : vector<2x96xf32> to vector<2x32xf32>
    %438 = vector.extract_strided_slice %428 {offsets = [0, 32], sizes = [2, 32], strides = [1, 1]} : vector<2x96xf32> to vector<2x32xf32>
    %439 = arith.addf %437, %438 : vector<2x32xf32>
    %440 = arith.negf %439 : vector<2x32xf32>
    %441 = math.exp %440 : vector<2x32xf32>
    %cst_90 = arith.constant 1.000000e+00 : f32
    %442 = vector.broadcast %cst_90 : f32 to vector<2x32xf32>
    %443 = arith.addf %442, %441 : vector<2x32xf32>
    %444 = arith.divf %442, %443 : vector<2x32xf32>
    %445 = vector.extract_strided_slice %427 {offsets = [0, 64], sizes = [2, 32], strides = [1, 1]} : vector<2x96xf32> to vector<2x32xf32>
    %446 = vector.extract_strided_slice %428 {offsets = [0, 64], sizes = [2, 32], strides = [1, 1]} : vector<2x96xf32> to vector<2x32xf32>
    %447 = vector.broadcast %8 : vector<1x32xf32> to vector<2x32xf32>
    %448 = arith.addf %446, %447 : vector<2x32xf32>
    %449 = arith.mulf %436, %448 : vector<2x32xf32>
    %450 = arith.addf %445, %449 : vector<2x32xf32>
    %451 = math.tanh %450 : vector<2x32xf32>
    %452 = arith.subf %390, %451 : vector<2x32xf32>
    %453 = arith.mulf %444, %452 : vector<2x32xf32>
    %454 = arith.addf %451, %453 : vector<2x32xf32>
    %455 = arith.index_cast %c6_i32 : i32 to index
    %c0_91 = arith.constant 0 : index
    %c0_92 = arith.constant 0 : index
    %456 = vector.load %arg9[%455, %c0_91, %c0_92] : memref<8x2x32xf32, #tpu.memory_space<vmem>>, vector<1x2x32xf32>
    %457 = vector.shape_cast %456 : vector<1x2x32xf32> to vector<2x32xf32>
    %458 = vector.shape_cast %454 : vector<2x32xf32> to vector<1x2x32xf32>
    tpu.vector_store %arg9[%455, %c0_91, %c0_92], %458 {strides = array<i32>} : memref<8x2x32xf32, #tpu.memory_space<vmem>>, vector<1x2x32xf32>,
    %c7_i32 = arith.constant 7 : i32
    %459 = arith.index_cast %c7_i32 : i32 to index
    %c0_93 = arith.constant 0 : index
    %c0_94 = arith.constant 0 : index
    %460 = vector.load %arg2[%459, %c0_93, %c0_94] : memref<8x2x96xf32, #tpu.memory_space<vmem>>, vector<1x2x96xf32>
    %461 = vector.shape_cast %460 : vector<1x2x96xf32> to vector<2x96xf32>
    %cst_95 = arith.constant dense<0.000000e+00> : vector<2x96xf32>
    %462 = tpu.matmul %424, %3, %cst_95 {dimension_numbers = #tpu.dot_dimension_numbers<[1], [0], [0], [1], [0, 0, 1, 1], [], []>} : vector<2x32xf32>, vector<32x96xf32>, vector<2x96xf32> -> vector<2x96xf32>
    %463 = vector.extract_strided_slice %461 {offsets = [0, 0], sizes = [2, 32], strides = [1, 1]} : vector<2x96xf32> to vector<2x32xf32>
    %464 = vector.extract_strided_slice %462 {offsets = [0, 0], sizes = [2, 32], strides = [1, 1]} : vector<2x96xf32> to vector<2x32xf32>
    %465 = arith.addf %463, %464 : vector<2x32xf32>
    %466 = arith.negf %465 : vector<2x32xf32>
    %467 = math.exp %466 : vector<2x32xf32>
    %cst_96 = arith.constant 1.000000e+00 : f32
    %468 = vector.broadcast %cst_96 : f32 to vector<2x32xf32>
    %469 = arith.addf %468, %467 : vector<2x32xf32>
    %470 = arith.divf %468, %469 : vector<2x32xf32>
    %471 = vector.extract_strided_slice %461 {offsets = [0, 32], sizes = [2, 32], strides = [1, 1]} : vector<2x96xf32> to vector<2x32xf32>
    %472 = vector.extract_strided_slice %462 {offsets = [0, 32], sizes = [2, 32], strides = [1, 1]} : vector<2x96xf32> to vector<2x32xf32>
    %473 = arith.addf %471, %472 : vector<2x32xf32>
    %474 = arith.negf %473 : vector<2x32xf32>
    %475 = math.exp %474 : vector<2x32xf32>
    %cst_97 = arith.constant 1.000000e+00 : f32
    %476 = vector.broadcast %cst_97 : f32 to vector<2x32xf32>
    %477 = arith.addf %476, %475 : vector<2x32xf32>
    %478 = arith.divf %476, %477 : vector<2x32xf32>
    %479 = vector.extract_strided_slice %461 {offsets = [0, 64], sizes = [2, 32], strides = [1, 1]} : vector<2x96xf32> to vector<2x32xf32>
    %480 = vector.extract_strided_slice %462 {offsets = [0, 64], sizes = [2, 32], strides = [1, 1]} : vector<2x96xf32> to vector<2x32xf32>
    %481 = vector.broadcast %4 : vector<1x32xf32> to vector<2x32xf32>
    %482 = arith.addf %480, %481 : vector<2x32xf32>
    %483 = arith.mulf %470, %482 : vector<2x32xf32>
    %484 = arith.addf %479, %483 : vector<2x32xf32>
    %485 = math.tanh %484 : vector<2x32xf32>
    %486 = arith.subf %424, %485 : vector<2x32xf32>
    %487 = arith.mulf %478, %486 : vector<2x32xf32>
    %488 = arith.addf %485, %487 : vector<2x32xf32>
    %cst_98 = arith.constant dense<0.000000e+00> : vector<2x96xf32>
    %489 = tpu.matmul %488, %5, %cst_98 {dimension_numbers = #tpu.dot_dimension_numbers<[1], [0], [0], [1], [0, 0, 1, 1], [], []>} : vector<2x32xf32>, vector<32x96xf32>, vector<2x96xf32> -> vector<2x96xf32>
    %490 = vector.broadcast %6 : vector<1x96xf32> to vector<2x96xf32>
    %491 = arith.addf %489, %490 : vector<2x96xf32>
    %cst_99 = arith.constant dense<0.000000e+00> : vector<2x96xf32>
    %492 = tpu.matmul %454, %7, %cst_99 {dimension_numbers = #tpu.dot_dimension_numbers<[1], [0], [0], [1], [0, 0, 1, 1], [], []>} : vector<2x32xf32>, vector<32x96xf32>, vector<2x96xf32> -> vector<2x96xf32>
    %493 = vector.extract_strided_slice %491 {offsets = [0, 0], sizes = [2, 32], strides = [1, 1]} : vector<2x96xf32> to vector<2x32xf32>
    %494 = vector.extract_strided_slice %492 {offsets = [0, 0], sizes = [2, 32], strides = [1, 1]} : vector<2x96xf32> to vector<2x32xf32>
    %495 = arith.addf %493, %494 : vector<2x32xf32>
    %496 = arith.negf %495 : vector<2x32xf32>
    %497 = math.exp %496 : vector<2x32xf32>
    %cst_100 = arith.constant 1.000000e+00 : f32
    %498 = vector.broadcast %cst_100 : f32 to vector<2x32xf32>
    %499 = arith.addf %498, %497 : vector<2x32xf32>
    %500 = arith.divf %498, %499 : vector<2x32xf32>
    %501 = vector.extract_strided_slice %491 {offsets = [0, 32], sizes = [2, 32], strides = [1, 1]} : vector<2x96xf32> to vector<2x32xf32>
    %502 = vector.extract_strided_slice %492 {offsets = [0, 32], sizes = [2, 32], strides = [1, 1]} : vector<2x96xf32> to vector<2x32xf32>
    %503 = arith.addf %501, %502 : vector<2x32xf32>
    %504 = arith.negf %503 : vector<2x32xf32>
    %505 = math.exp %504 : vector<2x32xf32>
    %cst_101 = arith.constant 1.000000e+00 : f32
    %506 = vector.broadcast %cst_101 : f32 to vector<2x32xf32>
    %507 = arith.addf %506, %505 : vector<2x32xf32>
    %508 = arith.divf %506, %507 : vector<2x32xf32>
    %509 = vector.extract_strided_slice %491 {offsets = [0, 64], sizes = [2, 32], strides = [1, 1]} : vector<2x96xf32> to vector<2x32xf32>
    %510 = vector.extract_strided_slice %492 {offsets = [0, 64], sizes = [2, 32], strides = [1, 1]} : vector<2x96xf32> to vector<2x32xf32>
    %511 = vector.broadcast %8 : vector<1x32xf32> to vector<2x32xf32>
    %512 = arith.addf %510, %511 : vector<2x32xf32>
    %513 = arith.mulf %500, %512 : vector<2x32xf32>
    %514 = arith.addf %509, %513 : vector<2x32xf32>
    %515 = math.tanh %514 : vector<2x32xf32>
    %516 = arith.subf %454, %515 : vector<2x32xf32>
    %517 = arith.mulf %508, %516 : vector<2x32xf32>
    %518 = arith.addf %515, %517 : vector<2x32xf32>
    %519 = arith.index_cast %c7_i32 : i32 to index
    %c0_102 = arith.constant 0 : index
    %c0_103 = arith.constant 0 : index
    %520 = vector.load %arg9[%519, %c0_102, %c0_103] : memref<8x2x32xf32, #tpu.memory_space<vmem>>, vector<1x2x32xf32>
    %521 = vector.shape_cast %520 : vector<1x2x32xf32> to vector<2x32xf32>
    %522 = vector.shape_cast %518 : vector<2x32xf32> to vector<1x2x32xf32>
    tpu.vector_store %arg9[%519, %c0_102, %c0_103], %522 {strides = array<i32>} : memref<8x2x32xf32, #tpu.memory_space<vmem>>, vector<1x2x32xf32>,
    %c8_i32 = arith.constant 8 : i32
    %c0_104 = arith.constant 0 : index
    %c0_105 = arith.constant 0 : index
    %523 = vector.load %arg10[%c0_104, %c0_105] : memref<2x32xf32, #tpu.memory_space<vmem>>, vector<2x32xf32>
    tpu.vector_store %arg10[%c0_104, %c0_105], %488 {strides = array<i32>} : memref<2x32xf32, #tpu.memory_space<vmem>>, vector<2x32xf32>,
    %c0_106 = arith.constant 0 : index
    %c0_107 = arith.constant 0 : index
    %524 = vector.load %arg11[%c0_106, %c0_107] : memref<2x32xf32, #tpu.memory_space<vmem>>, vector<2x32xf32>
    tpu.vector_store %arg11[%c0_106, %c0_107], %518 {strides = array<i32>} : memref<2x32xf32, #tpu.memory_space<vmem>>, vector<2x32xf32>,
    return
  }
  func.func @transform_0(%arg0: i32, %arg1: i32) -> (i32, i32, i32) {
    %c0_i32 = arith.constant 0 : i32
    %c0_i32_0 = arith.constant 0 : i32
    return %arg1, %arg0, %c0_i32 : i32, i32, i32
  }
  func.func @transform_1(%arg0: i32, %arg1: i32) -> (i32, i32) {
    %c0_i32 = arith.constant 0 : i32
    %c0_i32_0 = arith.constant 0 : i32
    %c0_i32_1 = arith.constant 0 : i32
    return %c0_i32, %c0_i32_0 : i32, i32
  }
  func.func @transform_2(%arg0: i32, %arg1: i32) -> (i32, i32) {
    %c0_i32 = arith.constant 0 : i32
    %c0_i32_0 = arith.constant 0 : i32
    %c0_i32_1 = arith.constant 0 : i32
    return %c0_i32, %c0_i32_0 : i32, i32
  }
  func.func @transform_3(%arg0: i32, %arg1: i32) -> (i32, i32) {
    %c0_i32 = arith.constant 0 : i32
    %c0_i32_0 = arith.constant 0 : i32
    %c0_i32_1 = arith.constant 0 : i32
    return %c0_i32, %c0_i32_0 : i32, i32
  }
  func.func @transform_4(%arg0: i32, %arg1: i32) -> (i32, i32) {
    %c0_i32 = arith.constant 0 : i32
    %c0_i32_0 = arith.constant 0 : i32
    %c0_i32_1 = arith.constant 0 : i32
    return %c0_i32, %c0_i32_0 : i32, i32
  }
  func.func @transform_5(%arg0: i32, %arg1: i32) -> (i32, i32) {
    %c0_i32 = arith.constant 0 : i32
    %c0_i32_0 = arith.constant 0 : i32
    %c0_i32_1 = arith.constant 0 : i32
    return %c0_i32, %c0_i32_0 : i32, i32
  }
  func.func @transform_6(%arg0: i32, %arg1: i32) -> (i32, i32) {
    %c0_i32 = arith.constant 0 : i32
    %c0_i32_0 = arith.constant 0 : i32
    %c0_i32_1 = arith.constant 0 : i32
    return %c0_i32, %c0_i32_0 : i32, i32
  }
  func.func @transform_7(%arg0: i32, %arg1: i32) -> (i32, i32, i32) {
    %c0_i32 = arith.constant 0 : i32
    %c0_i32_0 = arith.constant 0 : i32
    return %arg1, %arg0, %c0_i32 : i32, i32, i32
  }
}

</mosaic_0001>

<llo_original>
// kernel: rnn_reg_forward.1
$region0: #{rnn_reg_forward.1}
  #allocation0 [shape = 'u32[]', space=smem, size = 0x4, offset = 0x4, fixed_abs, tag = 'smem constant byte address 0x4 - core index']
  #allocation1 [shape = 'u32[144,128]{1,0:T(1,128)}', space=vmem, size = 0x12000, scoped, tag = 'internal scratch']
  #allocation2 [shape = 'f32[2,32]{1,0:T(2,128)}', space=vmem, size = 0x400, scoped, tag = 'scratch operand']
  #allocation3 [shape = 'f32[2,32]{1,0:T(2,128)}', space=vmem, size = 0x400, scoped, tag = 'scratch operand']
  %s0 = inlined_call_operand.vmem [shape: f32[8,2,96], index: 0, kind: input, shape index: {}]
  %s1 = inlined_call_operand.vmem [shape: f32[32,96], index: 1, kind: input, shape index: {}]
  %s2 = inlined_call_operand.vmem [shape: f32[1,32], index: 2, kind: input, shape index: {}]
  %s3 = inlined_call_operand.vmem [shape: f32[32,96], index: 3, kind: input, shape index: {}]
  %s4 = inlined_call_operand.vmem [shape: f32[1,96], index: 4, kind: input, shape index: {}]
  %s5 = inlined_call_operand.hbm [shape: f32[32,96], index: 5, kind: input, shape index: {}]
  %s6 = inlined_call_operand.hbm [shape: f32[1,32], index: 6, kind: input, shape index: {}]
  %s7 = inlined_call_operand.vmem [shape: f32[8,2,32], index: 7, kind: output, shape index: {}]
  %s8 = sld [smem:[#allocation0]]
  $region50: #{rnn_reg_forward.1} parent=0
    _
  %s10 = ssub.s32 1, %s8
  %s11 = scalar_select 0, %s10, %s8
  $region1: #{rnn_reg_forward.1} parent=0
    #allocation4 [shape = 'u8[16384]{0}', space=vmem, size = 0x4000, scoped, tag = 'input window, operand 5, single buffered']
    #allocation5 [shape = 's32[1]{0}', space=sflag, size = 0x4, scoped, tag = 'scoped memory for rnn_reg_forward.1']
    #allocation6 [shape = 'u8[512]{0}', space=vmem, size = 0x400, scoped, tag = 'input window, operand 6, single buffered']
    #allocation7 [shape = 's32[1]{0}', space=sflag, size = 0x4, scoped, tag = 'scoped memory for rnn_reg_forward.1']
    %12 = vsyncpa [#allocation5], 0
    %13 = vsyncpa [#allocation7], 0
    // Predicated region
    $region2: #{rnn_reg_forward.1} parent=1 // pred_check
      _
    $region3: #{rnn_reg_forward.1} parent=1 // pred_check_branch
      %15 = sbr.rel (0) target = $region5
    $region4: #{rnn_reg_forward.1} parent=1 // pred_region
      _
    $region5: #{rnn_reg_forward.1} parent=1 // pred_fallthru
      _
    // Predicated region
    $region6: #{rnn_reg_forward.1} parent=1 // pred_check
      _
    $region7: #{rnn_reg_forward.1} parent=1 // pred_check_branch
      %17 = sbr.rel (0) target = $region9
    $region8: #{rnn_reg_forward.1} parent=1 // pred_region
      _
    $region9: #{rnn_reg_forward.1} parent=1 // pred_fallthru
      _
    // Predicated region
    $region10: #{rnn_reg_forward.1} parent=1 // pred_check
      _
    $region11: #{rnn_reg_forward.1} parent=1 // pred_check_branch
      %19 = sbr.rel (0) target = $region13
    $region12: #{rnn_reg_forward.1} parent=1 // pred_region
      _
    $region13: #{rnn_reg_forward.1} parent=1 // pred_fallthru
      _
    // Predicated region
    $region14: #{rnn_reg_forward.1} parent=1 // pred_check
      _
    $region15: #{rnn_reg_forward.1} parent=1 // pred_check_branch
      %21 = sbr.rel (0) target = $region17
    $region16: #{rnn_reg_forward.1} parent=1 // pred_region
      _
    $region17: #{rnn_reg_forward.1} parent=1 // pred_fallthru
      _
    // Predicated region
    $region18: #{rnn_reg_forward.1} parent=1 // pred_check
      _
    $region19: #{rnn_reg_forward.1} parent=1 // pred_check_branch
      %23 = sbr.rel (0) target = $region21
    $region20: #{rnn_reg_forward.1} parent=1 // pred_region
      _
    $region21: #{rnn_reg_forward.1} parent=1 // pred_fallthru
      _
    // Predicated region
    $region22: #{rnn_reg_forward.1} parent=1 // pred_check
      _
    $region23: #{rnn_reg_forward.1} parent=1 // pred_check_branch
      %25 = sbr.rel (0) target = $region25
    $region24: #{rnn_reg_forward.1} parent=1 // pred_region
      %s27 = ssub.s32 512, 512
      %28 = vsyncadd [#allocation5], %s27
      %s29 = sshll.u32 [#allocation4], 4
      %s30 = int_to_ptr.vmem [resolvable:$true] %s29
      %35 = dma.hbm_to_vmem [thread:$0]  %s5, 512, %s30, [#allocation5], 128, 128, 8
    $region25: #{rnn_reg_forward.1} parent=1 // pred_fallthru
      _
    // Predicated region
    $region26: #{rnn_reg_forward.1} parent=1 // pred_check
      _
    $region27: #{rnn_reg_forward.1} parent=1 // pred_check_branch
      %37 = sbr.rel (0) target = $region29
    $region28: #{rnn_reg_forward.1} parent=1 // pred_region
      %s39 = ssub.s32 16, 16
      %40 = vsyncadd [#allocation7], %s39
      %s42 = sshll.u32 [#allocation6], 4
      %s43 = int_to_ptr.vmem [resolvable:$true] %s42
      %45 = dma.hbm_to_vmem [thread:$0]  %s6, 16, %s43, [#allocation7]
    $region29: #{rnn_reg_forward.1} parent=1 // pred_fallthru
      _
    // Predicated region
    $region30: #{rnn_reg_forward.1} parent=1 // pred_check
      _
    $region31: #{rnn_reg_forward.1} parent=1 // pred_check_branch
      %47 = sbr.rel (0) target = $region33
    $region32: #{rnn_reg_forward.1} parent=1 // pred_region
      %48 = dma.done [#allocation5], 512
    $region33: #{rnn_reg_forward.1} parent=1 // pred_fallthru
      _
    // Predicated region
    $region34: #{rnn_reg_forward.1} parent=1 // pred_check
      _
    $region35: #{rnn_reg_forward.1} parent=1 // pred_check_branch
      %50 = sbr.rel (0) target = $region37
    $region36: #{rnn_reg_forward.1} parent=1 // pred_region
      %51 = dma.done [#allocation7], 16
    $region37: #{rnn_reg_forward.1} parent=1 // pred_fallthru
      _
    %p52 = scmp.eq.s32.totalorder 0, 0
    // Predicated region
    $region38: #{rnn_reg_forward.1} parent=1 // pred_check
      %p53 = pneg %p52
    $region39: #{rnn_reg_forward.1} parent=1 // pred_check_branch
      %55 = sbr.rel (%p53) target = $region41
    $region40: #{rnn_reg_forward.1} parent=1 // pred_region
      %vm56 = vcmask 254976
      %57 = vst.msk [vmem:[#allocation2] sm:$0x3] %vm56, 0.0
      %58 = vst.msk [vmem:[#allocation3] sm:$0x3] %vm56, 0.0
    $region41: #{rnn_reg_forward.1} parent=1 // pred_fallthru
      _
    %v59 = vld [vmem:[%s1] sm:$0xff]
    %v60 = vld [vmem:[%s1 + $0x8] sm:$0xff]
    %v61 = vld [vmem:[%s1 + $0x10] sm:$0xff]
    %v62 = vld [vmem:[%s1 + $0x18] sm:$0xff]
    %v63 = vld [vmem:[%s2] sm:$0x1]
    %v64 = vld [vmem:[%s3] sm:$0xff]
    %v65 = vld [vmem:[%s3 + $0x8] sm:$0xff]
    %v66 = vld [vmem:[%s3 + $0x10] sm:$0xff]
    %v67 = vld [vmem:[%s3 + $0x18] sm:$0xff]
    %v68 = vld [vmem:[%s4] sm:$0x1]
    %v69 = vld [vmem:[#allocation4] sm:$0xff]
    %v70 = vld [vmem:[#allocation4 + $0x8] sm:$0xff]
    %v71 = vld [vmem:[#allocation4 + $0x10] sm:$0xff]
    %v72 = vld [vmem:[#allocation4 + $0x18] sm:$0xff]
    %v73 = vld [vmem:[#allocation6] sm:$0x1]
    %v74 = vld [vmem:[#allocation2] sm:$0x3]
    %v75 = vld [vmem:[#allocation3] sm:$0x3]
    %v76 = vld [vmem:[%s0] sm:$0x3]
    %vm77 = vcmask 261120
    %v79 = vsel %vm77, %v74, 0
    %81 = vmatprep.subr.mxu0 0.0
    %82 = vmatpush1.msra.mxu0 0.0
    %83 = vmatprep.subr.mxu0 0.0
    %84 = vmatpush1.msra.mxu0 0.0
    %85 = vmatprep.subr.mxu0 0.0
    %86 = vmatpush1.msra.mxu0 0.0
    %87 = vmatprep.subr.mxu0 0.0
    %88 = vmatpush1.msra.mxu0 0.0
    %89 = vmatprep.subr.mxu0 0.0
    %90 = vmatpush1.msra.mxu0 0.0
    %91 = vmatprep.subr.mxu0 0.0
    %92 = vmatpush1.msra.mxu0 0.0
    %93 = vmatprep.subr.mxu0 0.0
    %94 = vmatpush1.msra.mxu0 0.0
    %95 = vmatprep.subr.mxu0 0.0
    %96 = vmatpush1.msra.mxu0 0.0
    %97 = vmatprep.subr.mxu0 0.0
    %98 = vmatpush1.msra.mxu0 0.0
    %99 = vmatprep.subr.mxu0 0.0
    %100 = vmatpush1.msra.mxu0 0.0
    %101 = vmatprep.subr.mxu0 0.0
    %102 = vmatpush1.msra.mxu0 0.0
    %103 = vmatprep.subr.mxu0 0.0
    %104 = vmatpush1.msra.mxu0 0.0
    %105 = vmatprep.subr.mxu0 0.0
    %106 = vmatpush1.msra.mxu0 %v62
    %107 = vmatprep.subr.mxu0 0.0
    %108 = vmatpush1.msra.mxu0 %v61
    %109 = vmatprep.subr.mxu0 0.0
    %110 = vmatpush1.msra.mxu0 %v60
    %111 = vmatprep.subr.mxu0 0.0
    %112 = vmatpush1.msra.mxu0 %v59
    %113 = vmatprep.subr.mxu0 0.0
    %114 = vmatpush2.msra.mxu0 0.0
    %115 = vmatprep.subr.mxu0 0.0
    %116 = vmatpush2.msra.mxu0 0.0
    %117 = vmatprep.subr.mxu0 0.0
    %118 = vmatpush2.msra.mxu0 0.0
    %119 = vmatprep.subr.mxu0 0.0
    %120 = vmatpush2.msra.mxu0 0.0
    %121 = vmatprep.subr.mxu0 0.0
    %122 = vmatpush2.msra.mxu0 0.0
    %123 = vmatprep.subr.mxu0 0.0
    %124 = vmatpush2.msra.mxu0 0.0
    %125 = vmatprep.subr.mxu0 0.0
    %126 = vmatpush2.msra.mxu0 0.0
    %127 = vmatprep.subr.mxu0 0.0
    %128 = vmatpush2.msra.mxu0 0.0
    %129 = vmatprep.subr.mxu0 0.0
    %130 = vmatpush2.msra.mxu0 0.0
    %131 = vmatprep.subr.mxu0 0.0
    %132 = vmatpush2.msra.mxu0 0.0
    %133 = vmatprep.subr.mxu0 0.0
    %134 = vmatpush2.msra.mxu0 0.0
    %135 = vmatprep.subr.mxu0 0.0
    %136 = vmatpush2.msra.mxu0 0.0
    %137 = vmatprep.subr.mxu0 0.0
    %138 = vmatpush2.msra.mxu0 0.0
    %139 = vmatprep.subr.mxu0 0.0
    %140 = vmatpush2.msra.mxu0 0.0
    %141 = vmatprep.subr.mxu0 0.0
    %142 = vmatpush2.msra.mxu0 0.0
    %143 = vmatprep.subr.mxu0 0.0
    %144 = vmatpush2.msra.mxu0 0.0
    %145 = vmatprep.mubr.f32.mxu0 0.0
    %146 = vmatmul.mubr.f32.gmra.mxu0 %v79
    %v147 = vpop.f32.mrf.mxu0
    %v148 = vadd.f32 0.0, %v147
    %v149 = vpop.f32.mrf.mxu0
    %150 = vdwg.mxu0
    %v151 = vadd.f32 %v76, %v148
    %v152 = vxor.u32 %v151, 2147483648
    %v153 = vmul.f32 %v152, 1.442695
    %v154 = vpow.pop %v153
    %v155 = vadd.f32 %v154, 1.0
    %v156 = vrcp.pop %v155
    %v157 = vmul.f32 1.0, %v156
    %v159 = vlaneseq
    %v160 = vshrl.u32 %v159, 7
    %v161 = vsub.s32 0, %v160
    %v162 = vrot.slane %v63, %v161
    %163 = vrot.lane.b32.xlu0 %v162, 64
    %v164 = vpop.permute.xlu0 %163
    %v166 = vadd.f32 %v148, %v164
    %168 = vrot.lane.b32.xlu0 %v166, 64
    %v169 = vpop.permute.xlu0 %168
    %v171 = vmul.f32 %v157, %v169
    %173 = vrot.lane.b32.xlu0 %v171, 64
    %v174 = vpop.permute.xlu0 %173
    %v176 = vadd.f32 %v76, %v174
    %v177 = vtanh.pop %v176
    %179 = vrot.lane.b32.xlu0 %v177, 64
    %v180 = vpop.permute.xlu0 %179
    %v182 = vsub.f32 %v74, %v180
    %184 = vrot.lane.b32.xlu0 %v182, 32
    %v185 = vpop.permute.xlu0 %184
    %v187 = vmul.f32 %v157, %v185
    %189 = vrot.lane.b32.xlu0 %v187, 32
    %v190 = vpop.permute.xlu0 %189
    %v192 = vadd.f32 %v177, %v190
    %v194 = vlaneseq
    %v195 = vshrl.u32 %v194, 7
    %v196 = vsub.s32 0, %v195
    %v197 = vrot.slane %v68, %v196
    %200 = vrot.lane.b32.xlu0 %v192, 64
    %v201 = vpop.permute.xlu0 %200
    %v202 = vsel %vm77, %v201, 0
    %204 = vmatprep.subr.mxu0 0.0
    %205 = vmatpush1.msra.mxu0 0.0
    %206 = vmatprep.subr.mxu0 0.0
    %207 = vmatpush1.msra.mxu0 0.0
    %208 = vmatprep.subr.mxu0 0.0
    %209 = vmatpush1.msra.mxu0 0.0
    %210 = vmatprep.subr.mxu0 0.0
    %211 = vmatpush1.msra.mxu0 0.0
    %212 = vmatprep.subr.mxu0 0.0
    %213 = vmatpush1.msra.mxu0 0.0
    %214 = vmatprep.subr.mxu0 0.0
    %215 = vmatpush1.msra.mxu0 0.0
    %216 = vmatprep.subr.mxu0 0.0
    %217 = vmatpush1.msra.mxu0 0.0
    %218 = vmatprep.subr.mxu0 0.0
    %219 = vmatpush1.msra.mxu0 0.0
    %220 = vmatprep.subr.mxu0 0.0
    %221 = vmatpush1.msra.mxu0 0.0
    %222 = vmatprep.subr.mxu0 0.0
    %223 = vmatpush1.msra.mxu0 0.0
    %224 = vmatprep.subr.mxu0 0.0
    %225 = vmatpush1.msra.mxu0 0.0
    %226 = vmatprep.subr.mxu0 0.0
    %227 = vmatpush1.msra.mxu0 0.0
    %228 = vmatprep.subr.mxu0 0.0
    %229 = vmatpush1.msra.mxu0 %v67
    %230 = vmatprep.subr.mxu0 0.0
    %231 = vmatpush1.msra.mxu0 %v66
    %232 = vmatprep.subr.mxu0 0.0
    %233 = vmatpush1.msra.mxu0 %v65
    %234 = vmatprep.subr.mxu0 0.0
    %235 = vmatpush1.msra.mxu0 %v64
    %236 = vmatprep.subr.mxu0 0.0
    %237 = vmatpush2.msra.mxu0 0.0
    %238 = vmatprep.subr.mxu0 0.0
    %239 = vmatpush2.msra.mxu0 0.0
    %240 = vmatprep.subr.mxu0 0.0
    %241 = vmatpush2.msra.mxu0 0.0
    %242 = vmatprep.subr.mxu0 0.0
    %243 = vmatpush2.msra.mxu0 0.0
    %244 = vmatprep.subr.mxu0 0.0
    %245 = vmatpush2.msra.mxu0 0.0
    %246 = vmatprep.subr.mxu0 0.0
    %247 = vmatpush2.msra.mxu0 0.0
    %248 = vmatprep.subr.mxu0 0.0
    %249 = vmatpush2.msra.mxu0 0.0
    %250 = vmatprep.subr.mxu0 0.0
    %251 = vmatpush2.msra.mxu0 0.0
    %252 = vmatprep.subr.mxu0 0.0
    %253 = vmatpush2.msra.mxu0 0.0
    %254 = vmatprep.subr.mxu0 0.0
    %255 = vmatpush2.msra.mxu0 0.0
    %256 = vmatprep.subr.mxu0 0.0
    %257 = vmatpush2.msra.mxu0 0.0
    %258 = vmatprep.subr.mxu0 0.0
    %259 = vmatpush2.msra.mxu0 0.0
    %260 = vmatprep.subr.mxu0 0.0
    %261 = vmatpush2.msra.mxu0 0.0
    %262 = vmatprep.subr.mxu0 0.0
    %263 = vmatpush2.msra.mxu0 0.0
    %264 = vmatprep.subr.mxu0 0.0
    %265 = vmatpush2.msra.mxu0 0.0
    %266 = vmatprep.subr.mxu0 0.0
    %267 = vmatpush2.msra.mxu0 0.0
    %268 = vmatprep.mubr.f32.mxu0 0.0
    %269 = vmatmul.mubr.f32.gmra.mxu0 %v202
    %v270 = vpop.f32.mrf.mxu0
    %v271 = vadd.f32 %v197, %v270
    %v272 = vpop.f32.mrf.mxu0
    %273 = vdwg.mxu0
    %v275 = vsel %vm77, %v75, 0
    %277 = vmatprep.subr.mxu0 0.0
    %278 = vmatpush1.msra.mxu0 0.0
    %279 = vmatprep.subr.mxu0 0.0
    %280 = vmatpush1.msra.mxu0 0.0
    %281 = vmatprep.subr.mxu0 0.0
    %282 = vmatpush1.msra.mxu0 0.0
    %283 = vmatprep.subr.mxu0 0.0
    %284 = vmatpush1.msra.mxu0 0.0
    %285 = vmatprep.subr.mxu0 0.0
    %286 = vmatpush1.msra.mxu0 0.0
    %287 = vmatprep.subr.mxu0 0.0
    %288 = vmatpush1.msra.mxu0 0.0
    %289 = vmatprep.subr.mxu0 0.0
    %290 = vmatpush1.msra.mxu0 0.0
    %291 = vmatprep.subr.mxu0 0.0
    %292 = vmatpush1.msra.mxu0 0.0
    %293 = vmatprep.subr.mxu0 0.0
    %294 = vmatpush1.msra.mxu0 0.0
    %295 = vmatprep.subr.mxu0 0.0
    %296 = vmatpush1.msra.mxu0 0.0
    %297 = vmatprep.subr.mxu0 0.0
    %298 = vmatpush1.msra.mxu0 0.0
    %299 = vmatprep.subr.mxu0 0.0
    %300 = vmatpush1.msra.mxu0 0.0
    %301 = vmatprep.subr.mxu0 0.0
    %302 = vmatpush1.msra.mxu0 %v72
    %303 = vmatprep.subr.mxu0 0.0
    %304 = vmatpush1.msra.mxu0 %v71
    %305 = vmatprep.subr.mxu0 0.0
    %306 = vmatpush1.msra.mxu0 %v70
    %307 = vmatprep.subr.mxu0 0.0
    %308 = vmatpush1.msra.mxu0 %v69
    %309 = vmatprep.subr.mxu0 0.0
    %310 = vmatpush2.msra.mxu0 0.0
    %311 = vmatprep.subr.mxu0 0.0
    %312 = vmatpush2.msra.mxu0 0.0
    %313 = vmatprep.subr.mxu0 0.0
    %314 = vmatpush2.msra.mxu0 0.0
    %315 = vmatprep.subr.mxu0 0.0
    %316 = vmatpush2.msra.mxu0 0.0
    %317 = vmatprep.subr.mxu0 0.0
    %318 = vmatpush2.msra.mxu0 0.0
    %319 = vmatprep.subr.mxu0 0.0
    %320 = vmatpush2.msra.mxu0 0.0
    %321 = vmatprep.subr.mxu0 0.0
    %322 = vmatpush2.msra.mxu0 0.0
    %323 = vmatprep.subr.mxu0 0.0
    %324 = vmatpush2.msra.mxu0 0.0
    %325 = vmatprep.subr.mxu0 0.0
    %326 = vmatpush2.msra.mxu0 0.0
    %327 = vmatprep.subr.mxu0 0.0
    %328 = vmatpush2.msra.mxu0 0.0
    %329 = vmatprep.subr.mxu0 0.0
    %330 = vmatpush2.msra.mxu0 0.0
    %331 = vmatprep.subr.mxu0 0.0
    %332 = vmatpush2.msra.mxu0 0.0
    %333 = vmatprep.subr.mxu0 0.0
    %334 = vmatpush2.msra.mxu0 0.0
    %335 = vmatprep.subr.mxu0 0.0
    %336 = vmatpush2.msra.mxu0 0.0
    %337 = vmatprep.subr.mxu0 0.0
    %338 = vmatpush2.msra.mxu0 0.0
    %339 = vmatprep.subr.mxu0 0.0
    %340 = vmatpush2.msra.mxu0 0.0
    %341 = vmatprep.mubr.f32.mxu0 0.0
    %342 = vmatmul.mubr.f32.gmra.mxu0 %v275
    %v343 = vpop.f32.mrf.mxu0
    %v344 = vadd.f32 0.0, %v343
    %v345 = vpop.f32.mrf.mxu0
    %346 = vdwg.mxu0
    %v347 = vadd.f32 %v271, %v344
    %v348 = vxor.u32 %v347, 2147483648
    %v349 = vmul.f32 %v348, 1.442695
    %v350 = vpow.pop %v349
    %v351 = vadd.f32 %v350, 1.0
    %v352 = vrcp.pop %v351
    %v353 = vmul.f32 1.0, %v352
    %v355 = vlaneseq
    %v356 = vshrl.u32 %v355, 7
    %v357 = vsub.s32 0, %v356
    %v358 = vrot.slane %v73, %v357
    %359 = vrot.lane.b32.xlu0 %v358, 64
    %v360 = vpop.permute.xlu0 %359
    %v362 = vadd.f32 %v344, %v360
    %364 = vrot.lane.b32.xlu0 %v362, 64
    %v365 = vpop.permute.xlu0 %364
    %v367 = vmul.f32 %v353, %v365
    %369 = vrot.lane.b32.xlu0 %v367, 64
    %v370 = vpop.permute.xlu0 %369
    %v372 = vadd.f32 %v271, %v370
    %v373 = vtanh.pop %v372
    %375 = vrot.lane.b32.xlu0 %v373, 64
    %v376 = vpop.permute.xlu0 %375
    %v378 = vsub.f32 %v75, %v376
    %380 = vrot.lane.b32.xlu0 %v378, 32
    %v381 = vpop.permute.xlu0 %380
    %v383 = vmul.f32 %v353, %v381
    %385 = vrot.lane.b32.xlu0 %v383, 32
    %v386 = vpop.permute.xlu0 %385
    %v388 = vadd.f32 %v373, %v386
    %390 = vrot.lane.b32.xlu0 %v388, 64
    %v391 = vpop.permute.xlu0 %390
    %vm393 = vcmask 254976
    %394 = vst.msk [vmem:[%s7] sm:$0x3] %vm393, %v391
    %s395 = scalar_lea.vmem %s0, 2
    %v396 = vld [vmem:[%s395] sm:$0x3]
    %397 = vmatprep.subr.mxu0 0.0
    %398 = vmatpush1.msra.mxu0 0.0
    %399 = vmatprep.subr.mxu0 0.0
    %400 = vmatpush1.msra.mxu0 0.0
    %401 = vmatprep.subr.mxu0 0.0
    %402 = vmatpush1.msra.mxu0 0.0
    %403 = vmatprep.subr.mxu0 0.0
    %404 = vmatpush1.msra.mxu0 0.0
    %405 = vmatprep.subr.mxu0 0.0
    %406 = vmatpush1.msra.mxu0 0.0
    %407 = vmatprep.subr.mxu0 0.0
    %408 = vmatpush1.msra.mxu0 0.0
    %409 = vmatprep.subr.mxu0 0.0
    %410 = vmatpush1.msra.mxu0 0.0
    %411 = vmatprep.subr.mxu0 0.0
    %412 = vmatpush1.msra.mxu0 0.0
    %413 = vmatprep.subr.mxu0 0.0
    %414 = vmatpush1.msra.mxu0 0.0
    %415 = vmatprep.subr.mxu0 0.0
    %416 = vmatpush1.msra.mxu0 0.0
    %417 = vmatprep.subr.mxu0 0.0
    %418 = vmatpush1.msra.mxu0 0.0
    %419 = vmatprep.subr.mxu0 0.0
    %420 = vmatpush1.msra.mxu0 0.0
    %421 = vmatprep.subr.mxu0 0.0
    %422 = vmatpush1.msra.mxu0 %v62
    %423 = vmatprep.subr.mxu0 0.0
    %424 = vmatpush1.msra.mxu0 %v61
    %425 = vmatprep.subr.mxu0 0.0
    %426 = vmatpush1.msra.mxu0 %v60
    %427 = vmatprep.subr.mxu0 0.0
    %428 = vmatpush1.msra.mxu0 %v59
    %429 = vmatprep.subr.mxu0 0.0
    %430 = vmatpush2.msra.mxu0 0.0
    %431 = vmatprep.subr.mxu0 0.0
    %432 = vmatpush2.msra.mxu0 0.0
    %433 = vmatprep.subr.mxu0 0.0
    %434 = vmatpush2.msra.mxu0 0.0
    %435 = vmatprep.subr.mxu0 0.0
    %436 = vmatpush2.msra.mxu0 0.0
    %437 = vmatprep.subr.mxu0 0.0
    %438 = vmatpush2.msra.mxu0 0.0
    %439 = vmatprep.subr.mxu0 0.0
    %440 = vmatpush2.msra.mxu0 0.0
    %441 = vmatprep.subr.mxu0 0.0
    %442 = vmatpush2.msra.mxu0 0.0
    %443 = vmatprep.subr.mxu0 0.0
    %444 = vmatpush2.msra.mxu0 0.0
    %445 = vmatprep.subr.mxu0 0.0
    %446 = vmatpush2.msra.mxu0 0.0
    %447 = vmatprep.subr.mxu0 0.0
    %448 = vmatpush2.msra.mxu0 0.0
    %449 = vmatprep.subr.mxu0 0.0
    %450 = vmatpush2.msra.mxu0 0.0
    %451 = vmatprep.subr.mxu0 0.0
    %452 = vmatpush2.msra.mxu0 0.0
    %453 = vmatprep.subr.mxu0 0.0
    %454 = vmatpush2.msra.mxu0 0.0
    %455 = vmatprep.subr.mxu0 0.0
    %456 = vmatpush2.msra.mxu0 0.0
    %457 = vmatprep.subr.mxu0 0.0
    %458 = vmatpush2.msra.mxu0 0.0
    %459 = vmatprep.subr.mxu0 0.0
    %460 = vmatpush2.msra.mxu0 0.0
    %461 = vmatprep.mubr.f32.mxu0 0.0
    %462 = vmatmul.mubr.f32.gmra.mxu0 %v202
    %v463 = vpop.f32.mrf.mxu0
    %v464 = vadd.f32 0.0, %v463
    %v465 = vpop.f32.mrf.mxu0
    %466 = vdwg.mxu0
    %v467 = vadd.f32 %v396, %v464
    %v468 = vxor.u32 %v467, 2147483648
    %v469 = vmul.f32 %v468, 1.442695
    %v470 = vpow.pop %v469
    %v471 = vadd.f32 %v470, 1.0
    %v472 = vrcp.pop %v471
    %v473 = vmul.f32 1.0, %v472
    %v474 = vadd.f32 %v464, %v164
    %476 = vrot.lane.b32.xlu0 %v474, 64
    %v477 = vpop.permute.xlu0 %476
    %v479 = vmul.f32 %v473, %v477
    %481 = vrot.lane.b32.xlu0 %v479, 64
    %v482 = vpop.permute.xlu0 %481
    %v484 = vadd.f32 %v396, %v482
    %v485 = vtanh.pop %v484
    %v486 = vsub.f32 %v192, %v485
    %488 = vrot.lane.b32.xlu0 %v486, 96
    %v489 = vpop.permute.xlu0 %488
    %v491 = vmul.f32 %v473, %v489
    %493 = vrot.lane.b32.xlu0 %v491, 32
    %v494 = vpop.permute.xlu0 %493
    %v496 = vadd.f32 %v485, %v494
    %498 = vrot.lane.b32.xlu0 %v496, 64
    %v499 = vpop.permute.xlu0 %498
    %v500 = vsel %vm77, %v499, 0
    %502 = vmatprep.subr.mxu0 0.0
    %503 = vmatpush1.msra.mxu0 0.0
    %504 = vmatprep.subr.mxu0 0.0
    %505 = vmatpush1.msra.mxu0 0.0
    %506 = vmatprep.subr.mxu0 0.0
    %507 = vmatpush1.msra.mxu0 0.0
    %508 = vmatprep.subr.mxu0 0.0
    %509 = vmatpush1.msra.mxu0 0.0
    %510 = vmatprep.subr.mxu0 0.0
    %511 = vmatpush1.msra.mxu0 0.0
    %512 = vmatprep.subr.mxu0 0.0
    %513 = vmatpush1.msra.mxu0 0.0
    %514 = vmatprep.subr.mxu0 0.0
    %515 = vmatpush1.msra.mxu0 0.0
    %516 = vmatprep.subr.mxu0 0.0
    %517 = vmatpush1.msra.mxu0 0.0
    %518 = vmatprep.subr.mxu0 0.0
    %519 = vmatpush1.msra.mxu0 0.0
    %520 = vmatprep.subr.mxu0 0.0
    %521 = vmatpush1.msra.mxu0 0.0
    %522 = vmatprep.subr.mxu0 0.0
    %523 = vmatpush1.msra.mxu0 0.0
    %524 = vmatprep.subr.mxu0 0.0
    %525 = vmatpush1.msra.mxu0 0.0
    %526 = vmatprep.subr.mxu0 0.0
    %527 = vmatpush1.msra.mxu0 %v67
    %528 = vmatprep.subr.mxu0 0.0
    %529 = vmatpush1.msra.mxu0 %v66
    %530 = vmatprep.subr.mxu0 0.0
    %531 = vmatpush1.msra.mxu0 %v65
    %532 = vmatprep.subr.mxu0 0.0
    %533 = vmatpush1.msra.mxu0 %v64
    %534 = vmatprep.subr.mxu0 0.0
    %535 = vmatpush2.msra.mxu0 0.0
    %536 = vmatprep.subr.mxu0 0.0
    %537 = vmatpush2.msra.mxu0 0.0
    %538 = vmatprep.subr.mxu0 0.0
    %539 = vmatpush2.msra.mxu0 0.0
    %540 = vmatprep.subr.mxu0 0.0
    %541 = vmatpush2.msra.mxu0 0.0
    %542 = vmatprep.subr.mxu0 0.0
    %543 = vmatpush2.msra.mxu0 0.0
    %544 = vmatprep.subr.mxu0 0.0
    %545 = vmatpush2.msra.mxu0 0.0
    %546 = vmatprep.subr.mxu0 0.0
    %547 = vmatpush2.msra.mxu0 0.0
    %548 = vmatprep.subr.mxu0 0.0
    %549 = vmatpush2.msra.mxu0 0.0
    %550 = vmatprep.subr.mxu0 0.0
    %551 = vmatpush2.msra.mxu0 0.0
    %552 = vmatprep.subr.mxu0 0.0
    %553 = vmatpush2.msra.mxu0 0.0
    %554 = vmatprep.subr.mxu0 0.0
    %555 = vmatpush2.msra.mxu0 0.0
    %556 = vmatprep.subr.mxu0 0.0
    %557 = vmatpush2.msra.mxu0 0.0
    %558 = vmatprep.subr.mxu0 0.0
    %559 = vmatpush2.msra.mxu0 0.0
    %560 = vmatprep.subr.mxu0 0.0
    %561 = vmatpush2.msra.mxu0 0.0
    %562 = vmatprep.subr.mxu0 0.0
    %563 = vmatpush2.msra.mxu0 0.0
    %564 = vmatprep.subr.mxu0 0.0
    %565 = vmatpush2.msra.mxu0 0.0
    %566 = vmatprep.mubr.f32.mxu0 0.0
    %567 = vmatmul.mubr.f32.gmra.mxu0 %v500
    %v568 = vpop.f32.mrf.mxu0
    %v569 = vadd.f32 %v197, %v568
    %v570 = vpop.f32.mrf.mxu0
    %571 = vdwg.mxu0
    %v572 = vsel %vm77, %v391, 0
    %574 = vmatprep.subr.mxu0 0.0
    %575 = vmatpush1.msra.mxu0 0.0
    %576 = vmatprep.subr.mxu0 0.0
    %577 = vmatpush1.msra.mxu0 0.0
    %578 = vmatprep.subr.mxu0 0.0
    %579 = vmatpush1.msra.mxu0 0.0
    %580 = vmatprep.subr.mxu0 0.0
    %581 = vmatpush1.msra.mxu0 0.0
    %582 = vmatprep.subr.mxu0 0.0
    %583 = vmatpush1.msra.mxu0 0.0
    %584 = vmatprep.subr.mxu0 0.0
    %585 = vmatpush1.msra.mxu0 0.0
    %586 = vmatprep.subr.mxu0 0.0
    %587 = vmatpush1.msra.mxu0 0.0
    %588 = vmatprep.subr.mxu0 0.0
    %589 = vmatpush1.msra.mxu0 0.0
    %590 = vmatprep.subr.mxu0 0.0
    %591 = vmatpush1.msra.mxu0 0.0
    %592 = vmatprep.subr.mxu0 0.0
    %593 = vmatpush1.msra.mxu0 0.0
    %594 = vmatprep.subr.mxu0 0.0
    %595 = vmatpush1.msra.mxu0 0.0
    %596 = vmatprep.subr.mxu0 0.0
    %597 = vmatpush1.msra.mxu0 0.0
    %598 = vmatprep.subr.mxu0 0.0
    %599 = vmatpush1.msra.mxu0 %v72
    %600 = vmatprep.subr.mxu0 0.0
    %601 = vmatpush1.msra.mxu0 %v71
    %602 = vmatprep.subr.mxu0 0.0
    %603 = vmatpush1.msra.mxu0 %v70
    %604 = vmatprep.subr.mxu0 0.0
    %605 = vmatpush1.msra.mxu0 %v69
    %606 = vmatprep.subr.mxu0 0.0
    %607 = vmatpush2.msra.mxu0 0.0
    %608 = vmatprep.subr.mxu0 0.0
    %609 = vmatpush2.msra.mxu0 0.0
    %610 = vmatprep.subr.mxu0 0.0
    %611 = vmatpush2.msra.mxu0 0.0
    %612 = vmatprep.subr.mxu0 0.0
    %613 = vmatpush2.msra.mxu0 0.0
    %614 = vmatprep.subr.mxu0 0.0
    %615 = vmatpush2.msra.mxu0 0.0
    %616 = vmatprep.subr.mxu0 0.0
    %617 = vmatpush2.msra.mxu0 0.0
    %618 = vmatprep.subr.mxu0 0.0
    %619 = vmatpush2.msra.mxu0 0.0
    %620 = vmatprep.subr.mxu0 0.0
    %621 = vmatpush2.msra.mxu0 0.0
    %622 = vmatprep.subr.mxu0 0.0
    %623 = vmatpush2.msra.mxu0 0.0
    %624 = vmatprep.subr.mxu0 0.0
    %625 = vmatpush2.msra.mxu0 0.0
    %626 = vmatprep.subr.mxu0 0.0
    %627 = vmatpush2.msra.mxu0 0.0
    %628 = vmatprep.subr.mxu0 0.0
    %629 = vmatpush2.msra.mxu0 0.0
    %630 = vmatprep.subr.mxu0 0.0
    %631 = vmatpush2.msra.mxu0 0.0
    %632 = vmatprep.subr.mxu0 0.0
    %633 = vmatpush2.msra.mxu0 0.0
    %634 = vmatprep.subr.mxu0 0.0
    %635 = vmatpush2.msra.mxu0 0.0
    %636 = vmatprep.subr.mxu0 0.0
    %637 = vmatpush2.msra.mxu0 0.0
    %638 = vmatprep.mubr.f32.mxu0 0.0
    %639 = vmatmul.mubr.f32.gmra.mxu0 %v572
    %v640 = vpop.f32.mrf.mxu0
    %v641 = vadd.f32 0.0, %v640
    %v642 = vpop.f32.mrf.mxu0
    %643 = vdwg.mxu0
    %v644 = vadd.f32 %v569, %v641
    %v645 = vxor.u32 %v644, 2147483648
    %v646 = vmul.f32 %v645, 1.442695
    %v647 = vpow.pop %v646
    %v648 = vadd.f32 %v647, 1.0
    %v649 = vrcp.pop %v648
    %v650 = vmul.f32 1.0, %v649
    %v651 = vadd.f32 %v641, %v360
    %653 = vrot.lane.b32.xlu0 %v651, 64
    %v654 = vpop.permute.xlu0 %653
    %v656 = vmul.f32 %v650, %v654
    %658 = vrot.lane.b32.xlu0 %v656, 64
    %v659 = vpop.permute.xlu0 %658
    %v661 = vadd.f32 %v569, %v659
    %v662 = vtanh.pop %v661
    %v663 = vsub.f32 %v388, %v662
    %665 = vrot.lane.b32.xlu0 %v663, 96
    %v666 = vpop.permute.xlu0 %665
    %v668 = vmul.f32 %v650, %v666
    %670 = vrot.lane.b32.xlu0 %v668, 32
    %v671 = vpop.permute.xlu0 %670
    %v673 = vadd.f32 %v662, %v671
    %675 = vrot.lane.b32.xlu0 %v673, 64
    %v676 = vpop.permute.xlu0 %675
    %s678 = scalar_lea.vmem %s7, 2
    %679 = vst.msk [vmem:[%s678] sm:$0x3] %vm393, %v676
    %s680 = scalar_lea.vmem %s0, 4
    %v681 = vld [vmem:[%s680] sm:$0x3]
    %682 = vmatprep.subr.mxu0 0.0
    %683 = vmatpush1.msra.mxu0 0.0
    %684 = vmatprep.subr.mxu0 0.0
    %685 = vmatpush1.msra.mxu0 0.0
    %686 = vmatprep.subr.mxu0 0.0
    %687 = vmatpush1.msra.mxu0 0.0
    %688 = vmatprep.subr.mxu0 0.0
    %689 = vmatpush1.msra.mxu0 0.0
    %690 = vmatprep.subr.mxu0 0.0
    %691 = vmatpush1.msra.mxu0 0.0
    %692 = vmatprep.subr.mxu0 0.0
    %693 = vmatpush1.msra.mxu0 0.0
    %694 = vmatprep.subr.mxu0 0.0
    %695 = vmatpush1.msra.mxu0 0.0
    %696 = vmatprep.subr.mxu0 0.0
    %697 = vmatpush1.msra.mxu0 0.0
    %698 = vmatprep.subr.mxu0 0.0
    %699 = vmatpush1.msra.mxu0 0.0
    %700 = vmatprep.subr.mxu0 0.0
    %701 = vmatpush1.msra.mxu0 0.0
    %702 = vmatprep.subr.mxu0 0.0
    %703 = vmatpush1.msra.mxu0 0.0
    %704 = vmatprep.subr.mxu0 0.0
    %705 = vmatpush1.msra.mxu0 0.0
    %706 = vmatprep.subr.mxu0 0.0
    %707 = vmatpush1.msra.mxu0 %v62
    %708 = vmatprep.subr.mxu0 0.0
    %709 = vmatpush1.msra.mxu0 %v61
    %710 = vmatprep.subr.mxu0 0.0
    %711 = vmatpush1.msra.mxu0 %v60
    %712 = vmatprep.subr.mxu0 0.0
    %713 = vmatpush1.msra.mxu0 %v59
    %714 = vmatprep.subr.mxu0 0.0
    %715 = vmatpush2.msra.mxu0 0.0
    %716 = vmatprep.subr.mxu0 0.0
    %717 = vmatpush2.msra.mxu0 0.0
    %718 = vmatprep.subr.mxu0 0.0
    %719 = vmatpush2.msra.mxu0 0.0
    %720 = vmatprep.subr.mxu0 0.0
    %721 = vmatpush2.msra.mxu0 0.0
    %722 = vmatprep.subr.mxu0 0.0
    %723 = vmatpush2.msra.mxu0 0.0
    %724 = vmatprep.subr.mxu0 0.0
    %725 = vmatpush2.msra.mxu0 0.0
    %726 = vmatprep.subr.mxu0 0.0
    %727 = vmatpush2.msra.mxu0 0.0
    %728 = vmatprep.subr.mxu0 0.0
    %729 = vmatpush2.msra.mxu0 0.0
    %730 = vmatprep.subr.mxu0 0.0
    %731 = vmatpush2.msra.mxu0 0.0
    %732 = vmatprep.subr.mxu0 0.0
    %733 = vmatpush2.msra.mxu0 0.0
    %734 = vmatprep.subr.mxu0 0.0
    %735 = vmatpush2.msra.mxu0 0.0
    %736 = vmatprep.subr.mxu0 0.0
    %737 = vmatpush2.msra.mxu0 0.0
    %738 = vmatprep.subr.mxu0 0.0
    %739 = vmatpush2.msra.mxu0 0.0
    %740 = vmatprep.subr.mxu0 0.0
    %741 = vmatpush2.msra.mxu0 0.0
    %742 = vmatprep.subr.mxu0 0.0
    %743 = vmatpush2.msra.mxu0 0.0
    %744 = vmatprep.subr.mxu0 0.0
    %745 = vmatpush2.msra.mxu0 0.0
    %746 = vmatprep.mubr.f32.mxu0 0.0
    %747 = vmatmul.mubr.f32.gmra.mxu0 %v500
    %v748 = vpop.f32.mrf.mxu0
    %v749 = vadd.f32 0.0, %v748
    %v750 = vpop.f32.mrf.mxu0
    %751 = vdwg.mxu0
    %v752 = vadd.f32 %v681, %v749
    %v753 = vxor.u32 %v752, 2147483648
    %v754 = vmul.f32 %v753, 1.442695
    %v755 = vpow.pop %v754
    %v756 = vadd.f32 %v755, 1.0
    %v757 = vrcp.pop %v756
    %v758 = vmul.f32 1.0, %v757
    %v759 = vadd.f32 %v749, %v164
    %761 = vrot.lane.b32.xlu0 %v759, 64
    %v762 = vpop.permute.xlu0 %761
    %v764 = vmul.f32 %v758, %v762
    %766 = vrot.lane.b32.xlu0 %v764, 64
    %v767 = vpop.permute.xlu0 %766
    %v769 = vadd.f32 %v681, %v767
    %v770 = vtanh.pop %v769
    %v771 = vsub.f32 %v496, %v770
    %773 = vrot.lane.b32.xlu0 %v771, 96
    %v774 = vpop.permute.xlu0 %773
    %v776 = vmul.f32 %v758, %v774
    %778 = vrot.lane.b32.xlu0 %v776, 32
    %v779 = vpop.permute.xlu0 %778
    %v781 = vadd.f32 %v770, %v779
    %783 = vrot.lane.b32.xlu0 %v781, 64
    %v784 = vpop.permute.xlu0 %783
    %v785 = vsel %vm77, %v784, 0
    %787 = vmatprep.subr.mxu0 0.0
    %788 = vmatpush1.msra.mxu0 0.0
    %789 = vmatprep.subr.mxu0 0.0
    %790 = vmatpush1.msra.mxu0 0.0
    %791 = vmatprep.subr.mxu0 0.0
    %792 = vmatpush1.msra.mxu0 0.0
    %793 = vmatprep.subr.mxu0 0.0
    %794 = vmatpush1.msra.mxu0 0.0
    %795 = vmatprep.subr.mxu0 0.0
    %796 = vmatpush1.msra.mxu0 0.0
    %797 = vmatprep.subr.mxu0 0.0
    %798 = vmatpush1.msra.mxu0 0.0
    %799 = vmatprep.subr.mxu0 0.0
    %800 = vmatpush1.msra.mxu0 0.0
    %801 = vmatprep.subr.mxu0 0.0
    %802 = vmatpush1.msra.mxu0 0.0
    %803 = vmatprep.subr.mxu0 0.0
    %804 = vmatpush1.msra.mxu0 0.0
    %805 = vmatprep.subr.mxu0 0.0
    %806 = vmatpush1.msra.mxu0 0.0
    %807 = vmatprep.subr.mxu0 0.0
    %808 = vmatpush1.msra.mxu0 0.0
    %809 = vmatprep.subr.mxu0 0.0
    %810 = vmatpush1.msra.mxu0 0.0
    %811 = vmatprep.subr.mxu0 0.0
    %812 = vmatpush1.msra.mxu0 %v67
    %813 = vmatprep.subr.mxu0 0.0
    %814 = vmatpush1.msra.mxu0 %v66
    %815 = vmatprep.subr.mxu0 0.0
    %816 = vmatpush1.msra.mxu0 %v65
    %817 = vmatprep.subr.mxu0 0.0
    %818 = vmatpush1.msra.mxu0 %v64
    %819 = vmatprep.subr.mxu0 0.0
    %820 = vmatpush2.msra.mxu0 0.0
    %821 = vmatprep.subr.mxu0 0.0
    %822 = vmatpush2.msra.mxu0 0.0
    %823 = vmatprep.subr.mxu0 0.0
    %824 = vmatpush2.msra.mxu0 0.0
    %825 = vmatprep.subr.mxu0 0.0
    %826 = vmatpush2.msra.mxu0 0.0
    %827 = vmatprep.subr.mxu0 0.0
    %828 = vmatpush2.msra.mxu0 0.0
    %829 = vmatprep.subr.mxu0 0.0
    %830 = vmatpush2.msra.mxu0 0.0
    %831 = vmatprep.subr.mxu0 0.0
    %832 = vmatpush2.msra.mxu0 0.0
    %833 = vmatprep.subr.mxu0 0.0
    %834 = vmatpush2.msra.mxu0 0.0
    %835 = vmatprep.subr.mxu0 0.0
    %836 = vmatpush2.msra.mxu0 0.0
    %837 = vmatprep.subr.mxu0 0.0
    %838 = vmatpush2.msra.mxu0 0.0
    %839 = vmatprep.subr.mxu0 0.0
    %840 = vmatpush2.msra.mxu0 0.0
    %841 = vmatprep.subr.mxu0 0.0
    %842 = vmatpush2.msra.mxu0 0.0
    %843 = vmatprep.subr.mxu0 0.0
    %844 = vmatpush2.msra.mxu0 0.0
    %845 = vmatprep.subr.mxu0 0.0
    %846 = vmatpush2.msra.mxu0 0.0
    %847 = vmatprep.subr.mxu0 0.0
    %848 = vmatpush2.msra.mxu0 0.0
    %849 = vmatprep.subr.mxu0 0.0
    %850 = vmatpush2.msra.mxu0 0.0
    %851 = vmatprep.mubr.f32.mxu0 0.0
    %852 = vmatmul.mubr.f32.gmra.mxu0 %v785
    %v853 = vpop.f32.mrf.mxu0
    %v854 = vadd.f32 %v197, %v853
    %v855 = vpop.f32.mrf.mxu0
    %856 = vdwg.mxu0
    %v857 = vsel %vm77, %v676, 0
    %859 = vmatprep.subr.mxu0 0.0
    %860 = vmatpush1.msra.mxu0 0.0
    %861 = vmatprep.subr.mxu0 0.0
    %862 = vmatpush1.msra.mxu0 0.0
    %863 = vmatprep.subr.mxu0 0.0
    %864 = vmatpush1.msra.mxu0 0.0
    %865 = vmatprep.subr.mxu0 0.0
    %866 = vmatpush1.msra.mxu0 0.0
    %867 = vmatprep.subr.mxu0 0.0
    %868 = vmatpush1.msra.mxu0 0.0
    %869 = vmatprep.subr.mxu0 0.0
    %870 = vmatpush1.msra.mxu0 0.0
    %871 = vmatprep.subr.mxu0 0.0
    %872 = vmatpush1.msra.mxu0 0.0
    %873 = vmatprep.subr.mxu0 0.0
    %874 = vmatpush1.msra.mxu0 0.0
    %875 = vmatprep.subr.mxu0 0.0
    %876 = vmatpush1.msra.mxu0 0.0
    %877 = vmatprep.subr.mxu0 0.0
    %878 = vmatpush1.msra.mxu0 0.0
    %879 = vmatprep.subr.mxu0 0.0
    %880 = vmatpush1.msra.mxu0 0.0
    %881 = vmatprep.subr.mxu0 0.0
    %882 = vmatpush1.msra.mxu0 0.0
    %883 = vmatprep.subr.mxu0 0.0
    %884 = vmatpush1.msra.mxu0 %v72
    %885 = vmatprep.subr.mxu0 0.0
    %886 = vmatpush1.msra.mxu0 %v71
    %887 = vmatprep.subr.mxu0 0.0
    %888 = vmatpush1.msra.mxu0 %v70
    %889 = vmatprep.subr.mxu0 0.0
    %890 = vmatpush1.msra.mxu0 %v69
    %891 = vmatprep.subr.mxu0 0.0
    %892 = vmatpush2.msra.mxu0 0.0
    %893 = vmatprep.subr.mxu0 0.0
    %894 = vmatpush2.msra.mxu0 0.0
    %895 = vmatprep.subr.mxu0 0.0
    %896 = vmatpush2.msra.mxu0 0.0
    %897 = vmatprep.subr.mxu0 0.0
    %898 = vmatpush2.msra.mxu0 0.0
    %899 = vmatprep.subr.mxu0 0.0
    %900 = vmatpush2.msra.mxu0 0.0
    %901 = vmatprep.subr.mxu0 0.0
    %902 = vmatpush2.msra.mxu0 0.0
    %903 = vmatprep.subr.mxu0 0.0
    %904 = vmatpush2.msra.mxu0 0.0
    %905 = vmatprep.subr.mxu0 0.0
    %906 = vmatpush2.msra.mxu0 0.0
    %907 = vmatprep.subr.mxu0 0.0
    %908 = vmatpush2.msra.mxu0 0.0
    %909 = vmatprep.subr.mxu0 0.0
    %910 = vmatpush2.msra.mxu0 0.0
    %911 = vmatprep.subr.mxu0 0.0
    %912 = vmatpush2.msra.mxu0 0.0
    %913 = vmatprep.subr.mxu0 0.0
    %914 = vmatpush2.msra.mxu0 0.0
    %915 = vmatprep.subr.mxu0 0.0
    %916 = vmatpush2.msra.mxu0 0.0
    %917 = vmatprep.subr.mxu0 0.0
    %918 = vmatpush2.msra.mxu0 0.0
    %919 = vmatprep.subr.mxu0 0.0
    %920 = vmatpush2.msra.mxu0 0.0
    %921 = vmatprep.subr.mxu0 0.0
    %922 = vmatpush2.msra.mxu0 0.0
    %923 = vmatprep.mubr.f32.mxu0 0.0
    %924 = vmatmul.mubr.f32.gmra.mxu0 %v857
    %v925 = vpop.f32.mrf.mxu0
    %v926 = vadd.f32 0.0, %v925
    %v927 = vpop.f32.mrf.mxu0
    %928 = vdwg.mxu0
    %v929 = vadd.f32 %v854, %v926
    %v930 = vxor.u32 %v929, 2147483648
    %v931 = vmul.f32 %v930, 1.442695
    %v932 = vpow.pop %v931
    %v933 = vadd.f32 %v932, 1.0
    %v934 = vrcp.pop %v933
    %v935 = vmul.f32 1.0, %v934
    %v936 = vadd.f32 %v926, %v360
    %938 = vrot.lane.b32.xlu0 %v936, 64
    %v939 = vpop.permute.xlu0 %938
    %v941 = vmul.f32 %v935, %v939
    %943 = vrot.lane.b32.xlu0 %v941, 64
    %v944 = vpop.permute.xlu0 %943
    %v946 = vadd.f32 %v854, %v944
    %v947 = vtanh.pop %v946
    %v948 = vsub.f32 %v673, %v947
    %950 = vrot.lane.b32.xlu0 %v948, 96
    %v951 = vpop.permute.xlu0 %950
    %v953 = vmul.f32 %v935, %v951
    %955 = vrot.lane.b32.xlu0 %v953, 32
    %v956 = vpop.permute.xlu0 %955
    %v958 = vadd.f32 %v947, %v956
    %960 = vrot.lane.b32.xlu0 %v958, 64
    %v961 = vpop.permute.xlu0 %960
    %s963 = scalar_lea.vmem %s7, 4
    %964 = vst.msk [vmem:[%s963] sm:$0x3] %vm393, %v961
    %s965 = scalar_lea.vmem %s0, 6
    %v966 = vld [vmem:[%s965] sm:$0x3]
    %967 = vmatprep.subr.mxu0 0.0
    %968 = vmatpush1.msra.mxu0 0.0
    %969 = vmatprep.subr.mxu0 0.0
    %970 = vmatpush1.msra.mxu0 0.0
    %971 = vmatprep.subr.mxu0 0.0
    %972 = vmatpush1.msra.mxu0 0.0
    %973 = vmatprep.subr.mxu0 0.0
    %974 = vmatpush1.msra.mxu0 0.0
    %975 = vmatprep.subr.mxu0 0.0
    %976 = vmatpush1.msra.mxu0 0.0
    %977 = vmatprep.subr.mxu0 0.0
    %978 = vmatpush1.msra.mxu0 0.0
    %979 = vmatprep.subr.mxu0 0.0
    %980 = vmatpush1.msra.mxu0 0.0
    %981 = vmatprep.subr.mxu0 0.0
    %982 = vmatpush1.msra.mxu0 0.0
    %983 = vmatprep.subr.mxu0 0.0
    %984 = vmatpush1.msra.mxu0 0.0
    %985 = vmatprep.subr.mxu0 0.0
    %986 = vmatpush1.msra.mxu0 0.0
    %987 = vmatprep.subr.mxu0 0.0
    %988 = vmatpush1.msra.mxu0 0.0
    %989 = vmatprep.subr.mxu0 0.0
    %990 = vmatpush1.msra.mxu0 0.0
    %991 = vmatprep.subr.mxu0 0.0
    %992 = vmatpush1.msra.mxu0 %v62
    %993 = vmatprep.subr.mxu0 0.0
    %994 = vmatpush1.msra.mxu0 %v61
    %995 = vmatprep.subr.mxu0 0.0
    %996 = vmatpush1.msra.mxu0 %v60
    %997 = vmatprep.subr.mxu0 0.0
    %998 = vmatpush1.msra.mxu0 %v59
    %999 = vmatprep.subr.mxu0 0.0
    %1000 = vmatpush2.msra.mxu0 0.0
    %1001 = vmatprep.subr.mxu0 0.0
    %1002 = vmatpush2.msra.mxu0 0.0
    %1003 = vmatprep.subr.mxu0 0.0
    %1004 = vmatpush2.msra.mxu0 0.0
    %1005 = vmatprep.subr.mxu0 0.0
    %1006 = vmatpush2.msra.mxu0 0.0
    %1007 = vmatprep.subr.mxu0 0.0
    %1008 = vmatpush2.msra.mxu0 0.0
    %1009 = vmatprep.subr.mxu0 0.0
    %1010 = vmatpush2.msra.mxu0 0.0
    %1011 = vmatprep.subr.mxu0 0.0
    %1012 = vmatpush2.msra.mxu0 0.0
    %1013 = vmatprep.subr.mxu0 0.0
    %1014 = vmatpush2.msra.mxu0 0.0
    %1015 = vmatprep.subr.mxu0 0.0
    %1016 = vmatpush2.msra.mxu0 0.0
    %1017 = vmatprep.subr.mxu0 0.0
    %1018 = vmatpush2.msra.mxu0 0.0
    %1019 = vmatprep.subr.mxu0 0.0
    %1020 = vmatpush2.msra.mxu0 0.0
    %1021 = vmatprep.subr.mxu0 0.0
    %1022 = vmatpush2.msra.mxu0 0.0
    %1023 = vmatprep.subr.mxu0 0.0
    %1024 = vmatpush2.msra.mxu0 0.0
    %1025 = vmatprep.subr.mxu0 0.0
    %1026 = vmatpush2.msra.mxu0 0.0
    %1027 = vmatprep.subr.mxu0 0.0
    %1028 = vmatpush2.msra.mxu0 0.0
    %1029 = vmatprep.subr.mxu0 0.0
    %1030 = vmatpush2.msra.mxu0 0.0
    %1031 = vmatprep.mubr.f32.mxu0 0.0
    %1032 = vmatmul.mubr.f32.gmra.mxu0 %v785
    %v1033 = vpop.f32.mrf.mxu0
    %v1034 = vadd.f32 0.0, %v1033
    %v1035 = vpop.f32.mrf.mxu0
    %1036 = vdwg.mxu0
    %v1037 = vadd.f32 %v966, %v1034
    %v1038 = vxor.u32 %v1037, 2147483648
    %v1039 = vmul.f32 %v1038, 1.442695
    %v1040 = vpow.pop %v1039
    %v1041 = vadd.f32 %v1040, 1.0
    %v1042 = vrcp.pop %v1041
    %v1043 = vmul.f32 1.0, %v1042
    %v1044 = vadd.f32 %v1034, %v164
    %1046 = vrot.lane.b32.xlu0 %v1044, 64
    %v1047 = vpop.permute.xlu0 %1046
    %v1049 = vmul.f32 %v1043, %v1047
    %1051 = vrot.lane.b32.xlu0 %v1049, 64
    %v1052 = vpop.permute.xlu0 %1051
    %v1054 = vadd.f32 %v966, %v1052
    %v1055 = vtanh.pop %v1054
    %v1056 = vsub.f32 %v781, %v1055
    %1058 = vrot.lane.b32.xlu0 %v1056, 96
    %v1059 = vpop.permute.xlu0 %1058
    %v1061 = vmul.f32 %v1043, %v1059
    %1063 = vrot.lane.b32.xlu0 %v1061, 32
    %v1064 = vpop.permute.xlu0 %1063
    %v1066 = vadd.f32 %v1055, %v1064
    %1068 = vrot.lane.b32.xlu0 %v1066, 64
    %v1069 = vpop.permute.xlu0 %1068
    %v1070 = vsel %vm77, %v1069, 0
    %1072 = vmatprep.subr.mxu0 0.0
    %1073 = vmatpush1.msra.mxu0 0.0
    %1074 = vmatprep.subr.mxu0 0.0
    %1075 = vmatpush1.msra.mxu0 0.0
    %1076 = vmatprep.subr.mxu0 0.0
    %1077 = vmatpush1.msra.mxu0 0.0
    %1078 = vmatprep.subr.mxu0 0.0
    %1079 = vmatpush1.msra.mxu0 0.0
    %1080 = vmatprep.subr.mxu0 0.0
    %1081 = vmatpush1.msra.mxu0 0.0
    %1082 = vmatprep.subr.mxu0 0.0
    %1083 = vmatpush1.msra.mxu0 0.0
    %1084 = vmatprep.subr.mxu0 0.0
    %1085 = vmatpush1.msra.mxu0 0.0
    %1086 = vmatprep.subr.mxu0 0.0
    %1087 = vmatpush1.msra.mxu0 0.0
    %1088 = vmatprep.subr.mxu0 0.0
    %1089 = vmatpush1.msra.mxu0 0.0
    %1090 = vmatprep.subr.mxu0 0.0
    %1091 = vmatpush1.msra.mxu0 0.0
    %1092 = vmatprep.subr.mxu0 0.0
    %1093 = vmatpush1.msra.mxu0 0.0
    %1094 = vmatprep.subr.mxu0 0.0
    %1095 = vmatpush1.msra.mxu0 0.0
    %1096 = vmatprep.subr.mxu0 0.0
    %1097 = vmatpush1.msra.mxu0 %v67
    %1098 = vmatprep.subr.mxu0 0.0
    %1099 = vmatpush1.msra.mxu0 %v66
    %1100 = vmatprep.subr.mxu0 0.0
    %1101 = vmatpush1.msra.mxu0 %v65
    %1102 = vmatprep.subr.mxu0 0.0
    %1103 = vmatpush1.msra.mxu0 %v64
    %1104 = vmatprep.subr.mxu0 0.0
    %1105 = vmatpush2.msra.mxu0 0.0
    %1106 = vmatprep.subr.mxu0 0.0
    %1107 = vmatpush2.msra.mxu0 0.0
    %1108 = vmatprep.subr.mxu0 0.0
    %1109 = vmatpush2.msra.mxu0 0.0
    %1110 = vmatprep.subr.mxu0 0.0
    %1111 = vmatpush2.msra.mxu0 0.0
    %1112 = vmatprep.subr.mxu0 0.0
    %1113 = vmatpush2.msra.mxu0 0.0
    %1114 = vmatprep.subr.mxu0 0.0
    %1115 = vmatpush2.msra.mxu0 0.0
    %1116 = vmatprep.subr.mxu0 0.0
    %1117 = vmatpush2.msra.mxu0 0.0
    %1118 = vmatprep.subr.mxu0 0.0
    %1119 = vmatpush2.msra.mxu0 0.0
    %1120 = vmatprep.subr.mxu0 0.0
    %1121 = vmatpush2.msra.mxu0 0.0
    %1122 = vmatprep.subr.mxu0 0.0
    %1123 = vmatpush2.msra.mxu0 0.0
    %1124 = vmatprep.subr.mxu0 0.0
    %1125 = vmatpush2.msra.mxu0 0.0
    %1126 = vmatprep.subr.mxu0 0.0
    %1127 = vmatpush2.msra.mxu0 0.0
    %1128 = vmatprep.subr.mxu0 0.0
    %1129 = vmatpush2.msra.mxu0 0.0
    %1130 = vmatprep.subr.mxu0 0.0
    %1131 = vmatpush2.msra.mxu0 0.0
    %1132 = vmatprep.subr.mxu0 0.0
    %1133 = vmatpush2.msra.mxu0 0.0
    %1134 = vmatprep.subr.mxu0 0.0
    %1135 = vmatpush2.msra.mxu0 0.0
    %1136 = vmatprep.mubr.f32.mxu0 0.0
    %1137 = vmatmul.mubr.f32.gmra.mxu0 %v1070
    %v1138 = vpop.f32.mrf.mxu0
    %v1139 = vadd.f32 %v197, %v1138
    %v1140 = vpop.f32.mrf.mxu0
    %1141 = vdwg.mxu0
    %v1142 = vsel %vm77, %v961, 0
    %1144 = vmatprep.subr.mxu0 0.0
    %1145 = vmatpush1.msra.mxu0 0.0
    %1146 = vmatprep.subr.mxu0 0.0
    %1147 = vmatpush1.msra.mxu0 0.0
    %1148 = vmatprep.subr.mxu0 0.0
    %1149 = vmatpush1.msra.mxu0 0.0
    %1150 = vmatprep.subr.mxu0 0.0
    %1151 = vmatpush1.msra.mxu0 0.0
    %1152 = vmatprep.subr.mxu0 0.0
    %1153 = vmatpush1.msra.mxu0 0.0
    %1154 = vmatprep.subr.mxu0 0.0
    %1155 = vmatpush1.msra.mxu0 0.0
    %1156 = vmatprep.subr.mxu0 0.0
    %1157 = vmatpush1.msra.mxu0 0.0
    %1158 = vmatprep.subr.mxu0 0.0
    %1159 = vmatpush1.msra.mxu0 0.0
    %1160 = vmatprep.subr.mxu0 0.0
    %1161 = vmatpush1.msra.mxu0 0.0
    %1162 = vmatprep.subr.mxu0 0.0
    %1163 = vmatpush1.msra.mxu0 0.0
    %1164 = vmatprep.subr.mxu0 0.0
    %1165 = vmatpush1.msra.mxu0 0.0
    %1166 = vmatprep.subr.mxu0 0.0
    %1167 = vmatpush1.msra.mxu0 0.0
    %1168 = vmatprep.subr.mxu0 0.0
    %1169 = vmatpush1.msra.mxu0 %v72
    %1170 = vmatprep.subr.mxu0 0.0
    %1171 = vmatpush1.msra.mxu0 %v71
    %1172 = vmatprep.subr.mxu0 0.0
    %1173 = vmatpush1.msra.mxu0 %v70
    %1174 = vmatprep.subr.mxu0 0.0
    %1175 = vmatpush1.msra.mxu0 %v69
    %1176 = vmatprep.subr.mxu0 0.0
    %1177 = vmatpush2.msra.mxu0 0.0
    %1178 = vmatprep.subr.mxu0 0.0
    %1179 = vmatpush2.msra.mxu0 0.0
    %1180 = vmatprep.subr.mxu0 0.0
    %1181 = vmatpush2.msra.mxu0 0.0
    %1182 = vmatprep.subr.mxu0 0.0
    %1183 = vmatpush2.msra.mxu0 0.0
    %1184 = vmatprep.subr.mxu0 0.0
    %1185 = vmatpush2.msra.mxu0 0.0
    %1186 = vmatprep.subr.mxu0 0.0
    %1187 = vmatpush2.msra.mxu0 0.0
    %1188 = vmatprep.subr.mxu0 0.0
    %1189 = vmatpush2.msra.mxu0 0.0
    %1190 = vmatprep.subr.mxu0 0.0
    %1191 = vmatpush2.msra.mxu0 0.0
    %1192 = vmatprep.subr.mxu0 0.0
    %1193 = vmatpush2.msra.mxu0 0.0
    %1194 = vmatprep.subr.mxu0 0.0
    %1195 = vmatpush2.msra.mxu0 0.0
    %1196 = vmatprep.subr.mxu0 0.0
    %1197 = vmatpush2.msra.mxu0 0.0
    %1198 = vmatprep.subr.mxu0 0.0
    %1199 = vmatpush2.msra.mxu0 0.0
    %1200 = vmatprep.subr.mxu0 0.0
    %1201 = vmatpush2.msra.mxu0 0.0
    %1202 = vmatprep.subr.mxu0 0.0
    %1203 = vmatpush2.msra.mxu0 0.0
    %1204 = vmatprep.subr.mxu0 0.0
    %1205 = vmatpush2.msra.mxu0 0.0
    %1206 = vmatprep.subr.mxu0 0.0
    %1207 = vmatpush2.msra.mxu0 0.0
    %1208 = vmatprep.mubr.f32.mxu0 0.0
    %1209 = vmatmul.mubr.f32.gmra.mxu0 %v1142
    %v1210 = vpop.f32.mrf.mxu0
    %v1211 = vadd.f32 0.0, %v1210
    %v1212 = vpop.f32.mrf.mxu0
    %1213 = vdwg.mxu0
    %v1214 = vadd.f32 %v1139, %v1211
    %v1215 = vxor.u32 %v1214, 2147483648
    %v1216 = vmul.f32 %v1215, 1.442695
    %v1217 = vpow.pop %v1216
    %v1218 = vadd.f32 %v1217, 1.0
    %v1219 = vrcp.pop %v1218
    %v1220 = vmul.f32 1.0, %v1219
    %v1221 = vadd.f32 %v1211, %v360
    %1223 = vrot.lane.b32.xlu0 %v1221, 64
    %v1224 = vpop.permute.xlu0 %1223
    %v1226 = vmul.f32 %v1220, %v1224
    %1228 = vrot.lane.b32.xlu0 %v1226, 64
    %v1229 = vpop.permute.xlu0 %1228
    %v1231 = vadd.f32 %v1139, %v1229
    %v1232 = vtanh.pop %v1231
    %v1233 = vsub.f32 %v958, %v1232
    %1235 = vrot.lane.b32.xlu0 %v1233, 96
    %v1236 = vpop.permute.xlu0 %1235
    %v1238 = vmul.f32 %v1220, %v1236
    %1240 = vrot.lane.b32.xlu0 %v1238, 32
    %v1241 = vpop.permute.xlu0 %1240
    %v1243 = vadd.f32 %v1232, %v1241
    %1245 = vrot.lane.b32.xlu0 %v1243, 64
    %v1246 = vpop.permute.xlu0 %1245
    %s1248 = scalar_lea.vmem %s7, 6
    %1249 = vst.msk [vmem:[%s1248] sm:$0x3] %vm393, %v1246
    %s1250 = scalar_lea.vmem %s0, 8
    %v1251 = vld [vmem:[%s1250] sm:$0x3]
    %1252 = vmatprep.subr.mxu0 0.0
    %1253 = vmatpush1.msra.mxu0 0.0
    %1254 = vmatprep.subr.mxu0 0.0
    %1255 = vmatpush1.msra.mxu0 0.0
    %1256 = vmatprep.subr.mxu0 0.0
    %1257 = vmatpush1.msra.mxu0 0.0
    %1258 = vmatprep.subr.mxu0 0.0
    %1259 = vmatpush1.msra.mxu0 0.0
    %1260 = vmatprep.subr.mxu0 0.0
    %1261 = vmatpush1.msra.mxu0 0.0
    %1262 = vmatprep.subr.mxu0 0.0
    %1263 = vmatpush1.msra.mxu0 0.0
    %1264 = vmatprep.subr.mxu0 0.0
    %1265 = vmatpush1.msra.mxu0 0.0
    %1266 = vmatprep.subr.mxu0 0.0
    %1267 = vmatpush1.msra.mxu0 0.0
    %1268 = vmatprep.subr.mxu0 0.0
    %1269 = vmatpush1.msra.mxu0 0.0
    %1270 = vmatprep.subr.mxu0 0.0
    %1271 = vmatpush1.msra.mxu0 0.0
    %1272 = vmatprep.subr.mxu0 0.0
    %1273 = vmatpush1.msra.mxu0 0.0
    %1274 = vmatprep.subr.mxu0 0.0
    %1275 = vmatpush1.msra.mxu0 0.0
    %1276 = vmatprep.subr.mxu0 0.0
    %1277 = vmatpush1.msra.mxu0 %v62
    %1278 = vmatprep.subr.mxu0 0.0
    %1279 = vmatpush1.msra.mxu0 %v61
    %1280 = vmatprep.subr.mxu0 0.0
    %1281 = vmatpush1.msra.mxu0 %v60
    %1282 = vmatprep.subr.mxu0 0.0
    %1283 = vmatpush1.msra.mxu0 %v59
    %1284 = vmatprep.subr.mxu0 0.0
    %1285 = vmatpush2.msra.mxu0 0.0
    %1286 = vmatprep.subr.mxu0 0.0
    %1287 = vmatpush2.msra.mxu0 0.0
    %1288 = vmatprep.subr.mxu0 0.0
    %1289 = vmatpush2.msra.mxu0 0.0
    %1290 = vmatprep.subr.mxu0 0.0
    %1291 = vmatpush2.msra.mxu0 0.0
    %1292 = vmatprep.subr.mxu0 0.0
    %1293 = vmatpush2.msra.mxu0 0.0
    %1294 = vmatprep.subr.mxu0 0.0
    %1295 = vmatpush2.msra.mxu0 0.0
    %1296 = vmatprep.subr.mxu0 0.0
    %1297 = vmatpush2.msra.mxu0 0.0
    %1298 = vmatprep.subr.mxu0 0.0
    %1299 = vmatpush2.msra.mxu0 0.0
    %1300 = vmatprep.subr.mxu0 0.0
    %1301 = vmatpush2.msra.mxu0 0.0
    %1302 = vmatprep.subr.mxu0 0.0
    %1303 = vmatpush2.msra.mxu0 0.0
    %1304 = vmatprep.subr.mxu0 0.0
    %1305 = vmatpush2.msra.mxu0 0.0
    %1306 = vmatprep.subr.mxu0 0.0
    %1307 = vmatpush2.msra.mxu0 0.0
    %1308 = vmatprep.subr.mxu0 0.0
    %1309 = vmatpush2.msra.mxu0 0.0
    %1310 = vmatprep.subr.mxu0 0.0
    %1311 = vmatpush2.msra.mxu0 0.0
    %1312 = vmatprep.subr.mxu0 0.0
    %1313 = vmatpush2.msra.mxu0 0.0
    %1314 = vmatprep.subr.mxu0 0.0
    %1315 = vmatpush2.msra.mxu0 0.0
    %1316 = vmatprep.mubr.f32.mxu0 0.0
    %1317 = vmatmul.mubr.f32.gmra.mxu0 %v1070
    %v1318 = vpop.f32.mrf.mxu0
    %v1319 = vadd.f32 0.0, %v1318
    %v1320 = vpop.f32.mrf.mxu0
    %1321 = vdwg.mxu0
    %v1322 = vadd.f32 %v1251, %v1319
    %v1323 = vxor.u32 %v1322, 2147483648
    %v1324 = vmul.f32 %v1323, 1.442695
    %v1325 = vpow.pop %v1324
    %v1326 = vadd.f32 %v1325, 1.0
    %v1327 = vrcp.pop %v1326
    %v1328 = vmul.f32 1.0, %v1327
    %v1329 = vadd.f32 %v1319, %v164
    %1331 = vrot.lane.b32.xlu0 %v1329, 64
    %v1332 = vpop.permute.xlu0 %1331
    %v1334 = vmul.f32 %v1328, %v1332
    %1336 = vrot.lane.b32.xlu0 %v1334, 64
    %v1337 = vpop.permute.xlu0 %1336
    %v1339 = vadd.f32 %v1251, %v1337
    %v1340 = vtanh.pop %v1339
    %v1341 = vsub.f32 %v1066, %v1340
    %1343 = vrot.lane.b32.xlu0 %v1341, 96
    %v1344 = vpop.permute.xlu0 %1343
    %v1346 = vmul.f32 %v1328, %v1344
    %1348 = vrot.lane.b32.xlu0 %v1346, 32
    %v1349 = vpop.permute.xlu0 %1348
    %v1351 = vadd.f32 %v1340, %v1349
    %1353 = vrot.lane.b32.xlu0 %v1351, 64
    %v1354 = vpop.permute.xlu0 %1353
    %v1355 = vsel %vm77, %v1354, 0
    %1357 = vmatprep.subr.mxu0 0.0
    %1358 = vmatpush1.msra.mxu0 0.0
    %1359 = vmatprep.subr.mxu0 0.0
    %1360 = vmatpush1.msra.mxu0 0.0
    %1361 = vmatprep.subr.mxu0 0.0
    %1362 = vmatpush1.msra.mxu0 0.0
    %1363 = vmatprep.subr.mxu0 0.0
    %1364 = vmatpush1.msra.mxu0 0.0
    %1365 = vmatprep.subr.mxu0 0.0
    %1366 = vmatpush1.msra.mxu0 0.0
    %1367 = vmatprep.subr.mxu0 0.0
    %1368 = vmatpush1.msra.mxu0 0.0
    %1369 = vmatprep.subr.mxu0 0.0
    %1370 = vmatpush1.msra.mxu0 0.0
    %1371 = vmatprep.subr.mxu0 0.0
    %1372 = vmatpush1.msra.mxu0 0.0
    %1373 = vmatprep.subr.mxu0 0.0
    %1374 = vmatpush1.msra.mxu0 0.0
    %1375 = vmatprep.subr.mxu0 0.0
    %1376 = vmatpush1.msra.mxu0 0.0
    %1377 = vmatprep.subr.mxu0 0.0
    %1378 = vmatpush1.msra.mxu0 0.0
    %1379 = vmatprep.subr.mxu0 0.0
    %1380 = vmatpush1.msra.mxu0 0.0
    %1381 = vmatprep.subr.mxu0 0.0
    %1382 = vmatpush1.msra.mxu0 %v67
    %1383 = vmatprep.subr.mxu0 0.0
    %1384 = vmatpush1.msra.mxu0 %v66
    %1385 = vmatprep.subr.mxu0 0.0
    %1386 = vmatpush1.msra.mxu0 %v65
    %1387 = vmatprep.subr.mxu0 0.0
    %1388 = vmatpush1.msra.mxu0 %v64
    %1389 = vmatprep.subr.mxu0 0.0
    %1390 = vmatpush2.msra.mxu0 0.0
    %1391 = vmatprep.subr.mxu0 0.0
    %1392 = vmatpush2.msra.mxu0 0.0
    %1393 = vmatprep.subr.mxu0 0.0
    %1394 = vmatpush2.msra.mxu0 0.0
    %1395 = vmatprep.subr.mxu0 0.0
    %1396 = vmatpush2.msra.mxu0 0.0
    %1397 = vmatprep.subr.mxu0 0.0
    %1398 = vmatpush2.msra.mxu0 0.0
    %1399 = vmatprep.subr.mxu0 0.0
    %1400 = vmatpush2.msra.mxu0 0.0
    %1401 = vmatprep.subr.mxu0 0.0
    %1402 = vmatpush2.msra.mxu0 0.0
    %1403 = vmatprep.subr.mxu0 0.0
    %1404 = vmatpush2.msra.mxu0 0.0
    %1405 = vmatprep.subr.mxu0 0.0
    %1406 = vmatpush2.msra.mxu0 0.0
    %1407 = vmatprep.subr.mxu0 0.0
    %1408 = vmatpush2.msra.mxu0 0.0
    %1409 = vmatprep.subr.mxu0 0.0
    %1410 = vmatpush2.msra.mxu0 0.0
    %1411 = vmatprep.subr.mxu0 0.0
    %1412 = vmatpush2.msra.mxu0 0.0
    %1413 = vmatprep.subr.mxu0 0.0
    %1414 = vmatpush2.msra.mxu0 0.0
    %1415 = vmatprep.subr.mxu0 0.0
    %1416 = vmatpush2.msra.mxu0 0.0
    %1417 = vmatprep.subr.mxu0 0.0
    %1418 = vmatpush2.msra.mxu0 0.0
    %1419 = vmatprep.subr.mxu0 0.0
    %1420 = vmatpush2.msra.mxu0 0.0
    %1421 = vmatprep.mubr.f32.mxu0 0.0
    %1422 = vmatmul.mubr.f32.gmra.mxu0 %v1355
    %v1423 = vpop.f32.mrf.mxu0
    %v1424 = vadd.f32 %v197, %v1423
    %v1425 = vpop.f32.mrf.mxu0
    %1426 = vdwg.mxu0
    %v1427 = vsel %vm77, %v1246, 0
    %1429 = vmatprep.subr.mxu0 0.0
    %1430 = vmatpush1.msra.mxu0 0.0
    %1431 = vmatprep.subr.mxu0 0.0
    %1432 = vmatpush1.msra.mxu0 0.0
    %1433 = vmatprep.subr.mxu0 0.0
    %1434 = vmatpush1.msra.mxu0 0.0
    %1435 = vmatprep.subr.mxu0 0.0
    %1436 = vmatpush1.msra.mxu0 0.0
    %1437 = vmatprep.subr.mxu0 0.0
    %1438 = vmatpush1.msra.mxu0 0.0
    %1439 = vmatprep.subr.mxu0 0.0
    %1440 = vmatpush1.msra.mxu0 0.0
    %1441 = vmatprep.subr.mxu0 0.0
    %1442 = vmatpush1.msra.mxu0 0.0
    %1443 = vmatprep.subr.mxu0 0.0
    %1444 = vmatpush1.msra.mxu0 0.0
    %1445 = vmatprep.subr.mxu0 0.0
    %1446 = vmatpush1.msra.mxu0 0.0
    %1447 = vmatprep.subr.mxu0 0.0
    %1448 = vmatpush1.msra.mxu0 0.0
    %1449 = vmatprep.subr.mxu0 0.0
    %1450 = vmatpush1.msra.mxu0 0.0
    %1451 = vmatprep.subr.mxu0 0.0
    %1452 = vmatpush1.msra.mxu0 0.0
    %1453 = vmatprep.subr.mxu0 0.0
    %1454 = vmatpush1.msra.mxu0 %v72
    %1455 = vmatprep.subr.mxu0 0.0
    %1456 = vmatpush1.msra.mxu0 %v71
    %1457 = vmatprep.subr.mxu0 0.0
    %1458 = vmatpush1.msra.mxu0 %v70
    %1459 = vmatprep.subr.mxu0 0.0
    %1460 = vmatpush1.msra.mxu0 %v69
    %1461 = vmatprep.subr.mxu0 0.0
    %1462 = vmatpush2.msra.mxu0 0.0
    %1463 = vmatprep.subr.mxu0 0.0
    %1464 = vmatpush2.msra.mxu0 0.0
    %1465 = vmatprep.subr.mxu0 0.0
    %1466 = vmatpush2.msra.mxu0 0.0
    %1467 = vmatprep.subr.mxu0 0.0
    %1468 = vmatpush2.msra.mxu0 0.0
    %1469 = vmatprep.subr.mxu0 0.0
    %1470 = vmatpush2.msra.mxu0 0.0
    %1471 = vmatprep.subr.mxu0 0.0
    %1472 = vmatpush2.msra.mxu0 0.0
    %1473 = vmatprep.subr.mxu0 0.0
    %1474 = vmatpush2.msra.mxu0 0.0
    %1475 = vmatprep.subr.mxu0 0.0
    %1476 = vmatpush2.msra.mxu0 0.0
    %1477 = vmatprep.subr.mxu0 0.0
    %1478 = vmatpush2.msra.mxu0 0.0
    %1479 = vmatprep.subr.mxu0 0.0
    %1480 = vmatpush2.msra.mxu0 0.0
    %1481 = vmatprep.subr.mxu0 0.0
    %1482 = vmatpush2.msra.mxu0 0.0
    %1483 = vmatprep.subr.mxu0 0.0
    %1484 = vmatpush2.msra.mxu0 0.0
    %1485 = vmatprep.subr.mxu0 0.0
    %1486 = vmatpush2.msra.mxu0 0.0
    %1487 = vmatprep.subr.mxu0 0.0
    %1488 = vmatpush2.msra.mxu0 0.0
    %1489 = vmatprep.subr.mxu0 0.0
    %1490 = vmatpush2.msra.mxu0 0.0
    %1491 = vmatprep.subr.mxu0 0.0
    %1492 = vmatpush2.msra.mxu0 0.0
    %1493 = vmatprep.mubr.f32.mxu0 0.0
    %1494 = vmatmul.mubr.f32.gmra.mxu0 %v1427
    %v1495 = vpop.f32.mrf.mxu0
    %v1496 = vadd.f32 0.0, %v1495
    %v1497 = vpop.f32.mrf.mxu0
    %1498 = vdwg.mxu0
    %v1499 = vadd.f32 %v1424, %v1496
    %v1500 = vxor.u32 %v1499, 2147483648
    %v1501 = vmul.f32 %v1500, 1.442695
    %v1502 = vpow.pop %v1501
    %v1503 = vadd.f32 %v1502, 1.0
    %v1504 = vrcp.pop %v1503
    %v1505 = vmul.f32 1.0, %v1504
    %v1506 = vadd.f32 %v1496, %v360
    %1508 = vrot.lane.b32.xlu0 %v1506, 64
    %v1509 = vpop.permute.xlu0 %1508
    %v1511 = vmul.f32 %v1505, %v1509
    %1513 = vrot.lane.b32.xlu0 %v1511, 64
    %v1514 = vpop.permute.xlu0 %1513
    %v1516 = vadd.f32 %v1424, %v1514
    %v1517 = vtanh.pop %v1516
    %v1518 = vsub.f32 %v1243, %v1517
    %1520 = vrot.lane.b32.xlu0 %v1518, 96
    %v1521 = vpop.permute.xlu0 %1520
    %v1523 = vmul.f32 %v1505, %v1521
    %1525 = vrot.lane.b32.xlu0 %v1523, 32
    %v1526 = vpop.permute.xlu0 %1525
    %v1528 = vadd.f32 %v1517, %v1526
    %1530 = vrot.lane.b32.xlu0 %v1528, 64
    %v1531 = vpop.permute.xlu0 %1530
    %s1533 = scalar_lea.vmem %s7, 8
    %1534 = vst.msk [vmem:[%s1533] sm:$0x3] %vm393, %v1531
    %s1535 = scalar_lea.vmem %s0, 10
    %v1536 = vld [vmem:[%s1535] sm:$0x3]
    %1537 = vmatprep.subr.mxu0 0.0
    %1538 = vmatpush1.msra.mxu0 0.0
    %1539 = vmatprep.subr.mxu0 0.0
    %1540 = vmatpush1.msra.mxu0 0.0
    %1541 = vmatprep.subr.mxu0 0.0
    %1542 = vmatpush1.msra.mxu0 0.0
    %1543 = vmatprep.subr.mxu0 0.0
    %1544 = vmatpush1.msra.mxu0 0.0
    %1545 = vmatprep.subr.mxu0 0.0
    %1546 = vmatpush1.msra.mxu0 0.0
    %1547 = vmatprep.subr.mxu0 0.0
    %1548 = vmatpush1.msra.mxu0 0.0
    %1549 = vmatprep.subr.mxu0 0.0
    %1550 = vmatpush1.msra.mxu0 0.0
    %1551 = vmatprep.subr.mxu0 0.0
    %1552 = vmatpush1.msra.mxu0 0.0
    %1553 = vmatprep.subr.mxu0 0.0
    %1554 = vmatpush1.msra.mxu0 0.0
    %1555 = vmatprep.subr.mxu0 0.0
    %1556 = vmatpush1.msra.mxu0 0.0
    %1557 = vmatprep.subr.mxu0 0.0
    %1558 = vmatpush1.msra.mxu0 0.0
    %1559 = vmatprep.subr.mxu0 0.0
    %1560 = vmatpush1.msra.mxu0 0.0
    %1561 = vmatprep.subr.mxu0 0.0
    %1562 = vmatpush1.msra.mxu0 %v62
    %1563 = vmatprep.subr.mxu0 0.0
    %1564 = vmatpush1.msra.mxu0 %v61
    %1565 = vmatprep.subr.mxu0 0.0
    %1566 = vmatpush1.msra.mxu0 %v60
    %1567 = vmatprep.subr.mxu0 0.0
    %1568 = vmatpush1.msra.mxu0 %v59
    %1569 = vmatprep.subr.mxu0 0.0
    %1570 = vmatpush2.msra.mxu0 0.0
    %1571 = vmatprep.subr.mxu0 0.0
    %1572 = vmatpush2.msra.mxu0 0.0
    %1573 = vmatprep.subr.mxu0 0.0
    %1574 = vmatpush2.msra.mxu0 0.0
    %1575 = vmatprep.subr.mxu0 0.0
    %1576 = vmatpush2.msra.mxu0 0.0
    %1577 = vmatprep.subr.mxu0 0.0
    %1578 = vmatpush2.msra.mxu0 0.0
    %1579 = vmatprep.subr.mxu0 0.0
    %1580 = vmatpush2.msra.mxu0 0.0
    %1581 = vmatprep.subr.mxu0 0.0
    %1582 = vmatpush2.msra.mxu0 0.0
    %1583 = vmatprep.subr.mxu0 0.0
    %1584 = vmatpush2.msra.mxu0 0.0
    %1585 = vmatprep.subr.mxu0 0.0
    %1586 = vmatpush2.msra.mxu0 0.0
    %1587 = vmatprep.subr.mxu0 0.0
    %1588 = vmatpush2.msra.mxu0 0.0
    %1589 = vmatprep.subr.mxu0 0.0
    %1590 = vmatpush2.msra.mxu0 0.0
    %1591 = vmatprep.subr.mxu0 0.0
    %1592 = vmatpush2.msra.mxu0 0.0
    %1593 = vmatprep.subr.mxu0 0.0
    %1594 = vmatpush2.msra.mxu0 0.0
    %1595 = vmatprep.subr.mxu0 0.0
    %1596 = vmatpush2.msra.mxu0 0.0
    %1597 = vmatprep.subr.mxu0 0.0
    %1598 = vmatpush2.msra.mxu0 0.0
    %1599 = vmatprep.subr.mxu0 0.0
    %1600 = vmatpush2.msra.mxu0 0.0
    %1601 = vmatprep.mubr.f32.mxu0 0.0
    %1602 = vmatmul.mubr.f32.gmra.mxu0 %v1355
    %v1603 = vpop.f32.mrf.mxu0
    %v1604 = vadd.f32 0.0, %v1603
    %v1605 = vpop.f32.mrf.mxu0
    %1606 = vdwg.mxu0
    %v1607 = vadd.f32 %v1536, %v1604
    %v1608 = vxor.u32 %v1607, 2147483648
    %v1609 = vmul.f32 %v1608, 1.442695
    %v1610 = vpow.pop %v1609
    %v1611 = vadd.f32 %v1610, 1.0
    %v1612 = vrcp.pop %v1611
    %v1613 = vmul.f32 1.0, %v1612
    %v1614 = vadd.f32 %v1604, %v164
    %1616 = vrot.lane.b32.xlu0 %v1614, 64
    %v1617 = vpop.permute.xlu0 %1616
    %v1619 = vmul.f32 %v1613, %v1617
    %1621 = vrot.lane.b32.xlu0 %v1619, 64
    %v1622 = vpop.permute.xlu0 %1621
    %v1624 = vadd.f32 %v1536, %v1622
    %v1625 = vtanh.pop %v1624
    %v1626 = vsub.f32 %v1351, %v1625
    %1628 = vrot.lane.b32.xlu0 %v1626, 96
    %v1629 = vpop.permute.xlu0 %1628
    %v1631 = vmul.f32 %v1613, %v1629
    %1633 = vrot.lane.b32.xlu0 %v1631, 32
    %v1634 = vpop.permute.xlu0 %1633
    %v1636 = vadd.f32 %v1625, %v1634
    %1638 = vrot.lane.b32.xlu0 %v1636, 64
    %v1639 = vpop.permute.xlu0 %1638
    %v1640 = vsel %vm77, %v1639, 0
    %1642 = vmatprep.subr.mxu0 0.0
    %1643 = vmatpush1.msra.mxu0 0.0
    %1644 = vmatprep.subr.mxu0 0.0
    %1645 = vmatpush1.msra.mxu0 0.0
    %1646 = vmatprep.subr.mxu0 0.0
    %1647 = vmatpush1.msra.mxu0 0.0
    %1648 = vmatprep.subr.mxu0 0.0
    %1649 = vmatpush1.msra.mxu0 0.0
    %1650 = vmatprep.subr.mxu0 0.0
    %1651 = vmatpush1.msra.mxu0 0.0
    %1652 = vmatprep.subr.mxu0 0.0
    %1653 = vmatpush1.msra.mxu0 0.0
    %1654 = vmatprep.subr.mxu0 0.0
    %1655 = vmatpush1.msra.mxu0 0.0
    %1656 = vmatprep.subr.mxu0 0.0
    %1657 = vmatpush1.msra.mxu0 0.0
    %1658 = vmatprep.subr.mxu0 0.0
    %1659 = vmatpush1.msra.mxu0 0.0
    %1660 = vmatprep.subr.mxu0 0.0
    %1661 = vmatpush1.msra.mxu0 0.0
    %1662 = vmatprep.subr.mxu0 0.0
    %1663 = vmatpush1.msra.mxu0 0.0
    %1664 = vmatprep.subr.mxu0 0.0
    %1665 = vmatpush1.msra.mxu0 0.0
    %1666 = vmatprep.subr.mxu0 0.0
    %1667 = vmatpush1.msra.mxu0 %v67
    %1668 = vmatprep.subr.mxu0 0.0
    %1669 = vmatpush1.msra.mxu0 %v66
    %1670 = vmatprep.subr.mxu0 0.0
    %1671 = vmatpush1.msra.mxu0 %v65
    %1672 = vmatprep.subr.mxu0 0.0
    %1673 = vmatpush1.msra.mxu0 %v64
    %1674 = vmatprep.subr.mxu0 0.0
    %1675 = vmatpush2.msra.mxu0 0.0
    %1676 = vmatprep.subr.mxu0 0.0
    %1677 = vmatpush2.msra.mxu0 0.0
    %1678 = vmatprep.subr.mxu0 0.0
    %1679 = vmatpush2.msra.mxu0 0.0
    %1680 = vmatprep.subr.mxu0 0.0
    %1681 = vmatpush2.msra.mxu0 0.0
    %1682 = vmatprep.subr.mxu0 0.0
    %1683 = vmatpush2.msra.mxu0 0.0
    %1684 = vmatprep.subr.mxu0 0.0
    %1685 = vmatpush2.msra.mxu0 0.0
    %1686 = vmatprep.subr.mxu0 0.0
    %1687 = vmatpush2.msra.mxu0 0.0
    %1688 = vmatprep.subr.mxu0 0.0
    %1689 = vmatpush2.msra.mxu0 0.0
    %1690 = vmatprep.subr.mxu0 0.0
    %1691 = vmatpush2.msra.mxu0 0.0
    %1692 = vmatprep.subr.mxu0 0.0
    %1693 = vmatpush2.msra.mxu0 0.0
    %1694 = vmatprep.subr.mxu0 0.0
    %1695 = vmatpush2.msra.mxu0 0.0
    %1696 = vmatprep.subr.mxu0 0.0
    %1697 = vmatpush2.msra.mxu0 0.0
    %1698 = vmatprep.subr.mxu0 0.0
    %1699 = vmatpush2.msra.mxu0 0.0
    %1700 = vmatprep.subr.mxu0 0.0
    %1701 = vmatpush2.msra.mxu0 0.0
    %1702 = vmatprep.subr.mxu0 0.0
    %1703 = vmatpush2.msra.mxu0 0.0
    %1704 = vmatprep.subr.mxu0 0.0
    %1705 = vmatpush2.msra.mxu0 0.0
    %1706 = vmatprep.mubr.f32.mxu0 0.0
    %1707 = vmatmul.mubr.f32.gmra.mxu0 %v1640
    %v1708 = vpop.f32.mrf.mxu0
    %v1709 = vadd.f32 %v197, %v1708
    %v1710 = vpop.f32.mrf.mxu0
    %1711 = vdwg.mxu0
    %v1712 = vsel %vm77, %v1531, 0
    %1714 = vmatprep.subr.mxu0 0.0
    %1715 = vmatpush1.msra.mxu0 0.0
    %1716 = vmatprep.subr.mxu0 0.0
    %1717 = vmatpush1.msra.mxu0 0.0
    %1718 = vmatprep.subr.mxu0 0.0
    %1719 = vmatpush1.msra.mxu0 0.0
    %1720 = vmatprep.subr.mxu0 0.0
    %1721 = vmatpush1.msra.mxu0 0.0
    %1722 = vmatprep.subr.mxu0 0.0
    %1723 = vmatpush1.msra.mxu0 0.0
    %1724 = vmatprep.subr.mxu0 0.0
    %1725 = vmatpush1.msra.mxu0 0.0
    %1726 = vmatprep.subr.mxu0 0.0
    %1727 = vmatpush1.msra.mxu0 0.0
    %1728 = vmatprep.subr.mxu0 0.0
    %1729 = vmatpush1.msra.mxu0 0.0
    %1730 = vmatprep.subr.mxu0 0.0
    %1731 = vmatpush1.msra.mxu0 0.0
    %1732 = vmatprep.subr.mxu0 0.0
    %1733 = vmatpush1.msra.mxu0 0.0
    %1734 = vmatprep.subr.mxu0 0.0
    %1735 = vmatpush1.msra.mxu0 0.0
    %1736 = vmatprep.subr.mxu0 0.0
    %1737 = vmatpush1.msra.mxu0 0.0
    %1738 = vmatprep.subr.mxu0 0.0
    %1739 = vmatpush1.msra.mxu0 %v72
    %1740 = vmatprep.subr.mxu0 0.0
    %1741 = vmatpush1.msra.mxu0 %v71
    %1742 = vmatprep.subr.mxu0 0.0
    %1743 = vmatpush1.msra.mxu0 %v70
    %1744 = vmatprep.subr.mxu0 0.0
    %1745 = vmatpush1.msra.mxu0 %v69
    %1746 = vmatprep.subr.mxu0 0.0
    %1747 = vmatpush2.msra.mxu0 0.0
    %1748 = vmatprep.subr.mxu0 0.0
    %1749 = vmatpush2.msra.mxu0 0.0
    %1750 = vmatprep.subr.mxu0 0.0
    %1751 = vmatpush2.msra.mxu0 0.0
    %1752 = vmatprep.subr.mxu0 0.0
    %1753 = vmatpush2.msra.mxu0 0.0
    %1754 = vmatprep.subr.mxu0 0.0
    %1755 = vmatpush2.msra.mxu0 0.0
    %1756 = vmatprep.subr.mxu0 0.0
    %1757 = vmatpush2.msra.mxu0 0.0
    %1758 = vmatprep.subr.mxu0 0.0
    %1759 = vmatpush2.msra.mxu0 0.0
    %1760 = vmatprep.subr.mxu0 0.0
    %1761 = vmatpush2.msra.mxu0 0.0
    %1762 = vmatprep.subr.mxu0 0.0
    %1763 = vmatpush2.msra.mxu0 0.0
    %1764 = vmatprep.subr.mxu0 0.0
    %1765 = vmatpush2.msra.mxu0 0.0
    %1766 = vmatprep.subr.mxu0 0.0
    %1767 = vmatpush2.msra.mxu0 0.0
    %1768 = vmatprep.subr.mxu0 0.0
    %1769 = vmatpush2.msra.mxu0 0.0
    %1770 = vmatprep.subr.mxu0 0.0
    %1771 = vmatpush2.msra.mxu0 0.0
    %1772 = vmatprep.subr.mxu0 0.0
    %1773 = vmatpush2.msra.mxu0 0.0
    %1774 = vmatprep.subr.mxu0 0.0
    %1775 = vmatpush2.msra.mxu0 0.0
    %1776 = vmatprep.subr.mxu0 0.0
    %1777 = vmatpush2.msra.mxu0 0.0
    %1778 = vmatprep.mubr.f32.mxu0 0.0
    %1779 = vmatmul.mubr.f32.gmra.mxu0 %v1712
    %v1780 = vpop.f32.mrf.mxu0
    %v1781 = vadd.f32 0.0, %v1780
    %v1782 = vpop.f32.mrf.mxu0
    %1783 = vdwg.mxu0
    %v1784 = vadd.f32 %v1709, %v1781
    %v1785 = vxor.u32 %v1784, 2147483648
    %v1786 = vmul.f32 %v1785, 1.442695
    %v1787 = vpow.pop %v1786
    %v1788 = vadd.f32 %v1787, 1.0
    %v1789 = vrcp.pop %v1788
    %v1790 = vmul.f32 1.0, %v1789
    %v1791 = vadd.f32 %v1781, %v360
    %1793 = vrot.lane.b32.xlu0 %v1791, 64
    %v1794 = vpop.permute.xlu0 %1793
    %v1796 = vmul.f32 %v1790, %v1794
    %1798 = vrot.lane.b32.xlu0 %v1796, 64
    %v1799 = vpop.permute.xlu0 %1798
    %v1801 = vadd.f32 %v1709, %v1799
    %v1802 = vtanh.pop %v1801
    %v1803 = vsub.f32 %v1528, %v1802
    %1805 = vrot.lane.b32.xlu0 %v1803, 96
    %v1806 = vpop.permute.xlu0 %1805
    %v1808 = vmul.f32 %v1790, %v1806
    %1810 = vrot.lane.b32.xlu0 %v1808, 32
    %v1811 = vpop.permute.xlu0 %1810
    %v1813 = vadd.f32 %v1802, %v1811
    %1815 = vrot.lane.b32.xlu0 %v1813, 64
    %v1816 = vpop.permute.xlu0 %1815
    %s1818 = scalar_lea.vmem %s7, 10
    %1819 = vst.msk [vmem:[%s1818] sm:$0x3] %vm393, %v1816
    %s1820 = scalar_lea.vmem %s0, 12
    %v1821 = vld [vmem:[%s1820] sm:$0x3]
    %1822 = vmatprep.subr.mxu0 0.0
    %1823 = vmatpush1.msra.mxu0 0.0
    %1824 = vmatprep.subr.mxu0 0.0
    %1825 = vmatpush1.msra.mxu0 0.0
    %1826 = vmatprep.subr.mxu0 0.0
    %1827 = vmatpush1.msra.mxu0 0.0
    %1828 = vmatprep.subr.mxu0 0.0
    %1829 = vmatpush1.msra.mxu0 0.0
    %1830 = vmatprep.subr.mxu0 0.0
    %1831 = vmatpush1.msra.mxu0 0.0
    %1832 = vmatprep.subr.mxu0 0.0
    %1833 = vmatpush1.msra.mxu0 0.0
    %1834 = vmatprep.subr.mxu0 0.0
    %1835 = vmatpush1.msra.mxu0 0.0
    %1836 = vmatprep.subr.mxu0 0.0
    %1837 = vmatpush1.msra.mxu0 0.0
    %1838 = vmatprep.subr.mxu0 0.0
    %1839 = vmatpush1.msra.mxu0 0.0
    %1840 = vmatprep.subr.mxu0 0.0
    %1841 = vmatpush1.msra.mxu0 0.0
    %1842 = vmatprep.subr.mxu0 0.0
    %1843 = vmatpush1.msra.mxu0 0.0
    %1844 = vmatprep.subr.mxu0 0.0
    %1845 = vmatpush1.msra.mxu0 0.0
    %1846 = vmatprep.subr.mxu0 0.0
    %1847 = vmatpush1.msra.mxu0 %v62
    %1848 = vmatprep.subr.mxu0 0.0
    %1849 = vmatpush1.msra.mxu0 %v61
    %1850 = vmatprep.subr.mxu0 0.0
    %1851 = vmatpush1.msra.mxu0 %v60
    %1852 = vmatprep.subr.mxu0 0.0
    %1853 = vmatpush1.msra.mxu0 %v59
    %1854 = vmatprep.subr.mxu0 0.0
    %1855 = vmatpush2.msra.mxu0 0.0
    %1856 = vmatprep.subr.mxu0 0.0
    %1857 = vmatpush2.msra.mxu0 0.0
    %1858 = vmatprep.subr.mxu0 0.0
    %1859 = vmatpush2.msra.mxu0 0.0
    %1860 = vmatprep.subr.mxu0 0.0
    %1861 = vmatpush2.msra.mxu0 0.0
    %1862 = vmatprep.subr.mxu0 0.0
    %1863 = vmatpush2.msra.mxu0 0.0
    %1864 = vmatprep.subr.mxu0 0.0
    %1865 = vmatpush2.msra.mxu0 0.0
    %1866 = vmatprep.subr.mxu0 0.0
    %1867 = vmatpush2.msra.mxu0 0.0
    %1868 = vmatprep.subr.mxu0 0.0
    %1869 = vmatpush2.msra.mxu0 0.0
    %1870 = vmatprep.subr.mxu0 0.0
    %1871 = vmatpush2.msra.mxu0 0.0
    %1872 = vmatprep.subr.mxu0 0.0
    %1873 = vmatpush2.msra.mxu0 0.0
    %1874 = vmatprep.subr.mxu0 0.0
    %1875 = vmatpush2.msra.mxu0 0.0
    %1876 = vmatprep.subr.mxu0 0.0
    %1877 = vmatpush2.msra.mxu0 0.0
    %1878 = vmatprep.subr.mxu0 0.0
    %1879 = vmatpush2.msra.mxu0 0.0
    %1880 = vmatprep.subr.mxu0 0.0
    %1881 = vmatpush2.msra.mxu0 0.0
    %1882 = vmatprep.subr.mxu0 0.0
    %1883 = vmatpush2.msra.mxu0 0.0
    %1884 = vmatprep.subr.mxu0 0.0
    %1885 = vmatpush2.msra.mxu0 0.0
    %1886 = vmatprep.mubr.f32.mxu0 0.0
    %1887 = vmatmul.mubr.f32.gmra.mxu0 %v1640
    %v1888 = vpop.f32.mrf.mxu0
    %v1889 = vadd.f32 0.0, %v1888
    %v1890 = vpop.f32.mrf.mxu0
    %1891 = vdwg.mxu0
    %v1892 = vadd.f32 %v1821, %v1889
    %v1893 = vxor.u32 %v1892, 2147483648
    %v1894 = vmul.f32 %v1893, 1.442695
    %v1895 = vpow.pop %v1894
    %v1896 = vadd.f32 %v1895, 1.0
    %v1897 = vrcp.pop %v1896
    %v1898 = vmul.f32 1.0, %v1897
    %v1899 = vadd.f32 %v1889, %v164
    %1901 = vrot.lane.b32.xlu0 %v1899, 64
    %v1902 = vpop.permute.xlu0 %1901
    %v1904 = vmul.f32 %v1898, %v1902
    %1906 = vrot.lane.b32.xlu0 %v1904, 64
    %v1907 = vpop.permute.xlu0 %1906
    %v1909 = vadd.f32 %v1821, %v1907
    %v1910 = vtanh.pop %v1909
    %v1911 = vsub.f32 %v1636, %v1910
    %1913 = vrot.lane.b32.xlu0 %v1911, 96
    %v1914 = vpop.permute.xlu0 %1913
    %v1916 = vmul.f32 %v1898, %v1914
    %1918 = vrot.lane.b32.xlu0 %v1916, 32
    %v1919 = vpop.permute.xlu0 %1918
    %v1921 = vadd.f32 %v1910, %v1919
    %1923 = vrot.lane.b32.xlu0 %v1921, 64
    %v1924 = vpop.permute.xlu0 %1923
    %v1925 = vsel %vm77, %v1924, 0
    %1927 = vmatprep.subr.mxu0 0.0
    %1928 = vmatpush1.msra.mxu0 0.0
    %1929 = vmatprep.subr.mxu0 0.0
    %1930 = vmatpush1.msra.mxu0 0.0
    %1931 = vmatprep.subr.mxu0 0.0
    %1932 = vmatpush1.msra.mxu0 0.0
    %1933 = vmatprep.subr.mxu0 0.0
    %1934 = vmatpush1.msra.mxu0 0.0
    %1935 = vmatprep.subr.mxu0 0.0
    %1936 = vmatpush1.msra.mxu0 0.0
    %1937 = vmatprep.subr.mxu0 0.0
    %1938 = vmatpush1.msra.mxu0 0.0
    %1939 = vmatprep.subr.mxu0 0.0
    %1940 = vmatpush1.msra.mxu0 0.0
    %1941 = vmatprep.subr.mxu0 0.0
    %1942 = vmatpush1.msra.mxu0 0.0
    %1943 = vmatprep.subr.mxu0 0.0
    %1944 = vmatpush1.msra.mxu0 0.0
    %1945 = vmatprep.subr.mxu0 0.0
    %1946 = vmatpush1.msra.mxu0 0.0
    %1947 = vmatprep.subr.mxu0 0.0
    %1948 = vmatpush1.msra.mxu0 0.0
    %1949 = vmatprep.subr.mxu0 0.0
    %1950 = vmatpush1.msra.mxu0 0.0
    %1951 = vmatprep.subr.mxu0 0.0
    %1952 = vmatpush1.msra.mxu0 %v67
    %1953 = vmatprep.subr.mxu0 0.0
    %1954 = vmatpush1.msra.mxu0 %v66
    %1955 = vmatprep.subr.mxu0 0.0
    %1956 = vmatpush1.msra.mxu0 %v65
    %1957 = vmatprep.subr.mxu0 0.0
    %1958 = vmatpush1.msra.mxu0 %v64
    %1959 = vmatprep.subr.mxu0 0.0
    %1960 = vmatpush2.msra.mxu0 0.0
    %1961 = vmatprep.subr.mxu0 0.0
    %1962 = vmatpush2.msra.mxu0 0.0
    %1963 = vmatprep.subr.mxu0 0.0
    %1964 = vmatpush2.msra.mxu0 0.0
    %1965 = vmatprep.subr.mxu0 0.0
    %1966 = vmatpush2.msra.mxu0 0.0
    %1967 = vmatprep.subr.mxu0 0.0
    %1968 = vmatpush2.msra.mxu0 0.0
    %1969 = vmatprep.subr.mxu0 0.0
    %1970 = vmatpush2.msra.mxu0 0.0
    %1971 = vmatprep.subr.mxu0 0.0
    %1972 = vmatpush2.msra.mxu0 0.0
    %1973 = vmatprep.subr.mxu0 0.0
    %1974 = vmatpush2.msra.mxu0 0.0
    %1975 = vmatprep.subr.mxu0 0.0
    %1976 = vmatpush2.msra.mxu0 0.0
    %1977 = vmatprep.subr.mxu0 0.0
    %1978 = vmatpush2.msra.mxu0 0.0
    %1979 = vmatprep.subr.mxu0 0.0
    %1980 = vmatpush2.msra.mxu0 0.0
    %1981 = vmatprep.subr.mxu0 0.0
    %1982 = vmatpush2.msra.mxu0 0.0
    %1983 = vmatprep.subr.mxu0 0.0
    %1984 = vmatpush2.msra.mxu0 0.0
    %1985 = vmatprep.subr.mxu0 0.0
    %1986 = vmatpush2.msra.mxu0 0.0
    %1987 = vmatprep.subr.mxu0 0.0
    %1988 = vmatpush2.msra.mxu0 0.0
    %1989 = vmatprep.subr.mxu0 0.0
    %1990 = vmatpush2.msra.mxu0 0.0
    %1991 = vmatprep.mubr.f32.mxu0 0.0
    %1992 = vmatmul.mubr.f32.gmra.mxu0 %v1925
    %v1993 = vpop.f32.mrf.mxu0
    %v1994 = vadd.f32 %v197, %v1993
    %v1995 = vpop.f32.mrf.mxu0
    %1996 = vdwg.mxu0
    %v1997 = vsel %vm77, %v1816, 0
    %1999 = vmatprep.subr.mxu0 0.0
    %2000 = vmatpush1.msra.mxu0 0.0
    %2001 = vmatprep.subr.mxu0 0.0
    %2002 = vmatpush1.msra.mxu0 0.0
    %2003 = vmatprep.subr.mxu0 0.0
    %2004 = vmatpush1.msra.mxu0 0.0
    %2005 = vmatprep.subr.mxu0 0.0
    %2006 = vmatpush1.msra.mxu0 0.0
    %2007 = vmatprep.subr.mxu0 0.0
    %2008 = vmatpush1.msra.mxu0 0.0
    %2009 = vmatprep.subr.mxu0 0.0
    %2010 = vmatpush1.msra.mxu0 0.0
    %2011 = vmatprep.subr.mxu0 0.0
    %2012 = vmatpush1.msra.mxu0 0.0
    %2013 = vmatprep.subr.mxu0 0.0
    %2014 = vmatpush1.msra.mxu0 0.0
    %2015 = vmatprep.subr.mxu0 0.0
    %2016 = vmatpush1.msra.mxu0 0.0
    %2017 = vmatprep.subr.mxu0 0.0
    %2018 = vmatpush1.msra.mxu0 0.0
    %2019 = vmatprep.subr.mxu0 0.0
    %2020 = vmatpush1.msra.mxu0 0.0
    %2021 = vmatprep.subr.mxu0 0.0
    %2022 = vmatpush1.msra.mxu0 0.0
    %2023 = vmatprep.subr.mxu0 0.0
    %2024 = vmatpush1.msra.mxu0 %v72
    %2025 = vmatprep.subr.mxu0 0.0
    %2026 = vmatpush1.msra.mxu0 %v71
    %2027 = vmatprep.subr.mxu0 0.0
    %2028 = vmatpush1.msra.mxu0 %v70
    %2029 = vmatprep.subr.mxu0 0.0
    %2030 = vmatpush1.msra.mxu0 %v69
    %2031 = vmatprep.subr.mxu0 0.0
    %2032 = vmatpush2.msra.mxu0 0.0
    %2033 = vmatprep.subr.mxu0 0.0
    %2034 = vmatpush2.msra.mxu0 0.0
    %2035 = vmatprep.subr.mxu0 0.0
    %2036 = vmatpush2.msra.mxu0 0.0
    %2037 = vmatprep.subr.mxu0 0.0
    %2038 = vmatpush2.msra.mxu0 0.0
    %2039 = vmatprep.subr.mxu0 0.0
    %2040 = vmatpush2.msra.mxu0 0.0
    %2041 = vmatprep.subr.mxu0 0.0
    %2042 = vmatpush2.msra.mxu0 0.0
    %2043 = vmatprep.subr.mxu0 0.0
    %2044 = vmatpush2.msra.mxu0 0.0
    %2045 = vmatprep.subr.mxu0 0.0
    %2046 = vmatpush2.msra.mxu0 0.0
    %2047 = vmatprep.subr.mxu0 0.0
    %2048 = vmatpush2.msra.mxu0 0.0
    %2049 = vmatprep.subr.mxu0 0.0
    %2050 = vmatpush2.msra.mxu0 0.0
    %2051 = vmatprep.subr.mxu0 0.0
    %2052 = vmatpush2.msra.mxu0 0.0
    %2053 = vmatprep.subr.mxu0 0.0
    %2054 = vmatpush2.msra.mxu0 0.0
    %2055 = vmatprep.subr.mxu0 0.0
    %2056 = vmatpush2.msra.mxu0 0.0
    %2057 = vmatprep.subr.mxu0 0.0
    %2058 = vmatpush2.msra.mxu0 0.0
    %2059 = vmatprep.subr.mxu0 0.0
    %2060 = vmatpush2.msra.mxu0 0.0
    %2061 = vmatprep.subr.mxu0 0.0
    %2062 = vmatpush2.msra.mxu0 0.0
    %2063 = vmatprep.mubr.f32.mxu0 0.0
    %2064 = vmatmul.mubr.f32.gmra.mxu0 %v1997
    %v2065 = vpop.f32.mrf.mxu0
    %v2066 = vadd.f32 0.0, %v2065
    %v2067 = vpop.f32.mrf.mxu0
    %2068 = vdwg.mxu0
    %v2069 = vadd.f32 %v1994, %v2066
    %v2070 = vxor.u32 %v2069, 2147483648
    %v2071 = vmul.f32 %v2070, 1.442695
    %v2072 = vpow.pop %v2071
    %v2073 = vadd.f32 %v2072, 1.0
    %v2074 = vrcp.pop %v2073
    %v2075 = vmul.f32 1.0, %v2074
    %v2076 = vadd.f32 %v2066, %v360
    %2078 = vrot.lane.b32.xlu0 %v2076, 64
    %v2079 = vpop.permute.xlu0 %2078
    %v2081 = vmul.f32 %v2075, %v2079
    %2083 = vrot.lane.b32.xlu0 %v2081, 64
    %v2084 = vpop.permute.xlu0 %2083
    %v2086 = vadd.f32 %v1994, %v2084
    %v2087 = vtanh.pop %v2086
    %v2088 = vsub.f32 %v1813, %v2087
    %2090 = vrot.lane.b32.xlu0 %v2088, 96
    %v2091 = vpop.permute.xlu0 %2090
    %v2093 = vmul.f32 %v2075, %v2091
    %2095 = vrot.lane.b32.xlu0 %v2093, 32
    %v2096 = vpop.permute.xlu0 %2095
    %v2098 = vadd.f32 %v2087, %v2096
    %2100 = vrot.lane.b32.xlu0 %v2098, 64
    %v2101 = vpop.permute.xlu0 %2100
    %s2103 = scalar_lea.vmem %s7, 12
    %2104 = vst.msk [vmem:[%s2103] sm:$0x3] %vm393, %v2101
    %s2105 = scalar_lea.vmem %s0, 14
    %v2106 = vld [vmem:[%s2105] sm:$0x3]
    %2107 = vmatprep.subr.mxu0 0.0
    %2108 = vmatpush1.msra.mxu0 0.0
    %2109 = vmatprep.subr.mxu0 0.0
    %2110 = vmatpush1.msra.mxu0 0.0
    %2111 = vmatprep.subr.mxu0 0.0
    %2112 = vmatpush1.msra.mxu0 0.0
    %2113 = vmatprep.subr.mxu0 0.0
    %2114 = vmatpush1.msra.mxu0 0.0
    %2115 = vmatprep.subr.mxu0 0.0
    %2116 = vmatpush1.msra.mxu0 0.0
    %2117 = vmatprep.subr.mxu0 0.0
    %2118 = vmatpush1.msra.mxu0 0.0
    %2119 = vmatprep.subr.mxu0 0.0
    %2120 = vmatpush1.msra.mxu0 0.0
    %2121 = vmatprep.subr.mxu0 0.0
    %2122 = vmatpush1.msra.mxu0 0.0
    %2123 = vmatprep.subr.mxu0 0.0
    %2124 = vmatpush1.msra.mxu0 0.0
    %2125 = vmatprep.subr.mxu0 0.0
    %2126 = vmatpush1.msra.mxu0 0.0
    %2127 = vmatprep.subr.mxu0 0.0
    %2128 = vmatpush1.msra.mxu0 0.0
    %2129 = vmatprep.subr.mxu0 0.0
    %2130 = vmatpush1.msra.mxu0 0.0
    %2131 = vmatprep.subr.mxu0 0.0
    %2132 = vmatpush1.msra.mxu0 %v62
    %2133 = vmatprep.subr.mxu0 0.0
    %2134 = vmatpush1.msra.mxu0 %v61
    %2135 = vmatprep.subr.mxu0 0.0
    %2136 = vmatpush1.msra.mxu0 %v60
    %2137 = vmatprep.subr.mxu0 0.0
    %2138 = vmatpush1.msra.mxu0 %v59
    %2139 = vmatprep.subr.mxu0 0.0
    %2140 = vmatpush2.msra.mxu0 0.0
    %2141 = vmatprep.subr.mxu0 0.0
    %2142 = vmatpush2.msra.mxu0 0.0
    %2143 = vmatprep.subr.mxu0 0.0
    %2144 = vmatpush2.msra.mxu0 0.0
    %2145 = vmatprep.subr.mxu0 0.0
    %2146 = vmatpush2.msra.mxu0 0.0
    %2147 = vmatprep.subr.mxu0 0.0
    %2148 = vmatpush2.msra.mxu0 0.0
    %2149 = vmatprep.subr.mxu0 0.0
    %2150 = vmatpush2.msra.mxu0 0.0
    %2151 = vmatprep.subr.mxu0 0.0
    %2152 = vmatpush2.msra.mxu0 0.0
    %2153 = vmatprep.subr.mxu0 0.0
    %2154 = vmatpush2.msra.mxu0 0.0
    %2155 = vmatprep.subr.mxu0 0.0
    %2156 = vmatpush2.msra.mxu0 0.0
    %2157 = vmatprep.subr.mxu0 0.0
    %2158 = vmatpush2.msra.mxu0 0.0
    %2159 = vmatprep.subr.mxu0 0.0
    %2160 = vmatpush2.msra.mxu0 0.0
    %2161 = vmatprep.subr.mxu0 0.0
    %2162 = vmatpush2.msra.mxu0 0.0
    %2163 = vmatprep.subr.mxu0 0.0
    %2164 = vmatpush2.msra.mxu0 0.0
    %2165 = vmatprep.subr.mxu0 0.0
    %2166 = vmatpush2.msra.mxu0 0.0
    %2167 = vmatprep.subr.mxu0 0.0
    %2168 = vmatpush2.msra.mxu0 0.0
    %2169 = vmatprep.subr.mxu0 0.0
    %2170 = vmatpush2.msra.mxu0 0.0
    %2171 = vmatprep.mubr.f32.mxu0 0.0
    %2172 = vmatmul.mubr.f32.gmra.mxu0 %v1925
    %v2173 = vpop.f32.mrf.mxu0
    %v2174 = vadd.f32 0.0, %v2173
    %v2175 = vpop.f32.mrf.mxu0
    %2176 = vdwg.mxu0
    %v2177 = vadd.f32 %v2106, %v2174
    %v2178 = vxor.u32 %v2177, 2147483648
    %v2179 = vmul.f32 %v2178, 1.442695
    %v2180 = vpow.pop %v2179
    %v2181 = vadd.f32 %v2180, 1.0
    %v2182 = vrcp.pop %v2181
    %v2183 = vmul.f32 1.0, %v2182
    %v2184 = vadd.f32 %v2174, %v164
    %2186 = vrot.lane.b32.xlu0 %v2184, 64
    %v2187 = vpop.permute.xlu0 %2186
    %v2189 = vmul.f32 %v2183, %v2187
    %2191 = vrot.lane.b32.xlu0 %v2189, 64
    %v2192 = vpop.permute.xlu0 %2191
    %v2194 = vadd.f32 %v2106, %v2192
    %v2195 = vtanh.pop %v2194
    %v2196 = vsub.f32 %v1921, %v2195
    %2198 = vrot.lane.b32.xlu0 %v2196, 96
    %v2199 = vpop.permute.xlu0 %2198
    %v2201 = vmul.f32 %v2183, %v2199
    %2203 = vrot.lane.b32.xlu0 %v2201, 32
    %v2204 = vpop.permute.xlu0 %2203
    %v2206 = vadd.f32 %v2195, %v2204
    %2208 = vrot.lane.b32.xlu0 %v2206, 64
    %v2209 = vpop.permute.xlu0 %2208
    %v2210 = vsel %vm77, %v2209, 0
    %2212 = vmatprep.subr.mxu0 0.0
    %2213 = vmatpush1.msra.mxu0 0.0
    %2214 = vmatprep.subr.mxu0 0.0
    %2215 = vmatpush1.msra.mxu0 0.0
    %2216 = vmatprep.subr.mxu0 0.0
    %2217 = vmatpush1.msra.mxu0 0.0
    %2218 = vmatprep.subr.mxu0 0.0
    %2219 = vmatpush1.msra.mxu0 0.0
    %2220 = vmatprep.subr.mxu0 0.0
    %2221 = vmatpush1.msra.mxu0 0.0
    %2222 = vmatprep.subr.mxu0 0.0
    %2223 = vmatpush1.msra.mxu0 0.0
    %2224 = vmatprep.subr.mxu0 0.0
    %2225 = vmatpush1.msra.mxu0 0.0
    %2226 = vmatprep.subr.mxu0 0.0
    %2227 = vmatpush1.msra.mxu0 0.0
    %2228 = vmatprep.subr.mxu0 0.0
    %2229 = vmatpush1.msra.mxu0 0.0
    %2230 = vmatprep.subr.mxu0 0.0
    %2231 = vmatpush1.msra.mxu0 0.0
    %2232 = vmatprep.subr.mxu0 0.0
    %2233 = vmatpush1.msra.mxu0 0.0
    %2234 = vmatprep.subr.mxu0 0.0
    %2235 = vmatpush1.msra.mxu0 0.0
    %2236 = vmatprep.subr.mxu0 0.0
    %2237 = vmatpush1.msra.mxu0 %v67
    %2238 = vmatprep.subr.mxu0 0.0
    %2239 = vmatpush1.msra.mxu0 %v66
    %2240 = vmatprep.subr.mxu0 0.0
    %2241 = vmatpush1.msra.mxu0 %v65
    %2242 = vmatprep.subr.mxu0 0.0
    %2243 = vmatpush1.msra.mxu0 %v64
    %2244 = vmatprep.subr.mxu0 0.0
    %2245 = vmatpush2.msra.mxu0 0.0
    %2246 = vmatprep.subr.mxu0 0.0
    %2247 = vmatpush2.msra.mxu0 0.0
    %2248 = vmatprep.subr.mxu0 0.0
    %2249 = vmatpush2.msra.mxu0 0.0
    %2250 = vmatprep.subr.mxu0 0.0
    %2251 = vmatpush2.msra.mxu0 0.0
    %2252 = vmatprep.subr.mxu0 0.0
    %2253 = vmatpush2.msra.mxu0 0.0
    %2254 = vmatprep.subr.mxu0 0.0
    %2255 = vmatpush2.msra.mxu0 0.0
    %2256 = vmatprep.subr.mxu0 0.0
    %2257 = vmatpush2.msra.mxu0 0.0
    %2258 = vmatprep.subr.mxu0 0.0
    %2259 = vmatpush2.msra.mxu0 0.0
    %2260 = vmatprep.subr.mxu0 0.0
    %2261 = vmatpush2.msra.mxu0 0.0
    %2262 = vmatprep.subr.mxu0 0.0
    %2263 = vmatpush2.msra.mxu0 0.0
    %2264 = vmatprep.subr.mxu0 0.0
    %2265 = vmatpush2.msra.mxu0 0.0
    %2266 = vmatprep.subr.mxu0 0.0
    %2267 = vmatpush2.msra.mxu0 0.0
    %2268 = vmatprep.subr.mxu0 0.0
    %2269 = vmatpush2.msra.mxu0 0.0
    %2270 = vmatprep.subr.mxu0 0.0
    %2271 = vmatpush2.msra.mxu0 0.0
    %2272 = vmatprep.subr.mxu0 0.0
    %2273 = vmatpush2.msra.mxu0 0.0
    %2274 = vmatprep.subr.mxu0 0.0
    %2275 = vmatpush2.msra.mxu0 0.0
    %2276 = vmatprep.mubr.f32.mxu0 0.0
    %2277 = vmatmul.mubr.f32.gmra.mxu0 %v2210
    %v2278 = vpop.f32.mrf.mxu0
    %v2279 = vadd.f32 %v197, %v2278
    %v2280 = vpop.f32.mrf.mxu0
    %2281 = vdwg.mxu0
    %v2282 = vsel %vm77, %v2101, 0
    %2284 = vmatprep.subr.mxu0 0.0
    %2285 = vmatpush1.msra.mxu0 0.0
    %2286 = vmatprep.subr.mxu0 0.0
    %2287 = vmatpush1.msra.mxu0 0.0
    %2288 = vmatprep.subr.mxu0 0.0
    %2289 = vmatpush1.msra.mxu0 0.0
    %2290 = vmatprep.subr.mxu0 0.0
    %2291 = vmatpush1.msra.mxu0 0.0
    %2292 = vmatprep.subr.mxu0 0.0
    %2293 = vmatpush1.msra.mxu0 0.0
    %2294 = vmatprep.subr.mxu0 0.0
    %2295 = vmatpush1.msra.mxu0 0.0
    %2296 = vmatprep.subr.mxu0 0.0
    %2297 = vmatpush1.msra.mxu0 0.0
    %2298 = vmatprep.subr.mxu0 0.0
    %2299 = vmatpush1.msra.mxu0 0.0
    %2300 = vmatprep.subr.mxu0 0.0
    %2301 = vmatpush1.msra.mxu0 0.0
    %2302 = vmatprep.subr.mxu0 0.0
    %2303 = vmatpush1.msra.mxu0 0.0
    %2304 = vmatprep.subr.mxu0 0.0
    %2305 = vmatpush1.msra.mxu0 0.0
    %2306 = vmatprep.subr.mxu0 0.0
    %2307 = vmatpush1.msra.mxu0 0.0
    %2308 = vmatprep.subr.mxu0 0.0
    %2309 = vmatpush1.msra.mxu0 %v72
    %2310 = vmatprep.subr.mxu0 0.0
    %2311 = vmatpush1.msra.mxu0 %v71
    %2312 = vmatprep.subr.mxu0 0.0
    %2313 = vmatpush1.msra.mxu0 %v70
    %2314 = vmatprep.subr.mxu0 0.0
    %2315 = vmatpush1.msra.mxu0 %v69
    %2316 = vmatprep.subr.mxu0 0.0
    %2317 = vmatpush2.msra.mxu0 0.0
    %2318 = vmatprep.subr.mxu0 0.0
    %2319 = vmatpush2.msra.mxu0 0.0
    %2320 = vmatprep.subr.mxu0 0.0
    %2321 = vmatpush2.msra.mxu0 0.0
    %2322 = vmatprep.subr.mxu0 0.0
    %2323 = vmatpush2.msra.mxu0 0.0
    %2324 = vmatprep.subr.mxu0 0.0
    %2325 = vmatpush2.msra.mxu0 0.0
    %2326 = vmatprep.subr.mxu0 0.0
    %2327 = vmatpush2.msra.mxu0 0.0
    %2328 = vmatprep.subr.mxu0 0.0
    %2329 = vmatpush2.msra.mxu0 0.0
    %2330 = vmatprep.subr.mxu0 0.0
    %2331 = vmatpush2.msra.mxu0 0.0
    %2332 = vmatprep.subr.mxu0 0.0
    %2333 = vmatpush2.msra.mxu0 0.0
    %2334 = vmatprep.subr.mxu0 0.0
    %2335 = vmatpush2.msra.mxu0 0.0
    %2336 = vmatprep.subr.mxu0 0.0
    %2337 = vmatpush2.msra.mxu0 0.0
    %2338 = vmatprep.subr.mxu0 0.0
    %2339 = vmatpush2.msra.mxu0 0.0
    %2340 = vmatprep.subr.mxu0 0.0
    %2341 = vmatpush2.msra.mxu0 0.0
    %2342 = vmatprep.subr.mxu0 0.0
    %2343 = vmatpush2.msra.mxu0 0.0
    %2344 = vmatprep.subr.mxu0 0.0
    %2345 = vmatpush2.msra.mxu0 0.0
    %2346 = vmatprep.subr.mxu0 0.0
    %2347 = vmatpush2.msra.mxu0 0.0
    %2348 = vmatprep.mubr.f32.mxu0 0.0
    %2349 = vmatmul.mubr.f32.gmra.mxu0 %v2282
    %v2350 = vpop.f32.mrf.mxu0
    %v2351 = vadd.f32 0.0, %v2350
    %v2352 = vpop.f32.mrf.mxu0
    %2353 = vdwg.mxu0
    %v2354 = vadd.f32 %v2279, %v2351
    %v2355 = vxor.u32 %v2354, 2147483648
    %v2356 = vmul.f32 %v2355, 1.442695
    %v2357 = vpow.pop %v2356
    %v2358 = vadd.f32 %v2357, 1.0
    %v2359 = vrcp.pop %v2358
    %v2360 = vmul.f32 1.0, %v2359
    %v2361 = vadd.f32 %v2351, %v360
    %2363 = vrot.lane.b32.xlu0 %v2361, 64
    %v2364 = vpop.permute.xlu0 %2363
    %v2366 = vmul.f32 %v2360, %v2364
    %2368 = vrot.lane.b32.xlu0 %v2366, 64
    %v2369 = vpop.permute.xlu0 %2368
    %v2371 = vadd.f32 %v2279, %v2369
    %v2372 = vtanh.pop %v2371
    %v2373 = vsub.f32 %v2098, %v2372
    %2375 = vrot.lane.b32.xlu0 %v2373, 96
    %v2376 = vpop.permute.xlu0 %2375
    %v2378 = vmul.f32 %v2360, %v2376
    %2380 = vrot.lane.b32.xlu0 %v2378, 32
    %v2381 = vpop.permute.xlu0 %2380
    %v2383 = vadd.f32 %v2372, %v2381
    %2385 = vrot.lane.b32.xlu0 %v2383, 64
    %v2386 = vpop.permute.xlu0 %2385
    %s2388 = scalar_lea.vmem %s7, 14
    %2389 = vst.msk [vmem:[%s2388] sm:$0x3] %vm393, %v2386
    %2391 = vst.msk [vmem:[#allocation2] sm:$0x3] %vm393, %v2209
    %2392 = vst.msk [vmem:[#allocation3] sm:$0x3] %vm393, %v2386
    // Predicated region
    $region42: #{rnn_reg_forward.1} parent=1 // pred_check
      _
    $region43: #{rnn_reg_forward.1} parent=1 // pred_check_branch
      %2394 = sbr.rel (0) target = $region45
    $region44: #{rnn_reg_forward.1} parent=1 // pred_region
      _
    $region45: #{rnn_reg_forward.1} parent=1 // pred_fallthru
      _
    // Predicated region
    $region46: #{rnn_reg_forward.1} parent=1 // pred_check
      _
    $region47: #{rnn_reg_forward.1} parent=1 // pred_check_branch
      %2396 = sbr.rel (0) target = $region49
    $region48: #{rnn_reg_forward.1} parent=1 // pred_region
      _
    $region49: #{rnn_reg_forward.1} parent=1 // pred_fallthru
      _
    %2397 = vsyncpa [#allocation5], 1
    %2398 = vsyncpa [#allocation7], 1

</llo_original>
